<compile_context>
chip_gen: v7x
topology: tpu7x:2x2x1
jax: 0.10.0
libtpu: 0.0.40
codegen_flags: <defaults>
</compile_context>

<pallas_src>
import math
from dataclasses import dataclass, field

import numpy as np
import jax
import jax.numpy as jnp
from jax.experimental import pallas as pl
from jax.experimental.pallas import tpu as pltpu  # noqa: F401  (TPU backend assumed)


# ----------------------------- Pallas kernels ------------------------------

def _gated_res_skip(r, wfg0, wfg1, wrs, cdil, cres):
    """Shared per-batch body: k=2 gated conv, then stacked res/skip 1x1 convs.

    r: (Cres, L) residual slab. Returns (x_new (Cres, L-1), s_new (Cskip, L-1)).
    """
    lout = r.shape[1] - 1
    r0 = r[:, :lout]
    r1 = r[:, 1:lout + 1]
    # Two MXU matmuls for filter+gate (stacked rows) instead of four.
    y = (jnp.dot(wfg0, r0, preferred_element_type=jnp.float32)
         + jnp.dot(wfg1, r1, preferred_element_type=jnp.float32))      # (2*Cdil, L-1)
    gated = jnp.tanh(y[:cdil, :]) * jax.nn.sigmoid(y[cdil:, :])        # (Cdil, L-1)
    # One MXU matmul for residual+skip 1x1 convs (stacked rows).
    rs = jnp.dot(wrs, gated, preferred_element_type=jnp.float32)       # (Cres+Cskip, L-1)
    x_new = rs[:cres, :] + r1                                          # + residual[:, k-1:]
    s_new = rs[cres:, :]
    return x_new, s_new


def _layer_kernel(res_ref, wfg0_ref, wfg1_ref, wrs_ref, xo_ref, so_ref):
    # res_ref: (n, Cres, L); wfg*: (2*Cdil, Cres); wrs: (Cres+Cskip, Cdil)
    # xo_ref: (n, Cres, L-1); so_ref: (n, Cskip, L-1)
    cdil = wfg0_ref.shape[0] // 2
    cres = xo_ref.shape[1]
    wfg0 = wfg0_ref[...]
    wfg1 = wfg1_ref[...]
    wrs = wrs_ref[...]
    for b in range(res_ref.shape[0]):          # tiny static batch -> unrolled in-kernel
        x_new, s_new = _gated_res_skip(res_ref[b], wfg0, wfg1, wrs, cdil, cres)
        xo_ref[b] = x_new
        so_ref[b] = s_new


def _first_layer_kernel(x_ref, wstart_ref, wfg0_ref, wfg1_ref, wrs_ref, xo_ref, so_ref):
    # Layer 0 has dilation (1,1): fuse the start 1x1 conv in front of the layer body.
    cdil = wfg0_ref.shape[0] // 2
    cres = xo_ref.shape[1]
    wstart = wstart_ref[...]
    wfg0 = wfg0_ref[...]
    wfg1 = wfg1_ref[...]
    wrs = wrs_ref[...]
    for b in range(x_ref.shape[0]):
        r = jnp.dot(wstart, x_ref[b], preferred_element_type=jnp.float32)   # (Cres, L)
        x_new, s_new = _gated_res_skip(r, wfg0, wfg1, wrs, cdil, cres)
        xo_ref[b] = x_new
        so_ref[b] = s_new


def _end_kernel(skip_ref, w1_ref, b1_ref, w2_ref, b2_ref, o_ref):
    # o = W2 @ relu(W1 @ relu(skip) + b1) + b2, pointwise in L.
    w1 = w1_ref[...]
    b1 = b1_ref[...]
    w2 = w2_ref[...]
    b2 = b2_ref[...]
    for b in range(skip_ref.shape[0]):
        s = jnp.maximum(skip_ref[b], 0.0)
        h = jnp.maximum(jnp.dot(w1, s, preferred_element_type=jnp.float32) + b1, 0.0)
        o_ref[b] = jnp.dot(w2, h, preferred_element_type=jnp.float32) + b2


# ----------------------------- kernel wrappers ------------------------------

def fused_first_layer(x, wstart, wfg0, wfg1, wrs, cskip):
    n, cin, l = x.shape
    cres = wstart.shape[0]
    cdil = wfg0.shape[0] // 2
    lout = l - 1
    flops = 2 * n * (cres * cin * l + 2 * (2 * cdil) * cres * lout
                     + (cres + cskip) * cdil * lout)
    bytes_accessed = 4 * (x.size + wstart.size + wfg0.size + wfg1.size + wrs.size
                          + n * (cres + cskip) * lout)
    return pl.pallas_call(
        _first_layer_kernel,
        out_shape=(jax.ShapeDtypeStruct((n, cres, lout), jnp.float32),
                   jax.ShapeDtypeStruct((n, cskip, lout), jnp.float32)),
        cost_estimate=pl.CostEstimate(flops=int(flops),
                                      transcendentals=int(2 * n * cdil * lout),
                                      bytes_accessed=int(bytes_accessed)),
    )(x, wstart, wfg0, wfg1, wrs)


def fused_layer(residual, wfg0, wfg1, wrs, cskip):
    n, cres, l = residual.shape
    cdil = wfg0.shape[0] // 2
    lout = l - 1
    flops = 2 * n * (2 * (2 * cdil) * cres * lout + (cres + cskip) * cdil * lout)
    bytes_accessed = 4 * (residual.size + wfg0.size + wfg1.size + wrs.size
                          + n * (cres + cskip) * lout)
    return pl.pallas_call(
        _layer_kernel,
        out_shape=(jax.ShapeDtypeStruct((n, cres, lout), jnp.float32),
                   jax.ShapeDtypeStruct((n, cskip, lout), jnp.float32)),
        cost_estimate=pl.CostEstimate(flops=int(flops),
                                      transcendentals=int(2 * n * cdil * lout),
                                      bytes_accessed=int(bytes_accessed)),
    )(residual, wfg0, wfg1, wrs)


def fused_end(skip_tail, w1, b1, w2, b2):
    n, cskip, l = skip_tail.shape
    cend = w1.shape[0]
    cout = w2.shape[0]
    flops = 2 * n * l * (cend * cskip + cout * cend)
    bytes_accessed = 4 * (skip_tail.size + w1.size + w2.size + cend + cout + n * cout * l)
    return pl.pallas_call(
        _end_kernel,
        out_shape=jax.ShapeDtypeStruct((n, cout, l), jnp.float32),
        cost_estimate=pl.CostEstimate(flops=int(flops), transcendentals=0,
                                      bytes_accessed=int(bytes_accessed)),
    )(skip_tail, w1, b1.reshape(cend, 1), w2, b2.reshape(cout, 1))


# ----------------------------- JAX glue (layout only) ----------------------

def dilate_jax(x, dilation, init_dilation=1, pad_start=True):
    """Faithful port of dilate(): (n, c, l) -> (dilation, c, l*n/dilation)."""
    n, c, l = x.shape
    dilation_factor = dilation / init_dilation
    if dilation_factor == 1:
        return x
    new_l = int(np.ceil(l / dilation_factor) * dilation_factor)
    if new_l != l:
        pad = new_l - l
        cfg = ((0, 0), (0, 0), (pad, 0)) if pad_start else ((0, 0), (0, 0), (0, pad))
        x = jnp.pad(x, cfg)
        l = new_l
    l_new = int(math.ceil(l * init_dilation / dilation))
    n_new = int(math.ceil(n * dilation / init_dilation))
    x = jnp.transpose(x, (1, 2, 0)).reshape(c, l_new, n_new)
    x = jnp.transpose(x, (2, 0, 1))
    return x


# ----------------------------- Model ---------------------------------------

@dataclass
class WaveNetConfig:
    layers: int = 2
    blocks: int = 2
    dilation_channels: int = 8
    residual_channels: int = 8
    skip_channels: int = 16
    end_channels: int = 16
    input_channels: int = 8
    output_length: int = 4
    output_channels: int = 2
    num_classes: int = 4
    kernel_size: int = 2
    dilations: list = field(default_factory=list)
    receptive_field: int = 1


def build_config(**kw):
    cfg = WaveNetConfig(**kw)
    dilations = []
    receptive_field = 1
    init_dilation = 1
    for _b in range(cfg.blocks):
        additional_scope = cfg.kernel_size - 1
        new_dilation = 1
        for _i in range(cfg.layers):
            dilations.append((new_dilation, init_dilation))
            receptive_field += additional_scope
            additional_scope *= 2
            init_dilation = new_dilation
            new_dilation *= 2
    cfg.dilations = dilations
    cfg.receptive_field = receptive_field
    return cfg


def init_params(key, cfg):
    nl = cfg.blocks * cfg.layers
    keys = jax.random.split(key, 1 + 4 * nl + 4)

    def w(k, shape, scale=0.2):
        return (scale * jax.random.normal(k, shape)).astype(jnp.float32)

    params = {
        "start_w": w(keys[0], (cfg.residual_channels, cfg.input_channels)),
        "filter_w": [], "gate_w": [], "res_w": [], "skip_w": [],
    }
    for i in range(nl):
        k0, k1, k2, k3 = keys[1 + 4 * i: 1 + 4 * i + 4]
        params["filter_w"].append(w(k0, (cfg.dilation_channels, cfg.residual_channels, 2)))
        params["gate_w"].append(w(k1, (cfg.dilation_channels, cfg.residual_channels, 2)))
        params["res_w"].append(w(k2, (cfg.residual_channels, cfg.dilation_channels)))
        params["skip_w"].append(w(k3, (cfg.skip_channels, cfg.dilation_channels)))
    ke = keys[1 + 4 * nl:]
    params["end1_w"] = w(ke[0], (cfg.end_channels, cfg.skip_channels))
    params["end1_b"] = w(ke[1], (cfg.end_channels,))
    # end_convs_2: output_channels independent Conv1d(end->num_classes), stacked.
    params["end2_w"] = w(ke[2], (cfg.output_channels * cfg.num_classes, cfg.end_channels))
    params["end2_b"] = w(ke[3], (cfg.output_channels * cfg.num_classes,))
    return params


def pack_params(params, cfg):
    """Stack filter/gate taps and res/skip weights for the fused per-layer kernel."""
    nl = cfg.blocks * cfg.layers
    wfg0, wfg1, wrs = [], [], []
    for i in range(nl):
        wf, wg = params["filter_w"][i], params["gate_w"][i]
        wfg0.append(jnp.concatenate([wf[:, :, 0], wg[:, :, 0]], axis=0))   # (2*Cdil, Cres)
        wfg1.append(jnp.concatenate([wf[:, :, 1], wg[:, :, 1]], axis=0))   # (2*Cdil, Cres)
        wrs.append(jnp.concatenate([params["res_w"][i], params["skip_w"][i]], axis=0))
    return {"wfg0": wfg0, "wfg1": wfg1, "wrs": wrs}


def forward(params, x, cfg):
    nl = cfg.blocks * cfg.layers
    packed = pack_params(params, cfg)

    # Layer 0 (dilation (1,1)) fused with the start 1x1 conv; no dilate needed.
    x, so = fused_first_layer(x, params["start_w"], packed["wfg0"][0],
                              packed["wfg1"][0], packed["wrs"][0], cfg.skip_channels)
    skip = so   # first layer: skip accumulator starts at 0 -> skip = s

    for i in range(1, nl):
        dilation, init_dilation = cfg.dilations[i]
        residual = dilate_jax(x, dilation, init_dilation)          # layout glue only
        x, so = fused_layer(residual, packed["wfg0"][i], packed["wfg1"][i],
                            packed["wrs"][i], cfg.skip_channels)
        s = so
        if so.shape[2] != 1:
            # dilate(.., 1, init_dilation) never pads -> pure permutation, and the skip
            # 1x1 conv (done inside the kernel) commutes with it.
            s = dilate_jax(so, 1, init_dilation=dilation)
        skip = s + skip[:, :, -s.shape[2]:]

    # dropout(x) result is discarded by the original code (x is overwritten) -> no-op.
    # End stage is pointwise in L: evaluate only the last output_length positions.
    out_len = min(cfg.output_length, skip.shape[2])
    y = fused_end(skip[:, :, skip.shape[2] - out_len:],
                  params["end1_w"], params["end1_b"],
                  params["end2_w"], params["end2_b"])
    n = y.shape[0]
    # stack over end_convs_2 then permute(1,0,2,3) == reshape to (N, OC, classes, L)
    return y.reshape(n, cfg.output_channels, cfg.num_classes, out_len)


# ----------------------------- pure-JAX reference ---------------------------

def _ref_forward(params, x, cfg):
    def c1(x, w):
        return jnp.einsum("oc,ncl->nol", w, x)

    def c2(x, w):
        return (jnp.einsum("oc,ncl->nol", w[:, :, 0], x[:, :, :-1])
                + jnp.einsum("oc,ncl->nol", w[:, :, 1], x[:, :, 1:]))

    x = c1(x, params["start_w"])
    skip = None
    for i in range(cfg.blocks * cfg.layers):
        dilation, init_dilation = cfg.dilations[i]
        residual = dilate_jax(x, dilation, init_dilation)
        f = jnp.tanh(c2(residual, params["filter_w"][i]))
        g = jax.nn.sigmoid(c2(residual, params["gate_w"][i]))
        xg = f * g
        s = xg
        if xg.shape[2] != 1:
            s = dilate_jax(xg, 1, init_dilation=dilation)
        s = c1(s, params["skip_w"][i])
        skip = s if skip is None else s + skip[:, :, -s.shape[2]:]
        x = c1(xg, params["res_w"][i]) + residual[:, :, cfg.kernel_size - 1:]
    h = jax.nn.relu(c1(jax.nn.relu(skip), params["end1_w"])
                    + params["end1_b"][None, :, None])
    y = c1(h, params["end2_w"]) + params["end2_b"][None, :, None]
    n, _, l = y.shape
    y = y.reshape(n, cfg.output_channels, cfg.num_classes, l)
    return y[:, :, :, -cfg.output_length:]


# ----------------------------- main -----------------------------------------

if __name__ == "__main__":
    cfg = build_config(layers=2, blocks=2, dilation_channels=8, residual_channels=8,
                       skip_channels=16, end_channels=16, input_channels=8,
                       output_length=4, output_channels=2, num_classes=4, kernel_size=2)

    key = jax.random.PRNGKey(0)
    kp, kx = jax.random.split(key)
    params = init_params(kp, cfg)

    N, L = 2, 16
    x = jax.random.normal(kx, (N, cfg.input_channels, L), dtype=jnp.float32)

    fwd = jax.jit(lambda p, inp: forward(p, inp, cfg))
    out = jax.block_until_ready(fwd(params, x))

    ref = jax.block_until_ready(_ref_forward(params, x, cfg))
    assert out.shape == (N, cfg.output_channels, cfg.num_classes, cfg.output_length), out.shape
    np.testing.assert_allclose(np.asarray(out), np.asarray(ref), rtol=1e-4, atol=1e-4)

    # TODO(synk): generate()/generate_fast() (DilatedQueue autoregressive sampling)
    # are stateful Python inference loops and are not part of the forward() kernel.
    print("KERNEL_OK")
</pallas_src>

<mosaic_0001>
module attributes {stable_mosaic.version = 11 : i64} {
  func.func @_first_layer_kernel(%arg0: memref<2x8x16xf32, #tpu.memory_space<vmem>>, %arg1: memref<8x8xf32, #tpu.memory_space<vmem>>, %arg2: memref<16x8xf32, #tpu.memory_space<vmem>>, %arg3: memref<16x8xf32, #tpu.memory_space<vmem>>, %arg4: memref<24x8xf32, #tpu.memory_space<vmem>>, %arg5: memref<2x8x15xf32, #tpu.memory_space<vmem>>, %arg6: memref<2x16x15xf32, #tpu.memory_space<vmem>>) attributes {dimension_semantics = [], scalar_prefetch = 0 : i64, scratch_operands = 0 : i64, tpu.core_type = #tpu.core_type<tc>} {
    %c0 = arith.constant 0 : index
    %c0_0 = arith.constant 0 : index
    %0 = vector.load %arg1[%c0, %c0_0] : memref<8x8xf32, #tpu.memory_space<vmem>>, vector<8x8xf32>
    %c0_1 = arith.constant 0 : index
    %c0_2 = arith.constant 0 : index
    %1 = vector.load %arg2[%c0_1, %c0_2] : memref<16x8xf32, #tpu.memory_space<vmem>>, vector<16x8xf32>
    %c0_3 = arith.constant 0 : index
    %c0_4 = arith.constant 0 : index
    %2 = vector.load %arg3[%c0_3, %c0_4] : memref<16x8xf32, #tpu.memory_space<vmem>>, vector<16x8xf32>
    %c0_5 = arith.constant 0 : index
    %c0_6 = arith.constant 0 : index
    %3 = vector.load %arg4[%c0_5, %c0_6] : memref<24x8xf32, #tpu.memory_space<vmem>>, vector<24x8xf32>
    %c0_7 = arith.constant 0 : index
    %c0_8 = arith.constant 0 : index
    %c0_9 = arith.constant 0 : index
    %4 = vector.load %arg0[%c0_7, %c0_8, %c0_9] : memref<2x8x16xf32, #tpu.memory_space<vmem>>, vector<1x8x16xf32>
    %5 = vector.shape_cast %4 : vector<1x8x16xf32> to vector<8x16xf32>
    %cst = arith.constant dense<0.000000e+00> : vector<8x16xf32>
    %6 = tpu.matmul %0, %5, %cst {dimension_numbers = #tpu.dot_dimension_numbers<[1], [0], [0], [1], [0, 0, 1, 1], [], []>} : vector<8x8xf32>, vector<8x16xf32>, vector<8x16xf32> -> vector<8x16xf32>
    %7 = vector.extract_strided_slice %6 {offsets = [0, 0], sizes = [8, 15], strides = [1, 1]} : vector<8x16xf32> to vector<8x15xf32>
    %8 = vector.extract_strided_slice %6 {offsets = [0, 1], sizes = [8, 15], strides = [1, 1]} : vector<8x16xf32> to vector<8x15xf32>
    %cst_10 = arith.constant dense<0.000000e+00> : vector<16x15xf32>
    %9 = tpu.matmul %1, %7, %cst_10 {dimension_numbers = #tpu.dot_dimension_numbers<[1], [0], [0], [1], [0, 0, 1, 1], [], []>} : vector<16x8xf32>, vector<8x15xf32>, vector<16x15xf32> -> vector<16x15xf32>
    %cst_11 = arith.constant dense<0.000000e+00> : vector<16x15xf32>
    %10 = tpu.matmul %2, %8, %cst_11 {dimension_numbers = #tpu.dot_dimension_numbers<[1], [0], [0], [1], [0, 0, 1, 1], [], []>} : vector<16x8xf32>, vector<8x15xf32>, vector<16x15xf32> -> vector<16x15xf32>
    %11 = arith.addf %9, %10 : vector<16x15xf32>
    %12 = vector.extract_strided_slice %11 {offsets = [0, 0], sizes = [8, 15], strides = [1, 1]} : vector<16x15xf32> to vector<8x15xf32>
    %13 = math.tanh %12 : vector<8x15xf32>
    %14 = vector.extract_strided_slice %11 {offsets = [8, 0], sizes = [8, 15], strides = [1, 1]} : vector<16x15xf32> to vector<8x15xf32>
    %15 = arith.negf %14 : vector<8x15xf32>
    %16 = math.exp %15 : vector<8x15xf32>
    %cst_12 = arith.constant 1.000000e+00 : f32
    %17 = vector.broadcast %cst_12 : f32 to vector<8x15xf32>
    %18 = arith.addf %17, %16 : vector<8x15xf32>
    %19 = arith.divf %17, %18 : vector<8x15xf32>
    %20 = arith.mulf %13, %19 : vector<8x15xf32>
    %cst_13 = arith.constant dense<0.000000e+00> : vector<24x15xf32>
    %21 = tpu.matmul %3, %20, %cst_13 {dimension_numbers = #tpu.dot_dimension_numbers<[1], [0], [0], [1], [0, 0, 1, 1], [], []>} : vector<24x8xf32>, vector<8x15xf32>, vector<24x15xf32> -> vector<24x15xf32>
    %22 = vector.extract_strided_slice %21 {offsets = [0, 0], sizes = [8, 15], strides = [1, 1]} : vector<24x15xf32> to vector<8x15xf32>
    %23 = arith.addf %22, %8 : vector<8x15xf32>
    %24 = vector.extract_strided_slice %21 {offsets = [8, 0], sizes = [16, 15], strides = [1, 1]} : vector<24x15xf32> to vector<16x15xf32>
    %c0_14 = arith.constant 0 : index
    %c0_15 = arith.constant 0 : index
    %c0_16 = arith.constant 0 : index
    %25 = vector.load %arg5[%c0_14, %c0_15, %c0_16] : memref<2x8x15xf32, #tpu.memory_space<vmem>>, vector<1x8x15xf32>
    %26 = vector.shape_cast %25 : vector<1x8x15xf32> to vector<8x15xf32>
    %27 = vector.shape_cast %23 : vector<8x15xf32> to vector<1x8x15xf32>
    tpu.vector_store %arg5[%c0_14, %c0_15, %c0_16], %27 {strides = array<i32>} : memref<2x8x15xf32, #tpu.memory_space<vmem>>, vector<1x8x15xf32>,
    %c0_17 = arith.constant 0 : index
    %c0_18 = arith.constant 0 : index
    %c0_19 = arith.constant 0 : index
    %28 = vector.load %arg6[%c0_17, %c0_18, %c0_19] : memref<2x16x15xf32, #tpu.memory_space<vmem>>, vector<1x16x15xf32>
    %29 = vector.shape_cast %28 : vector<1x16x15xf32> to vector<16x15xf32>
    %30 = vector.shape_cast %24 : vector<16x15xf32> to vector<1x16x15xf32>
    tpu.vector_store %arg6[%c0_17, %c0_18, %c0_19], %30 {strides = array<i32>} : memref<2x16x15xf32, #tpu.memory_space<vmem>>, vector<1x16x15xf32>,
    %c1 = arith.constant 1 : index
    %c0_20 = arith.constant 0 : index
    %c0_21 = arith.constant 0 : index
    %31 = vector.load %arg0[%c1, %c0_20, %c0_21] : memref<2x8x16xf32, #tpu.memory_space<vmem>>, vector<1x8x16xf32>
    %32 = vector.shape_cast %31 : vector<1x8x16xf32> to vector<8x16xf32>
    %cst_22 = arith.constant dense<0.000000e+00> : vector<8x16xf32>
    %33 = tpu.matmul %0, %32, %cst_22 {dimension_numbers = #tpu.dot_dimension_numbers<[1], [0], [0], [1], [0, 0, 1, 1], [], []>} : vector<8x8xf32>, vector<8x16xf32>, vector<8x16xf32> -> vector<8x16xf32>
    %34 = vector.extract_strided_slice %33 {offsets = [0, 0], sizes = [8, 15], strides = [1, 1]} : vector<8x16xf32> to vector<8x15xf32>
    %35 = vector.extract_strided_slice %33 {offsets = [0, 1], sizes = [8, 15], strides = [1, 1]} : vector<8x16xf32> to vector<8x15xf32>
    %cst_23 = arith.constant dense<0.000000e+00> : vector<16x15xf32>
    %36 = tpu.matmul %1, %34, %cst_23 {dimension_numbers = #tpu.dot_dimension_numbers<[1], [0], [0], [1], [0, 0, 1, 1], [], []>} : vector<16x8xf32>, vector<8x15xf32>, vector<16x15xf32> -> vector<16x15xf32>
    %cst_24 = arith.constant dense<0.000000e+00> : vector<16x15xf32>
    %37 = tpu.matmul %2, %35, %cst_24 {dimension_numbers = #tpu.dot_dimension_numbers<[1], [0], [0], [1], [0, 0, 1, 1], [], []>} : vector<16x8xf32>, vector<8x15xf32>, vector<16x15xf32> -> vector<16x15xf32>
    %38 = arith.addf %36, %37 : vector<16x15xf32>
    %39 = vector.extract_strided_slice %38 {offsets = [0, 0], sizes = [8, 15], strides = [1, 1]} : vector<16x15xf32> to vector<8x15xf32>
    %40 = math.tanh %39 : vector<8x15xf32>
    %41 = vector.extract_strided_slice %38 {offsets = [8, 0], sizes = [8, 15], strides = [1, 1]} : vector<16x15xf32> to vector<8x15xf32>
    %42 = arith.negf %41 : vector<8x15xf32>
    %43 = math.exp %42 : vector<8x15xf32>
    %cst_25 = arith.constant 1.000000e+00 : f32
    %44 = vector.broadcast %cst_25 : f32 to vector<8x15xf32>
    %45 = arith.addf %44, %43 : vector<8x15xf32>
    %46 = arith.divf %44, %45 : vector<8x15xf32>
    %47 = arith.mulf %40, %46 : vector<8x15xf32>
    %cst_26 = arith.constant dense<0.000000e+00> : vector<24x15xf32>
    %48 = tpu.matmul %3, %47, %cst_26 {dimension_numbers = #tpu.dot_dimension_numbers<[1], [0], [0], [1], [0, 0, 1, 1], [], []>} : vector<24x8xf32>, vector<8x15xf32>, vector<24x15xf32> -> vector<24x15xf32>
    %49 = vector.extract_strided_slice %48 {offsets = [0, 0], sizes = [8, 15], strides = [1, 1]} : vector<24x15xf32> to vector<8x15xf32>
    %50 = arith.addf %49, %35 : vector<8x15xf32>
    %51 = vector.extract_strided_slice %48 {offsets = [8, 0], sizes = [16, 15], strides = [1, 1]} : vector<24x15xf32> to vector<16x15xf32>
    %c1_27 = arith.constant 1 : index
    %c0_28 = arith.constant 0 : index
    %c0_29 = arith.constant 0 : index
    %52 = vector.load %arg5[%c1_27, %c0_28, %c0_29] : memref<2x8x15xf32, #tpu.memory_space<vmem>>, vector<1x8x15xf32>
    %53 = vector.shape_cast %52 : vector<1x8x15xf32> to vector<8x15xf32>
    %54 = vector.shape_cast %50 : vector<8x15xf32> to vector<1x8x15xf32>
    tpu.vector_store %arg5[%c1_27, %c0_28, %c0_29], %54 {strides = array<i32>} : memref<2x8x15xf32, #tpu.memory_space<vmem>>, vector<1x8x15xf32>,
    %c1_30 = arith.constant 1 : index
    %c0_31 = arith.constant 0 : index
    %c0_32 = arith.constant 0 : index
    %55 = vector.load %arg6[%c1_30, %c0_31, %c0_32] : memref<2x16x15xf32, #tpu.memory_space<vmem>>, vector<1x16x15xf32>
    %56 = vector.shape_cast %55 : vector<1x16x15xf32> to vector<16x15xf32>
    %57 = vector.shape_cast %51 : vector<16x15xf32> to vector<1x16x15xf32>
    tpu.vector_store %arg6[%c1_30, %c0_31, %c0_32], %57 {strides = array<i32>} : memref<2x16x15xf32, #tpu.memory_space<vmem>>, vector<1x16x15xf32>,
    return
  }
}

module attributes {stable_mosaic.version = 11 : i64} {
  func.func @_layer_kernel(%arg0: memref<2x8x14xf32, #tpu.memory_space<vmem>>, %arg1: memref<16x8xf32, #tpu.memory_space<vmem>>, %arg2: memref<16x8xf32, #tpu.memory_space<vmem>>, %arg3: memref<24x8xf32, #tpu.memory_space<vmem>>, %arg4: memref<2x8x13xf32, #tpu.memory_space<vmem>>, %arg5: memref<2x16x13xf32, #tpu.memory_space<vmem>>) attributes {dimension_semantics = [], scalar_prefetch = 0 : i64, scratch_operands = 0 : i64, tpu.core_type = #tpu.core_type<tc>} {
    %c0 = arith.constant 0 : index
    %c0_0 = arith.constant 0 : index
    %0 = vector.load %arg1[%c0, %c0_0] : memref<16x8xf32, #tpu.memory_space<vmem>>, vector<16x8xf32>
    %c0_1 = arith.constant 0 : index
    %c0_2 = arith.constant 0 : index
    %1 = vector.load %arg2[%c0_1, %c0_2] : memref<16x8xf32, #tpu.memory_space<vmem>>, vector<16x8xf32>
    %c0_3 = arith.constant 0 : index
    %c0_4 = arith.constant 0 : index
    %2 = vector.load %arg3[%c0_3, %c0_4] : memref<24x8xf32, #tpu.memory_space<vmem>>, vector<24x8xf32>
    %c0_5 = arith.constant 0 : index
    %c0_6 = arith.constant 0 : index
    %c0_7 = arith.constant 0 : index
    %3 = vector.load %arg0[%c0_5, %c0_6, %c0_7] : memref<2x8x14xf32, #tpu.memory_space<vmem>>, vector<1x8x14xf32>
    %4 = vector.shape_cast %3 : vector<1x8x14xf32> to vector<8x14xf32>
    %5 = vector.extract_strided_slice %4 {offsets = [0, 0], sizes = [8, 13], strides = [1, 1]} : vector<8x14xf32> to vector<8x13xf32>
    %6 = vector.extract_strided_slice %4 {offsets = [0, 1], sizes = [8, 13], strides = [1, 1]} : vector<8x14xf32> to vector<8x13xf32>
    %cst = arith.constant dense<0.000000e+00> : vector<16x13xf32>
    %7 = tpu.matmul %0, %5, %cst {dimension_numbers = #tpu.dot_dimension_numbers<[1], [0], [0], [1], [0, 0, 1, 1], [], []>} : vector<16x8xf32>, vector<8x13xf32>, vector<16x13xf32> -> vector<16x13xf32>
    %cst_8 = arith.constant dense<0.000000e+00> : vector<16x13xf32>
    %8 = tpu.matmul %1, %6, %cst_8 {dimension_numbers = #tpu.dot_dimension_numbers<[1], [0], [0], [1], [0, 0, 1, 1], [], []>} : vector<16x8xf32>, vector<8x13xf32>, vector<16x13xf32> -> vector<16x13xf32>
    %9 = arith.addf %7, %8 : vector<16x13xf32>
    %10 = vector.extract_strided_slice %9 {offsets = [0, 0], sizes = [8, 13], strides = [1, 1]} : vector<16x13xf32> to vector<8x13xf32>
    %11 = math.tanh %10 : vector<8x13xf32>
    %12 = vector.extract_strided_slice %9 {offsets = [8, 0], sizes = [8, 13], strides = [1, 1]} : vector<16x13xf32> to vector<8x13xf32>
    %13 = arith.negf %12 : vector<8x13xf32>
    %14 = math.exp %13 : vector<8x13xf32>
    %cst_9 = arith.constant 1.000000e+00 : f32
    %15 = vector.broadcast %cst_9 : f32 to vector<8x13xf32>
    %16 = arith.addf %15, %14 : vector<8x13xf32>
    %17 = arith.divf %15, %16 : vector<8x13xf32>
    %18 = arith.mulf %11, %17 : vector<8x13xf32>
    %cst_10 = arith.constant dense<0.000000e+00> : vector<24x13xf32>
    %19 = tpu.matmul %2, %18, %cst_10 {dimension_numbers = #tpu.dot_dimension_numbers<[1], [0], [0], [1], [0, 0, 1, 1], [], []>} : vector<24x8xf32>, vector<8x13xf32>, vector<24x13xf32> -> vector<24x13xf32>
    %20 = vector.extract_strided_slice %19 {offsets = [0, 0], sizes = [8, 13], strides = [1, 1]} : vector<24x13xf32> to vector<8x13xf32>
    %21 = arith.addf %20, %6 : vector<8x13xf32>
    %22 = vector.extract_strided_slice %19 {offsets = [8, 0], sizes = [16, 13], strides = [1, 1]} : vector<24x13xf32> to vector<16x13xf32>
    %c0_11 = arith.constant 0 : index
    %c0_12 = arith.constant 0 : index
    %c0_13 = arith.constant 0 : index
    %23 = vector.load %arg4[%c0_11, %c0_12, %c0_13] : memref<2x8x13xf32, #tpu.memory_space<vmem>>, vector<1x8x13xf32>
    %24 = vector.shape_cast %23 : vector<1x8x13xf32> to vector<8x13xf32>
    %25 = vector.shape_cast %21 : vector<8x13xf32> to vector<1x8x13xf32>
    tpu.vector_store %arg4[%c0_11, %c0_12, %c0_13], %25 {strides = array<i32>} : memref<2x8x13xf32, #tpu.memory_space<vmem>>, vector<1x8x13xf32>,
    %c0_14 = arith.constant 0 : index
    %c0_15 = arith.constant 0 : index
    %c0_16 = arith.constant 0 : index
    %26 = vector.load %arg5[%c0_14, %c0_15, %c0_16] : memref<2x16x13xf32, #tpu.memory_space<vmem>>, vector<1x16x13xf32>
    %27 = vector.shape_cast %26 : vector<1x16x13xf32> to vector<16x13xf32>
    %28 = vector.shape_cast %22 : vector<16x13xf32> to vector<1x16x13xf32>
    tpu.vector_store %arg5[%c0_14, %c0_15, %c0_16], %28 {strides = array<i32>} : memref<2x16x13xf32, #tpu.memory_space<vmem>>, vector<1x16x13xf32>,
    %c1 = arith.constant 1 : index
    %c0_17 = arith.constant 0 : index
    %c0_18 = arith.constant 0 : index
    %29 = vector.load %arg0[%c1, %c0_17, %c0_18] : memref<2x8x14xf32, #tpu.memory_space<vmem>>, vector<1x8x14xf32>
    %30 = vector.shape_cast %29 : vector<1x8x14xf32> to vector<8x14xf32>
    %31 = vector.extract_strided_slice %30 {offsets = [0, 0], sizes = [8, 13], strides = [1, 1]} : vector<8x14xf32> to vector<8x13xf32>
    %32 = vector.extract_strided_slice %30 {offsets = [0, 1], sizes = [8, 13], strides = [1, 1]} : vector<8x14xf32> to vector<8x13xf32>
    %cst_19 = arith.constant dense<0.000000e+00> : vector<16x13xf32>
    %33 = tpu.matmul %0, %31, %cst_19 {dimension_numbers = #tpu.dot_dimension_numbers<[1], [0], [0], [1], [0, 0, 1, 1], [], []>} : vector<16x8xf32>, vector<8x13xf32>, vector<16x13xf32> -> vector<16x13xf32>
    %cst_20 = arith.constant dense<0.000000e+00> : vector<16x13xf32>
    %34 = tpu.matmul %1, %32, %cst_20 {dimension_numbers = #tpu.dot_dimension_numbers<[1], [0], [0], [1], [0, 0, 1, 1], [], []>} : vector<16x8xf32>, vector<8x13xf32>, vector<16x13xf32> -> vector<16x13xf32>
    %35 = arith.addf %33, %34 : vector<16x13xf32>
    %36 = vector.extract_strided_slice %35 {offsets = [0, 0], sizes = [8, 13], strides = [1, 1]} : vector<16x13xf32> to vector<8x13xf32>
    %37 = math.tanh %36 : vector<8x13xf32>
    %38 = vector.extract_strided_slice %35 {offsets = [8, 0], sizes = [8, 13], strides = [1, 1]} : vector<16x13xf32> to vector<8x13xf32>
    %39 = arith.negf %38 : vector<8x13xf32>
    %40 = math.exp %39 : vector<8x13xf32>
    %cst_21 = arith.constant 1.000000e+00 : f32
    %41 = vector.broadcast %cst_21 : f32 to vector<8x13xf32>
    %42 = arith.addf %41, %40 : vector<8x13xf32>
    %43 = arith.divf %41, %42 : vector<8x13xf32>
    %44 = arith.mulf %37, %43 : vector<8x13xf32>
    %cst_22 = arith.constant dense<0.000000e+00> : vector<24x13xf32>
    %45 = tpu.matmul %2, %44, %cst_22 {dimension_numbers = #tpu.dot_dimension_numbers<[1], [0], [0], [1], [0, 0, 1, 1], [], []>} : vector<24x8xf32>, vector<8x13xf32>, vector<24x13xf32> -> vector<24x13xf32>
    %46 = vector.extract_strided_slice %45 {offsets = [0, 0], sizes = [8, 13], strides = [1, 1]} : vector<24x13xf32> to vector<8x13xf32>
    %47 = arith.addf %46, %32 : vector<8x13xf32>
    %48 = vector.extract_strided_slice %45 {offsets = [8, 0], sizes = [16, 13], strides = [1, 1]} : vector<24x13xf32> to vector<16x13xf32>
    %c1_23 = arith.constant 1 : index
    %c0_24 = arith.constant 0 : index
    %c0_25 = arith.constant 0 : index
    %49 = vector.load %arg4[%c1_23, %c0_24, %c0_25] : memref<2x8x13xf32, #tpu.memory_space<vmem>>, vector<1x8x13xf32>
    %50 = vector.shape_cast %49 : vector<1x8x13xf32> to vector<8x13xf32>
    %51 = vector.shape_cast %47 : vector<8x13xf32> to vector<1x8x13xf32>
    tpu.vector_store %arg4[%c1_23, %c0_24, %c0_25], %51 {strides = array<i32>} : memref<2x8x13xf32, #tpu.memory_space<vmem>>, vector<1x8x13xf32>,
    %c1_26 = arith.constant 1 : index
    %c0_27 = arith.constant 0 : index
    %c0_28 = arith.constant 0 : index
    %52 = vector.load %arg5[%c1_26, %c0_27, %c0_28] : memref<2x16x13xf32, #tpu.memory_space<vmem>>, vector<1x16x13xf32>
    %53 = vector.shape_cast %52 : vector<1x16x13xf32> to vector<16x13xf32>
    %54 = vector.shape_cast %48 : vector<16x13xf32> to vector<1x16x13xf32>
    tpu.vector_store %arg5[%c1_26, %c0_27, %c0_28], %54 {strides = array<i32>} : memref<2x16x13xf32, #tpu.memory_space<vmem>>, vector<1x16x13xf32>,
    return
  }
}

module attributes {stable_mosaic.version = 11 : i64} {
  func.func @_layer_kernel(%arg0: memref<4x8x8xf32, #tpu.memory_space<vmem>>, %arg1: memref<16x8xf32, #tpu.memory_space<vmem>>, %arg2: memref<16x8xf32, #tpu.memory_space<vmem>>, %arg3: memref<24x8xf32, #tpu.memory_space<vmem>>, %arg4: memref<4x8x7xf32, #tpu.memory_space<vmem>>, %arg5: memref<4x16x7xf32, #tpu.memory_space<vmem>>) attributes {dimension_semantics = [], scalar_prefetch = 0 : i64, scratch_operands = 0 : i64, tpu.core_type = #tpu.core_type<tc>} {
    %c0 = arith.constant 0 : index
    %c0_0 = arith.constant 0 : index
    %0 = vector.load %arg1[%c0, %c0_0] : memref<16x8xf32, #tpu.memory_space<vmem>>, vector<16x8xf32>
    %c0_1 = arith.constant 0 : index
    %c0_2 = arith.constant 0 : index
    %1 = vector.load %arg2[%c0_1, %c0_2] : memref<16x8xf32, #tpu.memory_space<vmem>>, vector<16x8xf32>
    %c0_3 = arith.constant 0 : index
    %c0_4 = arith.constant 0 : index
    %2 = vector.load %arg3[%c0_3, %c0_4] : memref<24x8xf32, #tpu.memory_space<vmem>>, vector<24x8xf32>
    %c0_5 = arith.constant 0 : index
    %c0_6 = arith.constant 0 : index
    %c0_7 = arith.constant 0 : index
    %3 = vector.load %arg0[%c0_5, %c0_6, %c0_7] : memref<4x8x8xf32, #tpu.memory_space<vmem>>, vector<1x8x8xf32>
    %4 = vector.shape_cast %3 : vector<1x8x8xf32> to vector<8x8xf32>
    %5 = vector.extract_strided_slice %4 {offsets = [0, 0], sizes = [8, 7], strides = [1, 1]} : vector<8x8xf32> to vector<8x7xf32>
    %6 = vector.extract_strided_slice %4 {offsets = [0, 1], sizes = [8, 7], strides = [1, 1]} : vector<8x8xf32> to vector<8x7xf32>
    %cst = arith.constant dense<0.000000e+00> : vector<16x7xf32>
    %7 = tpu.matmul %0, %5, %cst {dimension_numbers = #tpu.dot_dimension_numbers<[1], [0], [0], [1], [0, 0, 1, 1], [], []>} : vector<16x8xf32>, vector<8x7xf32>, vector<16x7xf32> -> vector<16x7xf32>
    %cst_8 = arith.constant dense<0.000000e+00> : vector<16x7xf32>
    %8 = tpu.matmul %1, %6, %cst_8 {dimension_numbers = #tpu.dot_dimension_numbers<[1], [0], [0], [1], [0, 0, 1, 1], [], []>} : vector<16x8xf32>, vector<8x7xf32>, vector<16x7xf32> -> vector<16x7xf32>
    %9 = arith.addf %7, %8 : vector<16x7xf32>
    %10 = vector.extract_strided_slice %9 {offsets = [0, 0], sizes = [8, 7], strides = [1, 1]} : vector<16x7xf32> to vector<8x7xf32>
    %11 = math.tanh %10 : vector<8x7xf32>
    %12 = vector.extract_strided_slice %9 {offsets = [8, 0], sizes = [8, 7], strides = [1, 1]} : vector<16x7xf32> to vector<8x7xf32>
    %13 = arith.negf %12 : vector<8x7xf32>
    %14 = math.exp %13 : vector<8x7xf32>
    %cst_9 = arith.constant 1.000000e+00 : f32
    %15 = vector.broadcast %cst_9 : f32 to vector<8x7xf32>
    %16 = arith.addf %15, %14 : vector<8x7xf32>
    %17 = arith.divf %15, %16 : vector<8x7xf32>
    %18 = arith.mulf %11, %17 : vector<8x7xf32>
    %cst_10 = arith.constant dense<0.000000e+00> : vector<24x7xf32>
    %19 = tpu.matmul %2, %18, %cst_10 {dimension_numbers = #tpu.dot_dimension_numbers<[1], [0], [0], [1], [0, 0, 1, 1], [], []>} : vector<24x8xf32>, vector<8x7xf32>, vector<24x7xf32> -> vector<24x7xf32>
    %20 = vector.extract_strided_slice %19 {offsets = [0, 0], sizes = [8, 7], strides = [1, 1]} : vector<24x7xf32> to vector<8x7xf32>
    %21 = arith.addf %20, %6 : vector<8x7xf32>
    %22 = vector.extract_strided_slice %19 {offsets = [8, 0], sizes = [16, 7], strides = [1, 1]} : vector<24x7xf32> to vector<16x7xf32>
    %c0_11 = arith.constant 0 : index
    %c0_12 = arith.constant 0 : index
    %c0_13 = arith.constant 0 : index
    %23 = vector.load %arg4[%c0_11, %c0_12, %c0_13] : memref<4x8x7xf32, #tpu.memory_space<vmem>>, vector<1x8x7xf32>
    %24 = vector.shape_cast %23 : vector<1x8x7xf32> to vector<8x7xf32>
    %25 = vector.shape_cast %21 : vector<8x7xf32> to vector<1x8x7xf32>
    tpu.vector_store %arg4[%c0_11, %c0_12, %c0_13], %25 {strides = array<i32>} : memref<4x8x7xf32, #tpu.memory_space<vmem>>, vector<1x8x7xf32>,
    %c0_14 = arith.constant 0 : index
    %c0_15 = arith.constant 0 : index
    %c0_16 = arith.constant 0 : index
    %26 = vector.load %arg5[%c0_14, %c0_15, %c0_16] : memref<4x16x7xf32, #tpu.memory_space<vmem>>, vector<1x16x7xf32>
    %27 = vector.shape_cast %26 : vector<1x16x7xf32> to vector<16x7xf32>
    %28 = vector.shape_cast %22 : vector<16x7xf32> to vector<1x16x7xf32>
    tpu.vector_store %arg5[%c0_14, %c0_15, %c0_16], %28 {strides = array<i32>} : memref<4x16x7xf32, #tpu.memory_space<vmem>>, vector<1x16x7xf32>,
    %c1 = arith.constant 1 : index
    %c0_17 = arith.constant 0 : index
    %c0_18 = arith.constant 0 : index
    %29 = vector.load %arg0[%c1, %c0_17, %c0_18] : memref<4x8x8xf32, #tpu.memory_space<vmem>>, vector<1x8x8xf32>
    %30 = vector.shape_cast %29 : vector<1x8x8xf32> to vector<8x8xf32>
    %31 = vector.extract_strided_slice %30 {offsets = [0, 0], sizes = [8, 7], strides = [1, 1]} : vector<8x8xf32> to vector<8x7xf32>
    %32 = vector.extract_strided_slice %30 {offsets = [0, 1], sizes = [8, 7], strides = [1, 1]} : vector<8x8xf32> to vector<8x7xf32>
    %cst_19 = arith.constant dense<0.000000e+00> : vector<16x7xf32>
    %33 = tpu.matmul %0, %31, %cst_19 {dimension_numbers = #tpu.dot_dimension_numbers<[1], [0], [0], [1], [0, 0, 1, 1], [], []>} : vector<16x8xf32>, vector<8x7xf32>, vector<16x7xf32> -> vector<16x7xf32>
    %cst_20 = arith.constant dense<0.000000e+00> : vector<16x7xf32>
    %34 = tpu.matmul %1, %32, %cst_20 {dimension_numbers = #tpu.dot_dimension_numbers<[1], [0], [0], [1], [0, 0, 1, 1], [], []>} : vector<16x8xf32>, vector<8x7xf32>, vector<16x7xf32> -> vector<16x7xf32>
    %35 = arith.addf %33, %34 : vector<16x7xf32>
    %36 = vector.extract_strided_slice %35 {offsets = [0, 0], sizes = [8, 7], strides = [1, 1]} : vector<16x7xf32> to vector<8x7xf32>
    %37 = math.tanh %36 : vector<8x7xf32>
    %38 = vector.extract_strided_slice %35 {offsets = [8, 0], sizes = [8, 7], strides = [1, 1]} : vector<16x7xf32> to vector<8x7xf32>
    %39 = arith.negf %38 : vector<8x7xf32>
    %40 = math.exp %39 : vector<8x7xf32>
    %cst_21 = arith.constant 1.000000e+00 : f32
    %41 = vector.broadcast %cst_21 : f32 to vector<8x7xf32>
    %42 = arith.addf %41, %40 : vector<8x7xf32>
    %43 = arith.divf %41, %42 : vector<8x7xf32>
    %44 = arith.mulf %37, %43 : vector<8x7xf32>
    %cst_22 = arith.constant dense<0.000000e+00> : vector<24x7xf32>
    %45 = tpu.matmul %2, %44, %cst_22 {dimension_numbers = #tpu.dot_dimension_numbers<[1], [0], [0], [1], [0, 0, 1, 1], [], []>} : vector<24x8xf32>, vector<8x7xf32>, vector<24x7xf32> -> vector<24x7xf32>
    %46 = vector.extract_strided_slice %45 {offsets = [0, 0], sizes = [8, 7], strides = [1, 1]} : vector<24x7xf32> to vector<8x7xf32>
    %47 = arith.addf %46, %32 : vector<8x7xf32>
    %48 = vector.extract_strided_slice %45 {offsets = [8, 0], sizes = [16, 7], strides = [1, 1]} : vector<24x7xf32> to vector<16x7xf32>
    %c1_23 = arith.constant 1 : index
    %c0_24 = arith.constant 0 : index
    %c0_25 = arith.constant 0 : index
    %49 = vector.load %arg4[%c1_23, %c0_24, %c0_25] : memref<4x8x7xf32, #tpu.memory_space<vmem>>, vector<1x8x7xf32>
    %50 = vector.shape_cast %49 : vector<1x8x7xf32> to vector<8x7xf32>
    %51 = vector.shape_cast %47 : vector<8x7xf32> to vector<1x8x7xf32>
    tpu.vector_store %arg4[%c1_23, %c0_24, %c0_25], %51 {strides = array<i32>} : memref<4x8x7xf32, #tpu.memory_space<vmem>>, vector<1x8x7xf32>,
    %c1_26 = arith.constant 1 : index
    %c0_27 = arith.constant 0 : index
    %c0_28 = arith.constant 0 : index
    %52 = vector.load %arg5[%c1_26, %c0_27, %c0_28] : memref<4x16x7xf32, #tpu.memory_space<vmem>>, vector<1x16x7xf32>
    %53 = vector.shape_cast %52 : vector<1x16x7xf32> to vector<16x7xf32>
    %54 = vector.shape_cast %48 : vector<16x7xf32> to vector<1x16x7xf32>
    tpu.vector_store %arg5[%c1_26, %c0_27, %c0_28], %54 {strides = array<i32>} : memref<4x16x7xf32, #tpu.memory_space<vmem>>, vector<1x16x7xf32>,
    %c2 = arith.constant 2 : index
    %c0_29 = arith.constant 0 : index
    %c0_30 = arith.constant 0 : index
    %55 = vector.load %arg0[%c2, %c0_29, %c0_30] : memref<4x8x8xf32, #tpu.memory_space<vmem>>, vector<1x8x8xf32>
    %56 = vector.shape_cast %55 : vector<1x8x8xf32> to vector<8x8xf32>
    %57 = vector.extract_strided_slice %56 {offsets = [0, 0], sizes = [8, 7], strides = [1, 1]} : vector<8x8xf32> to vector<8x7xf32>
    %58 = vector.extract_strided_slice %56 {offsets = [0, 1], sizes = [8, 7], strides = [1, 1]} : vector<8x8xf32> to vector<8x7xf32>
    %cst_31 = arith.constant dense<0.000000e+00> : vector<16x7xf32>
    %59 = tpu.matmul %0, %57, %cst_31 {dimension_numbers = #tpu.dot_dimension_numbers<[1], [0], [0], [1], [0, 0, 1, 1], [], []>} : vector<16x8xf32>, vector<8x7xf32>, vector<16x7xf32> -> vector<16x7xf32>
    %cst_32 = arith.constant dense<0.000000e+00> : vector<16x7xf32>
    %60 = tpu.matmul %1, %58, %cst_32 {dimension_numbers = #tpu.dot_dimension_numbers<[1], [0], [0], [1], [0, 0, 1, 1], [], []>} : vector<16x8xf32>, vector<8x7xf32>, vector<16x7xf32> -> vector<16x7xf32>
    %61 = arith.addf %59, %60 : vector<16x7xf32>
    %62 = vector.extract_strided_slice %61 {offsets = [0, 0], sizes = [8, 7], strides = [1, 1]} : vector<16x7xf32> to vector<8x7xf32>
    %63 = math.tanh %62 : vector<8x7xf32>
    %64 = vector.extract_strided_slice %61 {offsets = [8, 0], sizes = [8, 7], strides = [1, 1]} : vector<16x7xf32> to vector<8x7xf32>
    %65 = arith.negf %64 : vector<8x7xf32>
    %66 = math.exp %65 : vector<8x7xf32>
    %cst_33 = arith.constant 1.000000e+00 : f32
    %67 = vector.broadcast %cst_33 : f32 to vector<8x7xf32>
    %68 = arith.addf %67, %66 : vector<8x7xf32>
    %69 = arith.divf %67, %68 : vector<8x7xf32>
    %70 = arith.mulf %63, %69 : vector<8x7xf32>
    %cst_34 = arith.constant dense<0.000000e+00> : vector<24x7xf32>
    %71 = tpu.matmul %2, %70, %cst_34 {dimension_numbers = #tpu.dot_dimension_numbers<[1], [0], [0], [1], [0, 0, 1, 1], [], []>} : vector<24x8xf32>, vector<8x7xf32>, vector<24x7xf32> -> vector<24x7xf32>
    %72 = vector.extract_strided_slice %71 {offsets = [0, 0], sizes = [8, 7], strides = [1, 1]} : vector<24x7xf32> to vector<8x7xf32>
    %73 = arith.addf %72, %58 : vector<8x7xf32>
    %74 = vector.extract_strided_slice %71 {offsets = [8, 0], sizes = [16, 7], strides = [1, 1]} : vector<24x7xf32> to vector<16x7xf32>
    %c2_35 = arith.constant 2 : index
    %c0_36 = arith.constant 0 : index
    %c0_37 = arith.constant 0 : index
    %75 = vector.load %arg4[%c2_35, %c0_36, %c0_37] : memref<4x8x7xf32, #tpu.memory_space<vmem>>, vector<1x8x7xf32>
    %76 = vector.shape_cast %75 : vector<1x8x7xf32> to vector<8x7xf32>
    %77 = vector.shape_cast %73 : vector<8x7xf32> to vector<1x8x7xf32>
    tpu.vector_store %arg4[%c2_35, %c0_36, %c0_37], %77 {strides = array<i32>} : memref<4x8x7xf32, #tpu.memory_space<vmem>>, vector<1x8x7xf32>,
    %c2_38 = arith.constant 2 : index
    %c0_39 = arith.constant 0 : index
    %c0_40 = arith.constant 0 : index
    %78 = vector.load %arg5[%c2_38, %c0_39, %c0_40] : memref<4x16x7xf32, #tpu.memory_space<vmem>>, vector<1x16x7xf32>
    %79 = vector.shape_cast %78 : vector<1x16x7xf32> to vector<16x7xf32>
    %80 = vector.shape_cast %74 : vector<16x7xf32> to vector<1x16x7xf32>
    tpu.vector_store %arg5[%c2_38, %c0_39, %c0_40], %80 {strides = array<i32>} : memref<4x16x7xf32, #tpu.memory_space<vmem>>, vector<1x16x7xf32>,
    %c3 = arith.constant 3 : index
    %c0_41 = arith.constant 0 : index
    %c0_42 = arith.constant 0 : index
    %81 = vector.load %arg0[%c3, %c0_41, %c0_42] : memref<4x8x8xf32, #tpu.memory_space<vmem>>, vector<1x8x8xf32>
    %82 = vector.shape_cast %81 : vector<1x8x8xf32> to vector<8x8xf32>
    %83 = vector.extract_strided_slice %82 {offsets = [0, 0], sizes = [8, 7], strides = [1, 1]} : vector<8x8xf32> to vector<8x7xf32>
    %84 = vector.extract_strided_slice %82 {offsets = [0, 1], sizes = [8, 7], strides = [1, 1]} : vector<8x8xf32> to vector<8x7xf32>
    %cst_43 = arith.constant dense<0.000000e+00> : vector<16x7xf32>
    %85 = tpu.matmul %0, %83, %cst_43 {dimension_numbers = #tpu.dot_dimension_numbers<[1], [0], [0], [1], [0, 0, 1, 1], [], []>} : vector<16x8xf32>, vector<8x7xf32>, vector<16x7xf32> -> vector<16x7xf32>
    %cst_44 = arith.constant dense<0.000000e+00> : vector<16x7xf32>
    %86 = tpu.matmul %1, %84, %cst_44 {dimension_numbers = #tpu.dot_dimension_numbers<[1], [0], [0], [1], [0, 0, 1, 1], [], []>} : vector<16x8xf32>, vector<8x7xf32>, vector<16x7xf32> -> vector<16x7xf32>
    %87 = arith.addf %85, %86 : vector<16x7xf32>
    %88 = vector.extract_strided_slice %87 {offsets = [0, 0], sizes = [8, 7], strides = [1, 1]} : vector<16x7xf32> to vector<8x7xf32>
    %89 = math.tanh %88 : vector<8x7xf32>
    %90 = vector.extract_strided_slice %87 {offsets = [8, 0], sizes = [8, 7], strides = [1, 1]} : vector<16x7xf32> to vector<8x7xf32>
    %91 = arith.negf %90 : vector<8x7xf32>
    %92 = math.exp %91 : vector<8x7xf32>
    %cst_45 = arith.constant 1.000000e+00 : f32
    %93 = vector.broadcast %cst_45 : f32 to vector<8x7xf32>
    %94 = arith.addf %93, %92 : vector<8x7xf32>
    %95 = arith.divf %93, %94 : vector<8x7xf32>
    %96 = arith.mulf %89, %95 : vector<8x7xf32>
    %cst_46 = arith.constant dense<0.000000e+00> : vector<24x7xf32>
    %97 = tpu.matmul %2, %96, %cst_46 {dimension_numbers = #tpu.dot_dimension_numbers<[1], [0], [0], [1], [0, 0, 1, 1], [], []>} : vector<24x8xf32>, vector<8x7xf32>, vector<24x7xf32> -> vector<24x7xf32>
    %98 = vector.extract_strided_slice %97 {offsets = [0, 0], sizes = [8, 7], strides = [1, 1]} : vector<24x7xf32> to vector<8x7xf32>
    %99 = arith.addf %98, %84 : vector<8x7xf32>
    %100 = vector.extract_strided_slice %97 {offsets = [8, 0], sizes = [16, 7], strides = [1, 1]} : vector<24x7xf32> to vector<16x7xf32>
    %c3_47 = arith.constant 3 : index
    %c0_48 = arith.constant 0 : index
    %c0_49 = arith.constant 0 : index
    %101 = vector.load %arg4[%c3_47, %c0_48, %c0_49] : memref<4x8x7xf32, #tpu.memory_space<vmem>>, vector<1x8x7xf32>
    %102 = vector.shape_cast %101 : vector<1x8x7xf32> to vector<8x7xf32>
    %103 = vector.shape_cast %99 : vector<8x7xf32> to vector<1x8x7xf32>
    tpu.vector_store %arg4[%c3_47, %c0_48, %c0_49], %103 {strides = array<i32>} : memref<4x8x7xf32, #tpu.memory_space<vmem>>, vector<1x8x7xf32>,
    %c3_50 = arith.constant 3 : index
    %c0_51 = arith.constant 0 : index
    %c0_52 = arith.constant 0 : index
    %104 = vector.load %arg5[%c3_50, %c0_51, %c0_52] : memref<4x16x7xf32, #tpu.memory_space<vmem>>, vector<1x16x7xf32>
    %105 = vector.shape_cast %104 : vector<1x16x7xf32> to vector<16x7xf32>
    %106 = vector.shape_cast %100 : vector<16x7xf32> to vector<1x16x7xf32>
    tpu.vector_store %arg5[%c3_50, %c0_51, %c0_52], %106 {strides = array<i32>} : memref<4x16x7xf32, #tpu.memory_space<vmem>>, vector<1x16x7xf32>,
    return
  }
}

module attributes {stable_mosaic.version = 11 : i64} {
  func.func @_layer_kernel(%arg0: memref<4x8x7xf32, #tpu.memory_space<vmem>>, %arg1: memref<16x8xf32, #tpu.memory_space<vmem>>, %arg2: memref<16x8xf32, #tpu.memory_space<vmem>>, %arg3: memref<24x8xf32, #tpu.memory_space<vmem>>, %arg4: memref<4x8x6xf32, #tpu.memory_space<vmem>>, %arg5: memref<4x16x6xf32, #tpu.memory_space<vmem>>) attributes {dimension_semantics = [], scalar_prefetch = 0 : i64, scratch_operands = 0 : i64, tpu.core_type = #tpu.core_type<tc>} {
    %c0 = arith.constant 0 : index
    %c0_0 = arith.constant 0 : index
    %0 = vector.load %arg1[%c0, %c0_0] : memref<16x8xf32, #tpu.memory_space<vmem>>, vector<16x8xf32>
    %c0_1 = arith.constant 0 : index
    %c0_2 = arith.constant 0 : index
    %1 = vector.load %arg2[%c0_1, %c0_2] : memref<16x8xf32, #tpu.memory_space<vmem>>, vector<16x8xf32>
    %c0_3 = arith.constant 0 : index
    %c0_4 = arith.constant 0 : index
    %2 = vector.load %arg3[%c0_3, %c0_4] : memref<24x8xf32, #tpu.memory_space<vmem>>, vector<24x8xf32>
    %c0_5 = arith.constant 0 : index
    %c0_6 = arith.constant 0 : index
    %c0_7 = arith.constant 0 : index
    %3 = vector.load %arg0[%c0_5, %c0_6, %c0_7] : memref<4x8x7xf32, #tpu.memory_space<vmem>>, vector<1x8x7xf32>
    %4 = vector.shape_cast %3 : vector<1x8x7xf32> to vector<8x7xf32>
    %5 = vector.extract_strided_slice %4 {offsets = [0, 0], sizes = [8, 6], strides = [1, 1]} : vector<8x7xf32> to vector<8x6xf32>
    %6 = vector.extract_strided_slice %4 {offsets = [0, 1], sizes = [8, 6], strides = [1, 1]} : vector<8x7xf32> to vector<8x6xf32>
    %cst = arith.constant dense<0.000000e+00> : vector<16x6xf32>
    %7 = tpu.matmul %0, %5, %cst {dimension_numbers = #tpu.dot_dimension_numbers<[1], [0], [0], [1], [0, 0, 1, 1], [], []>} : vector<16x8xf32>, vector<8x6xf32>, vector<16x6xf32> -> vector<16x6xf32>
    %cst_8 = arith.constant dense<0.000000e+00> : vector<16x6xf32>
    %8 = tpu.matmul %1, %6, %cst_8 {dimension_numbers = #tpu.dot_dimension_numbers<[1], [0], [0], [1], [0, 0, 1, 1], [], []>} : vector<16x8xf32>, vector<8x6xf32>, vector<16x6xf32> -> vector<16x6xf32>
    %9 = arith.addf %7, %8 : vector<16x6xf32>
    %10 = vector.extract_strided_slice %9 {offsets = [0, 0], sizes = [8, 6], strides = [1, 1]} : vector<16x6xf32> to vector<8x6xf32>
    %11 = math.tanh %10 : vector<8x6xf32>
    %12 = vector.extract_strided_slice %9 {offsets = [8, 0], sizes = [8, 6], strides = [1, 1]} : vector<16x6xf32> to vector<8x6xf32>
    %13 = arith.negf %12 : vector<8x6xf32>
    %14 = math.exp %13 : vector<8x6xf32>
    %cst_9 = arith.constant 1.000000e+00 : f32
    %15 = vector.broadcast %cst_9 : f32 to vector<8x6xf32>
    %16 = arith.addf %15, %14 : vector<8x6xf32>
    %17 = arith.divf %15, %16 : vector<8x6xf32>
    %18 = arith.mulf %11, %17 : vector<8x6xf32>
    %cst_10 = arith.constant dense<0.000000e+00> : vector<24x6xf32>
    %19 = tpu.matmul %2, %18, %cst_10 {dimension_numbers = #tpu.dot_dimension_numbers<[1], [0], [0], [1], [0, 0, 1, 1], [], []>} : vector<24x8xf32>, vector<8x6xf32>, vector<24x6xf32> -> vector<24x6xf32>
    %20 = vector.extract_strided_slice %19 {offsets = [0, 0], sizes = [8, 6], strides = [1, 1]} : vector<24x6xf32> to vector<8x6xf32>
    %21 = arith.addf %20, %6 : vector<8x6xf32>
    %22 = vector.extract_strided_slice %19 {offsets = [8, 0], sizes = [16, 6], strides = [1, 1]} : vector<24x6xf32> to vector<16x6xf32>
    %c0_11 = arith.constant 0 : index
    %c0_12 = arith.constant 0 : index
    %c0_13 = arith.constant 0 : index
    %23 = vector.load %arg4[%c0_11, %c0_12, %c0_13] : memref<4x8x6xf32, #tpu.memory_space<vmem>>, vector<1x8x6xf32>
    %24 = vector.shape_cast %23 : vector<1x8x6xf32> to vector<8x6xf32>
    %25 = vector.shape_cast %21 : vector<8x6xf32> to vector<1x8x6xf32>
    tpu.vector_store %arg4[%c0_11, %c0_12, %c0_13], %25 {strides = array<i32>} : memref<4x8x6xf32, #tpu.memory_space<vmem>>, vector<1x8x6xf32>,
    %c0_14 = arith.constant 0 : index
    %c0_15 = arith.constant 0 : index
    %c0_16 = arith.constant 0 : index
    %26 = vector.load %arg5[%c0_14, %c0_15, %c0_16] : memref<4x16x6xf32, #tpu.memory_space<vmem>>, vector<1x16x6xf32>
    %27 = vector.shape_cast %26 : vector<1x16x6xf32> to vector<16x6xf32>
    %28 = vector.shape_cast %22 : vector<16x6xf32> to vector<1x16x6xf32>
    tpu.vector_store %arg5[%c0_14, %c0_15, %c0_16], %28 {strides = array<i32>} : memref<4x16x6xf32, #tpu.memory_space<vmem>>, vector<1x16x6xf32>,
    %c1 = arith.constant 1 : index
    %c0_17 = arith.constant 0 : index
    %c0_18 = arith.constant 0 : index
    %29 = vector.load %arg0[%c1, %c0_17, %c0_18] : memref<4x8x7xf32, #tpu.memory_space<vmem>>, vector<1x8x7xf32>
    %30 = vector.shape_cast %29 : vector<1x8x7xf32> to vector<8x7xf32>
    %31 = vector.extract_strided_slice %30 {offsets = [0, 0], sizes = [8, 6], strides = [1, 1]} : vector<8x7xf32> to vector<8x6xf32>
    %32 = vector.extract_strided_slice %30 {offsets = [0, 1], sizes = [8, 6], strides = [1, 1]} : vector<8x7xf32> to vector<8x6xf32>
    %cst_19 = arith.constant dense<0.000000e+00> : vector<16x6xf32>
    %33 = tpu.matmul %0, %31, %cst_19 {dimension_numbers = #tpu.dot_dimension_numbers<[1], [0], [0], [1], [0, 0, 1, 1], [], []>} : vector<16x8xf32>, vector<8x6xf32>, vector<16x6xf32> -> vector<16x6xf32>
    %cst_20 = arith.constant dense<0.000000e+00> : vector<16x6xf32>
    %34 = tpu.matmul %1, %32, %cst_20 {dimension_numbers = #tpu.dot_dimension_numbers<[1], [0], [0], [1], [0, 0, 1, 1], [], []>} : vector<16x8xf32>, vector<8x6xf32>, vector<16x6xf32> -> vector<16x6xf32>
    %35 = arith.addf %33, %34 : vector<16x6xf32>
    %36 = vector.extract_strided_slice %35 {offsets = [0, 0], sizes = [8, 6], strides = [1, 1]} : vector<16x6xf32> to vector<8x6xf32>
    %37 = math.tanh %36 : vector<8x6xf32>
    %38 = vector.extract_strided_slice %35 {offsets = [8, 0], sizes = [8, 6], strides = [1, 1]} : vector<16x6xf32> to vector<8x6xf32>
    %39 = arith.negf %38 : vector<8x6xf32>
    %40 = math.exp %39 : vector<8x6xf32>
    %cst_21 = arith.constant 1.000000e+00 : f32
    %41 = vector.broadcast %cst_21 : f32 to vector<8x6xf32>
    %42 = arith.addf %41, %40 : vector<8x6xf32>
    %43 = arith.divf %41, %42 : vector<8x6xf32>
    %44 = arith.mulf %37, %43 : vector<8x6xf32>
    %cst_22 = arith.constant dense<0.000000e+00> : vector<24x6xf32>
    %45 = tpu.matmul %2, %44, %cst_22 {dimension_numbers = #tpu.dot_dimension_numbers<[1], [0], [0], [1], [0, 0, 1, 1], [], []>} : vector<24x8xf32>, vector<8x6xf32>, vector<24x6xf32> -> vector<24x6xf32>
    %46 = vector.extract_strided_slice %45 {offsets = [0, 0], sizes = [8, 6], strides = [1, 1]} : vector<24x6xf32> to vector<8x6xf32>
    %47 = arith.addf %46, %32 : vector<8x6xf32>
    %48 = vector.extract_strided_slice %45 {offsets = [8, 0], sizes = [16, 6], strides = [1, 1]} : vector<24x6xf32> to vector<16x6xf32>
    %c1_23 = arith.constant 1 : index
    %c0_24 = arith.constant 0 : index
    %c0_25 = arith.constant 0 : index
    %49 = vector.load %arg4[%c1_23, %c0_24, %c0_25] : memref<4x8x6xf32, #tpu.memory_space<vmem>>, vector<1x8x6xf32>
    %50 = vector.shape_cast %49 : vector<1x8x6xf32> to vector<8x6xf32>
    %51 = vector.shape_cast %47 : vector<8x6xf32> to vector<1x8x6xf32>
    tpu.vector_store %arg4[%c1_23, %c0_24, %c0_25], %51 {strides = array<i32>} : memref<4x8x6xf32, #tpu.memory_space<vmem>>, vector<1x8x6xf32>,
    %c1_26 = arith.constant 1 : index
    %c0_27 = arith.constant 0 : index
    %c0_28 = arith.constant 0 : index
    %52 = vector.load %arg5[%c1_26, %c0_27, %c0_28] : memref<4x16x6xf32, #tpu.memory_space<vmem>>, vector<1x16x6xf32>
    %53 = vector.shape_cast %52 : vector<1x16x6xf32> to vector<16x6xf32>
    %54 = vector.shape_cast %48 : vector<16x6xf32> to vector<1x16x6xf32>
    tpu.vector_store %arg5[%c1_26, %c0_27, %c0_28], %54 {strides = array<i32>} : memref<4x16x6xf32, #tpu.memory_space<vmem>>, vector<1x16x6xf32>,
    %c2 = arith.constant 2 : index
    %c0_29 = arith.constant 0 : index
    %c0_30 = arith.constant 0 : index
    %55 = vector.load %arg0[%c2, %c0_29, %c0_30] : memref<4x8x7xf32, #tpu.memory_space<vmem>>, vector<1x8x7xf32>
    %56 = vector.shape_cast %55 : vector<1x8x7xf32> to vector<8x7xf32>
    %57 = vector.extract_strided_slice %56 {offsets = [0, 0], sizes = [8, 6], strides = [1, 1]} : vector<8x7xf32> to vector<8x6xf32>
    %58 = vector.extract_strided_slice %56 {offsets = [0, 1], sizes = [8, 6], strides = [1, 1]} : vector<8x7xf32> to vector<8x6xf32>
    %cst_31 = arith.constant dense<0.000000e+00> : vector<16x6xf32>
    %59 = tpu.matmul %0, %57, %cst_31 {dimension_numbers = #tpu.dot_dimension_numbers<[1], [0], [0], [1], [0, 0, 1, 1], [], []>} : vector<16x8xf32>, vector<8x6xf32>, vector<16x6xf32> -> vector<16x6xf32>
    %cst_32 = arith.constant dense<0.000000e+00> : vector<16x6xf32>
    %60 = tpu.matmul %1, %58, %cst_32 {dimension_numbers = #tpu.dot_dimension_numbers<[1], [0], [0], [1], [0, 0, 1, 1], [], []>} : vector<16x8xf32>, vector<8x6xf32>, vector<16x6xf32> -> vector<16x6xf32>
    %61 = arith.addf %59, %60 : vector<16x6xf32>
    %62 = vector.extract_strided_slice %61 {offsets = [0, 0], sizes = [8, 6], strides = [1, 1]} : vector<16x6xf32> to vector<8x6xf32>
    %63 = math.tanh %62 : vector<8x6xf32>
    %64 = vector.extract_strided_slice %61 {offsets = [8, 0], sizes = [8, 6], strides = [1, 1]} : vector<16x6xf32> to vector<8x6xf32>
    %65 = arith.negf %64 : vector<8x6xf32>
    %66 = math.exp %65 : vector<8x6xf32>
    %cst_33 = arith.constant 1.000000e+00 : f32
    %67 = vector.broadcast %cst_33 : f32 to vector<8x6xf32>
    %68 = arith.addf %67, %66 : vector<8x6xf32>
    %69 = arith.divf %67, %68 : vector<8x6xf32>
    %70 = arith.mulf %63, %69 : vector<8x6xf32>
    %cst_34 = arith.constant dense<0.000000e+00> : vector<24x6xf32>
    %71 = tpu.matmul %2, %70, %cst_34 {dimension_numbers = #tpu.dot_dimension_numbers<[1], [0], [0], [1], [0, 0, 1, 1], [], []>} : vector<24x8xf32>, vector<8x6xf32>, vector<24x6xf32> -> vector<24x6xf32>
    %72 = vector.extract_strided_slice %71 {offsets = [0, 0], sizes = [8, 6], strides = [1, 1]} : vector<24x6xf32> to vector<8x6xf32>
    %73 = arith.addf %72, %58 : vector<8x6xf32>
    %74 = vector.extract_strided_slice %71 {offsets = [8, 0], sizes = [16, 6], strides = [1, 1]} : vector<24x6xf32> to vector<16x6xf32>
    %c2_35 = arith.constant 2 : index
    %c0_36 = arith.constant 0 : index
    %c0_37 = arith.constant 0 : index
    %75 = vector.load %arg4[%c2_35, %c0_36, %c0_37] : memref<4x8x6xf32, #tpu.memory_space<vmem>>, vector<1x8x6xf32>
    %76 = vector.shape_cast %75 : vector<1x8x6xf32> to vector<8x6xf32>
    %77 = vector.shape_cast %73 : vector<8x6xf32> to vector<1x8x6xf32>
    tpu.vector_store %arg4[%c2_35, %c0_36, %c0_37], %77 {strides = array<i32>} : memref<4x8x6xf32, #tpu.memory_space<vmem>>, vector<1x8x6xf32>,
    %c2_38 = arith.constant 2 : index
    %c0_39 = arith.constant 0 : index
    %c0_40 = arith.constant 0 : index
    %78 = vector.load %arg5[%c2_38, %c0_39, %c0_40] : memref<4x16x6xf32, #tpu.memory_space<vmem>>, vector<1x16x6xf32>
    %79 = vector.shape_cast %78 : vector<1x16x6xf32> to vector<16x6xf32>
    %80 = vector.shape_cast %74 : vector<16x6xf32> to vector<1x16x6xf32>
    tpu.vector_store %arg5[%c2_38, %c0_39, %c0_40], %80 {strides = array<i32>} : memref<4x16x6xf32, #tpu.memory_space<vmem>>, vector<1x16x6xf32>,
    %c3 = arith.constant 3 : index
    %c0_41 = arith.constant 0 : index
    %c0_42 = arith.constant 0 : index
    %81 = vector.load %arg0[%c3, %c0_41, %c0_42] : memref<4x8x7xf32, #tpu.memory_space<vmem>>, vector<1x8x7xf32>
    %82 = vector.shape_cast %81 : vector<1x8x7xf32> to vector<8x7xf32>
    %83 = vector.extract_strided_slice %82 {offsets = [0, 0], sizes = [8, 6], strides = [1, 1]} : vector<8x7xf32> to vector<8x6xf32>
    %84 = vector.extract_strided_slice %82 {offsets = [0, 1], sizes = [8, 6], strides = [1, 1]} : vector<8x7xf32> to vector<8x6xf32>
    %cst_43 = arith.constant dense<0.000000e+00> : vector<16x6xf32>
    %85 = tpu.matmul %0, %83, %cst_43 {dimension_numbers = #tpu.dot_dimension_numbers<[1], [0], [0], [1], [0, 0, 1, 1], [], []>} : vector<16x8xf32>, vector<8x6xf32>, vector<16x6xf32> -> vector<16x6xf32>
    %cst_44 = arith.constant dense<0.000000e+00> : vector<16x6xf32>
    %86 = tpu.matmul %1, %84, %cst_44 {dimension_numbers = #tpu.dot_dimension_numbers<[1], [0], [0], [1], [0, 0, 1, 1], [], []>} : vector<16x8xf32>, vector<8x6xf32>, vector<16x6xf32> -> vector<16x6xf32>
    %87 = arith.addf %85, %86 : vector<16x6xf32>
    %88 = vector.extract_strided_slice %87 {offsets = [0, 0], sizes = [8, 6], strides = [1, 1]} : vector<16x6xf32> to vector<8x6xf32>
    %89 = math.tanh %88 : vector<8x6xf32>
    %90 = vector.extract_strided_slice %87 {offsets = [8, 0], sizes = [8, 6], strides = [1, 1]} : vector<16x6xf32> to vector<8x6xf32>
    %91 = arith.negf %90 : vector<8x6xf32>
    %92 = math.exp %91 : vector<8x6xf32>
    %cst_45 = arith.constant 1.000000e+00 : f32
    %93 = vector.broadcast %cst_45 : f32 to vector<8x6xf32>
    %94 = arith.addf %93, %92 : vector<8x6xf32>
    %95 = arith.divf %93, %94 : vector<8x6xf32>
    %96 = arith.mulf %89, %95 : vector<8x6xf32>
    %cst_46 = arith.constant dense<0.000000e+00> : vector<24x6xf32>
    %97 = tpu.matmul %2, %96, %cst_46 {dimension_numbers = #tpu.dot_dimension_numbers<[1], [0], [0], [1], [0, 0, 1, 1], [], []>} : vector<24x8xf32>, vector<8x6xf32>, vector<24x6xf32> -> vector<24x6xf32>
    %98 = vector.extract_strided_slice %97 {offsets = [0, 0], sizes = [8, 6], strides = [1, 1]} : vector<24x6xf32> to vector<8x6xf32>
    %99 = arith.addf %98, %84 : vector<8x6xf32>
    %100 = vector.extract_strided_slice %97 {offsets = [8, 0], sizes = [16, 6], strides = [1, 1]} : vector<24x6xf32> to vector<16x6xf32>
    %c3_47 = arith.constant 3 : index
    %c0_48 = arith.constant 0 : index
    %c0_49 = arith.constant 0 : index
    %101 = vector.load %arg4[%c3_47, %c0_48, %c0_49] : memref<4x8x6xf32, #tpu.memory_space<vmem>>, vector<1x8x6xf32>
    %102 = vector.shape_cast %101 : vector<1x8x6xf32> to vector<8x6xf32>
    %103 = vector.shape_cast %99 : vector<8x6xf32> to vector<1x8x6xf32>
    tpu.vector_store %arg4[%c3_47, %c0_48, %c0_49], %103 {strides = array<i32>} : memref<4x8x6xf32, #tpu.memory_space<vmem>>, vector<1x8x6xf32>,
    %c3_50 = arith.constant 3 : index
    %c0_51 = arith.constant 0 : index
    %c0_52 = arith.constant 0 : index
    %104 = vector.load %arg5[%c3_50, %c0_51, %c0_52] : memref<4x16x6xf32, #tpu.memory_space<vmem>>, vector<1x16x6xf32>
    %105 = vector.shape_cast %104 : vector<1x16x6xf32> to vector<16x6xf32>
    %106 = vector.shape_cast %100 : vector<16x6xf32> to vector<1x16x6xf32>
    tpu.vector_store %arg5[%c3_50, %c0_51, %c0_52], %106 {strides = array<i32>} : memref<4x16x6xf32, #tpu.memory_space<vmem>>, vector<1x16x6xf32>,
    return
  }
}

module attributes {stable_mosaic.version = 11 : i64} {
  func.func @_end_kernel(%arg0: memref<2x16x4xf32, #tpu.memory_space<vmem>>, %arg1: memref<16x16xf32, #tpu.memory_space<vmem>>, %arg2: memref<16x1xf32, #tpu.memory_space<vmem>>, %arg3: memref<8x16xf32, #tpu.memory_space<vmem>>, %arg4: memref<8x1xf32, #tpu.memory_space<vmem>>, %arg5: memref<2x8x4xf32, #tpu.memory_space<vmem>>) attributes {dimension_semantics = [], scalar_prefetch = 0 : i64, scratch_operands = 0 : i64, tpu.core_type = #tpu.core_type<tc>} {
    %c0 = arith.constant 0 : index
    %c0_0 = arith.constant 0 : index
    %0 = vector.load %arg1[%c0, %c0_0] : memref<16x16xf32, #tpu.memory_space<vmem>>, vector<16x16xf32>
    %c0_1 = arith.constant 0 : index
    %c0_2 = arith.constant 0 : index
    %1 = vector.load %arg2[%c0_1, %c0_2] : memref<16x1xf32, #tpu.memory_space<vmem>>, vector<16x1xf32>
    %c0_3 = arith.constant 0 : index
    %c0_4 = arith.constant 0 : index
    %2 = vector.load %arg3[%c0_3, %c0_4] : memref<8x16xf32, #tpu.memory_space<vmem>>, vector<8x16xf32>
    %c0_5 = arith.constant 0 : index
    %c0_6 = arith.constant 0 : index
    %3 = vector.load %arg4[%c0_5, %c0_6] : memref<8x1xf32, #tpu.memory_space<vmem>>, vector<8x1xf32>
    %c0_7 = arith.constant 0 : index
    %c0_8 = arith.constant 0 : index
    %c0_9 = arith.constant 0 : index
    %4 = vector.load %arg0[%c0_7, %c0_8, %c0_9] : memref<2x16x4xf32, #tpu.memory_space<vmem>>, vector<1x16x4xf32>
    %5 = vector.shape_cast %4 : vector<1x16x4xf32> to vector<16x4xf32>
    %cst = arith.constant 0.000000e+00 : f32
    %6 = vector.broadcast %cst : f32 to vector<16x4xf32>
    %7 = arith.maximumf %5, %6 : vector<16x4xf32>
    %cst_10 = arith.constant dense<0.000000e+00> : vector<16x4xf32>
    %8 = tpu.matmul %0, %7, %cst_10 {dimension_numbers = #tpu.dot_dimension_numbers<[1], [0], [0], [1], [0, 0, 1, 1], [], []>} : vector<16x16xf32>, vector<16x4xf32>, vector<16x4xf32> -> vector<16x4xf32>
    %9 = vector.broadcast %1 : vector<16x1xf32> to vector<16x4xf32>
    %10 = arith.addf %8, %9 : vector<16x4xf32>
    %cst_11 = arith.constant 0.000000e+00 : f32
    %11 = vector.broadcast %cst_11 : f32 to vector<16x4xf32>
    %12 = arith.maximumf %10, %11 : vector<16x4xf32>
    %cst_12 = arith.constant dense<0.000000e+00> : vector<8x4xf32>
    %13 = tpu.matmul %2, %12, %cst_12 {dimension_numbers = #tpu.dot_dimension_numbers<[1], [0], [0], [1], [0, 0, 1, 1], [], []>} : vector<8x16xf32>, vector<16x4xf32>, vector<8x4xf32> -> vector<8x4xf32>
    %14 = vector.broadcast %3 : vector<8x1xf32> to vector<8x4xf32>
    %15 = arith.addf %13, %14 : vector<8x4xf32>
    %c0_13 = arith.constant 0 : index
    %c0_14 = arith.constant 0 : index
    %c0_15 = arith.constant 0 : index
    %16 = vector.load %arg5[%c0_13, %c0_14, %c0_15] : memref<2x8x4xf32, #tpu.memory_space<vmem>>, vector<1x8x4xf32>
    %17 = vector.shape_cast %16 : vector<1x8x4xf32> to vector<8x4xf32>
    %18 = vector.shape_cast %15 : vector<8x4xf32> to vector<1x8x4xf32>
    tpu.vector_store %arg5[%c0_13, %c0_14, %c0_15], %18 {strides = array<i32>} : memref<2x8x4xf32, #tpu.memory_space<vmem>>, vector<1x8x4xf32>,
    %c1 = arith.constant 1 : index
    %c0_16 = arith.constant 0 : index
    %c0_17 = arith.constant 0 : index
    %19 = vector.load %arg0[%c1, %c0_16, %c0_17] : memref<2x16x4xf32, #tpu.memory_space<vmem>>, vector<1x16x4xf32>
    %20 = vector.shape_cast %19 : vector<1x16x4xf32> to vector<16x4xf32>
    %cst_18 = arith.constant 0.000000e+00 : f32
    %21 = vector.broadcast %cst_18 : f32 to vector<16x4xf32>
    %22 = arith.maximumf %20, %21 : vector<16x4xf32>
    %cst_19 = arith.constant dense<0.000000e+00> : vector<16x4xf32>
    %23 = tpu.matmul %0, %22, %cst_19 {dimension_numbers = #tpu.dot_dimension_numbers<[1], [0], [0], [1], [0, 0, 1, 1], [], []>} : vector<16x16xf32>, vector<16x4xf32>, vector<16x4xf32> -> vector<16x4xf32>
    %24 = vector.broadcast %1 : vector<16x1xf32> to vector<16x4xf32>
    %25 = arith.addf %23, %24 : vector<16x4xf32>
    %cst_20 = arith.constant 0.000000e+00 : f32
    %26 = vector.broadcast %cst_20 : f32 to vector<16x4xf32>
    %27 = arith.maximumf %25, %26 : vector<16x4xf32>
    %cst_21 = arith.constant dense<0.000000e+00> : vector<8x4xf32>
    %28 = tpu.matmul %2, %27, %cst_21 {dimension_numbers = #tpu.dot_dimension_numbers<[1], [0], [0], [1], [0, 0, 1, 1], [], []>} : vector<8x16xf32>, vector<16x4xf32>, vector<8x4xf32> -> vector<8x4xf32>
    %29 = vector.broadcast %3 : vector<8x1xf32> to vector<8x4xf32>
    %30 = arith.addf %28, %29 : vector<8x4xf32>
    %c1_22 = arith.constant 1 : index
    %c0_23 = arith.constant 0 : index
    %c0_24 = arith.constant 0 : index
    %31 = vector.load %arg5[%c1_22, %c0_23, %c0_24] : memref<2x8x4xf32, #tpu.memory_space<vmem>>, vector<1x8x4xf32>
    %32 = vector.shape_cast %31 : vector<1x8x4xf32> to vector<8x4xf32>
    %33 = vector.shape_cast %30 : vector<8x4xf32> to vector<1x8x4xf32>
    tpu.vector_store %arg5[%c1_22, %c0_23, %c0_24], %33 {strides = array<i32>} : memref<2x8x4xf32, #tpu.memory_space<vmem>>, vector<1x8x4xf32>,
    return
  }
}

</mosaic_0001>

<llo_original>
// kernel: _lambda_.5
$region0: #{_lambda_.5}
  #allocation0 [shape = 'u32[]', space=smem, size = 0x4, offset = 0x4, fixed_abs, tag = 'smem constant byte address 0x4 - core index']
  #allocation1 [shape = 'u32[144,128]{1,0:T(1,128)}', space=vmem, size = 0x12000, scoped, tag = 'internal scratch']
  %s0 = inlined_call_operand.vmem [shape: f32[2,8,16], index: 0, kind: input, shape index: {}]
  %s1 = inlined_call_operand.vmem [shape: f32[8,8], index: 1, kind: input, shape index: {}]
  %s2 = inlined_call_operand.vmem [shape: f32[16,8], index: 2, kind: input, shape index: {}]
  %s3 = inlined_call_operand.vmem [shape: f32[16,8], index: 3, kind: input, shape index: {}]
  %s4 = inlined_call_operand.vmem [shape: f32[24,8], index: 4, kind: input, shape index: {}]
  %s5 = inlined_call_operand.vmem [shape: f32[2,8,15], index: 5, kind: output, shape index: {0}]
  %s6 = inlined_call_operand.vmem [shape: f32[2,16,15], index: 6, kind: output, shape index: {1}]
  %7 = xla_tuple %s5, %s6
  %s8 = sld [smem:[#allocation0]]
  $region38: #{_lambda_.5} parent=0
    _
  %s10 = ssub.s32 1, %s8
  %s11 = scalar_select 0, %s10, %s8
  // Predicated region
  $region2: #{_lambda_.5} parent=0 // pred_check
    _
  $region3: #{_lambda_.5} parent=0 // pred_check_branch
    %13 = sbr.rel (0) target = $region5
  $region4: #{_lambda_.5} parent=0 // pred_region
    _
  $region5: #{_lambda_.5} parent=0 // pred_fallthru
    _
  // Predicated region
  $region6: #{_lambda_.5} parent=0 // pred_check
    _
  $region7: #{_lambda_.5} parent=0 // pred_check_branch
    %15 = sbr.rel (0) target = $region9
  $region8: #{_lambda_.5} parent=0 // pred_region
    _
  $region9: #{_lambda_.5} parent=0 // pred_fallthru
    _
  // Predicated region
  $region10: #{_lambda_.5} parent=0 // pred_check
    _
  $region11: #{_lambda_.5} parent=0 // pred_check_branch
    %17 = sbr.rel (0) target = $region13
  $region12: #{_lambda_.5} parent=0 // pred_region
    _
  $region13: #{_lambda_.5} parent=0 // pred_fallthru
    _
  // Predicated region
  $region14: #{_lambda_.5} parent=0 // pred_check
    _
  $region15: #{_lambda_.5} parent=0 // pred_check_branch
    %19 = sbr.rel (0) target = $region17
  $region16: #{_lambda_.5} parent=0 // pred_region
    _
  $region17: #{_lambda_.5} parent=0 // pred_fallthru
    _
  // Predicated region
  $region18: #{_lambda_.5} parent=0 // pred_check
    _
  $region19: #{_lambda_.5} parent=0 // pred_check_branch
    %21 = sbr.rel (0) target = $region21
  $region20: #{_lambda_.5} parent=0 // pred_region
    _
  $region21: #{_lambda_.5} parent=0 // pred_fallthru
    _
  %v22 = vld [vmem:[%s1] sm:$0xff]
  %v23 = vld [vmem:[%s2] sm:$0xff]
  %v24 = vld [vmem:[%s2 + $0x8] sm:$0xff]
  %v25 = vld [vmem:[%s3] sm:$0xff]
  %v26 = vld [vmem:[%s3 + $0x8] sm:$0xff]
  %v27 = vld [vmem:[%s4] sm:$0xff]
  %v28 = vld [vmem:[%s4 + $0x8] sm:$0xff]
  %v29 = vld [vmem:[%s4 + $0x10] sm:$0xff]
  %v30 = vld [vmem:[%s0] sm:$0xff]
  %vm31 = vcmask 64512
  %v33 = vsel %vm31, %v22, 0
  %35 = vmatprep.subr.mxu0 0.0
  %36 = vmatpush1.msra.mxu0 %v30
  %37 = vmatprep.subr.mxu0 0.0
  %38 = vmatpush1.msra.mxu0 0.0
  %39 = vmatprep.subr.mxu0 0.0
  %40 = vmatpush1.msra.mxu0 0.0
  %41 = vmatprep.subr.mxu0 0.0
  %42 = vmatpush1.msra.mxu0 0.0
  %43 = vmatprep.subr.mxu0 0.0
  %44 = vmatpush1.msra.mxu0 0.0
  %45 = vmatprep.subr.mxu0 0.0
  %46 = vmatpush1.msra.mxu0 0.0
  %47 = vmatprep.subr.mxu0 0.0
  %48 = vmatpush1.msra.mxu0 0.0
  %49 = vmatprep.subr.mxu0 0.0
  %50 = vmatpush1.msra.mxu0 0.0
  %51 = vmatprep.subr.mxu0 0.0
  %52 = vmatpush1.msra.mxu0 0.0
  %53 = vmatprep.subr.mxu0 0.0
  %54 = vmatpush1.msra.mxu0 0.0
  %55 = vmatprep.subr.mxu0 0.0
  %56 = vmatpush1.msra.mxu0 0.0
  %57 = vmatprep.subr.mxu0 0.0
  %58 = vmatpush1.msra.mxu0 0.0
  %59 = vmatprep.subr.mxu0 0.0
  %60 = vmatpush1.msra.mxu0 0.0
  %61 = vmatprep.subr.mxu0 0.0
  %62 = vmatpush1.msra.mxu0 0.0
  %63 = vmatprep.subr.mxu0 0.0
  %64 = vmatpush1.msra.mxu0 0.0
  %65 = vmatprep.subr.mxu0 0.0
  %66 = vmatpush1.msra.mxu0 0.0
  %67 = vmatprep.subr.mxu0 0.0
  %68 = vmatpush1.msra.mxu0 0.0
  %69 = vmatprep.subr.mxu0 0.0
  %70 = vmatpush1.msra.mxu0 0.0
  %71 = vmatprep.subr.mxu0 0.0
  %72 = vmatpush1.msra.mxu0 0.0
  %73 = vmatprep.subr.mxu0 0.0
  %74 = vmatpush1.msra.mxu0 0.0
  %75 = vmatprep.subr.mxu0 0.0
  %76 = vmatpush1.msra.mxu0 0.0
  %77 = vmatprep.subr.mxu0 0.0
  %78 = vmatpush1.msra.mxu0 0.0
  %79 = vmatprep.subr.mxu0 0.0
  %80 = vmatpush1.msra.mxu0 0.0
  %81 = vmatprep.subr.mxu0 0.0
  %82 = vmatpush1.msra.mxu0 0.0
  %83 = vmatprep.subr.mxu0 0.0
  %84 = vmatpush1.msra.mxu0 0.0
  %85 = vmatprep.subr.mxu0 0.0
  %86 = vmatpush1.msra.mxu0 0.0
  %87 = vmatprep.subr.mxu0 0.0
  %88 = vmatpush1.msra.mxu0 0.0
  %89 = vmatprep.subr.mxu0 0.0
  %90 = vmatpush1.msra.mxu0 0.0
  %91 = vmatprep.subr.mxu0 0.0
  %92 = vmatpush1.msra.mxu0 0.0
  %93 = vmatprep.subr.mxu0 0.0
  %94 = vmatpush1.msra.mxu0 0.0
  %95 = vmatprep.subr.mxu0 0.0
  %96 = vmatpush1.msra.mxu0 0.0
  %97 = vmatprep.subr.mxu0 0.0
  %98 = vmatpush1.msra.mxu0 0.0
  %99 = vmatprep.mubr.f32.mxu0 0.0
  %100 = vmatmul.mubr.f32.gmra.mrb[0].mxu0 %v33
  %v101 = vpop.f32.mrb[0].mxu0
  %v102 = vadd.f32 0.0, %v101
  %v103 = vpop.f32.mrb[0].mxu0
  %104 = vdwg.mxu0
  %106 = vrot.lane.b32.xlu0 %v102, 127
  %v107 = vpop.permute.xlu0 %106
  %v110 = vsel %vm31, %v25, 0
  %v113 = vsel %vm31, %v26, 0
  %115 = vmatprep.subr.mxu0 0.0
  %116 = vmatpush1.msra.mxu0 %v107
  %117 = vmatprep.subr.mxu0 0.0
  %118 = vmatpush1.msra.mxu0 0.0
  %119 = vmatprep.subr.mxu0 0.0
  %120 = vmatpush1.msra.mxu0 0.0
  %121 = vmatprep.subr.mxu0 0.0
  %122 = vmatpush1.msra.mxu0 0.0
  %123 = vmatprep.subr.mxu0 0.0
  %124 = vmatpush1.msra.mxu0 0.0
  %125 = vmatprep.subr.mxu0 0.0
  %126 = vmatpush1.msra.mxu0 0.0
  %127 = vmatprep.subr.mxu0 0.0
  %128 = vmatpush1.msra.mxu0 0.0
  %129 = vmatprep.subr.mxu0 0.0
  %130 = vmatpush1.msra.mxu0 0.0
  %131 = vmatprep.subr.mxu0 0.0
  %132 = vmatpush1.msra.mxu0 0.0
  %133 = vmatprep.subr.mxu0 0.0
  %134 = vmatpush1.msra.mxu0 0.0
  %135 = vmatprep.subr.mxu0 0.0
  %136 = vmatpush1.msra.mxu0 0.0
  %137 = vmatprep.subr.mxu0 0.0
  %138 = vmatpush1.msra.mxu0 0.0
  %139 = vmatprep.subr.mxu0 0.0
  %140 = vmatpush1.msra.mxu0 0.0
  %141 = vmatprep.subr.mxu0 0.0
  %142 = vmatpush1.msra.mxu0 0.0
  %143 = vmatprep.subr.mxu0 0.0
  %144 = vmatpush1.msra.mxu0 0.0
  %145 = vmatprep.subr.mxu0 0.0
  %146 = vmatpush1.msra.mxu0 0.0
  %147 = vmatprep.subr.mxu0 0.0
  %148 = vmatpush1.msra.mxu0 0.0
  %149 = vmatprep.subr.mxu0 0.0
  %150 = vmatpush1.msra.mxu0 0.0
  %151 = vmatprep.subr.mxu0 0.0
  %152 = vmatpush1.msra.mxu0 0.0
  %153 = vmatprep.subr.mxu0 0.0
  %154 = vmatpush1.msra.mxu0 0.0
  %155 = vmatprep.subr.mxu0 0.0
  %156 = vmatpush1.msra.mxu0 0.0
  %157 = vmatprep.subr.mxu0 0.0
  %158 = vmatpush1.msra.mxu0 0.0
  %159 = vmatprep.subr.mxu0 0.0
  %160 = vmatpush1.msra.mxu0 0.0
  %161 = vmatprep.subr.mxu0 0.0
  %162 = vmatpush1.msra.mxu0 0.0
  %163 = vmatprep.subr.mxu0 0.0
  %164 = vmatpush1.msra.mxu0 0.0
  %165 = vmatprep.subr.mxu0 0.0
  %166 = vmatpush1.msra.mxu0 0.0
  %167 = vmatprep.subr.mxu0 0.0
  %168 = vmatpush1.msra.mxu0 0.0
  %169 = vmatprep.subr.mxu0 0.0
  %170 = vmatpush1.msra.mxu0 0.0
  %171 = vmatprep.subr.mxu0 0.0
  %172 = vmatpush1.msra.mxu0 0.0
  %173 = vmatprep.subr.mxu0 0.0
  %174 = vmatpush1.msra.mxu0 0.0
  %175 = vmatprep.subr.mxu0 0.0
  %176 = vmatpush1.msra.mxu0 0.0
  %177 = vmatprep.subr.mxu0 0.0
  %178 = vmatpush1.msra.mxu0 0.0
  %179 = vmatprep.mubr.f32.mxu0 0.0
  %180 = vmatmul.mubr.f32.gmra.mrb[0].mxu0 %v110
  %v181 = vpop.f32.mrb[0].mxu0
  %v182 = vadd.f32 0.0, %v181
  %v183 = vpop.f32.mrb[0].mxu0
  %184 = vmatprep.mubr.f32.mxu0 0.0
  %185 = vmatmul.mubr.f32.gmra.mrb[0].mxu0 %v113
  %v186 = vpop.f32.mrb[0].mxu0
  %v187 = vadd.f32 0.0, %v186
  %v188 = vpop.f32.mrb[0].mxu0
  %189 = vdwg.mxu0
  %v191 = vsel %vm31, %v23, 0
  %v194 = vsel %vm31, %v24, 0
  %196 = vmatprep.subr.mxu0 0.0
  %197 = vmatpush1.msra.mxu0 %v102
  %198 = vmatprep.subr.mxu0 0.0
  %199 = vmatpush1.msra.mxu0 0.0
  %200 = vmatprep.subr.mxu0 0.0
  %201 = vmatpush1.msra.mxu0 0.0
  %202 = vmatprep.subr.mxu0 0.0
  %203 = vmatpush1.msra.mxu0 0.0
  %204 = vmatprep.subr.mxu0 0.0
  %205 = vmatpush1.msra.mxu0 0.0
  %206 = vmatprep.subr.mxu0 0.0
  %207 = vmatpush1.msra.mxu0 0.0
  %208 = vmatprep.subr.mxu0 0.0
  %209 = vmatpush1.msra.mxu0 0.0
  %210 = vmatprep.subr.mxu0 0.0
  %211 = vmatpush1.msra.mxu0 0.0
  %212 = vmatprep.subr.mxu0 0.0
  %213 = vmatpush1.msra.mxu0 0.0
  %214 = vmatprep.subr.mxu0 0.0
  %215 = vmatpush1.msra.mxu0 0.0
  %216 = vmatprep.subr.mxu0 0.0
  %217 = vmatpush1.msra.mxu0 0.0
  %218 = vmatprep.subr.mxu0 0.0
  %219 = vmatpush1.msra.mxu0 0.0
  %220 = vmatprep.subr.mxu0 0.0
  %221 = vmatpush1.msra.mxu0 0.0
  %222 = vmatprep.subr.mxu0 0.0
  %223 = vmatpush1.msra.mxu0 0.0
  %224 = vmatprep.subr.mxu0 0.0
  %225 = vmatpush1.msra.mxu0 0.0
  %226 = vmatprep.subr.mxu0 0.0
  %227 = vmatpush1.msra.mxu0 0.0
  %228 = vmatprep.subr.mxu0 0.0
  %229 = vmatpush1.msra.mxu0 0.0
  %230 = vmatprep.subr.mxu0 0.0
  %231 = vmatpush1.msra.mxu0 0.0
  %232 = vmatprep.subr.mxu0 0.0
  %233 = vmatpush1.msra.mxu0 0.0
  %234 = vmatprep.subr.mxu0 0.0
  %235 = vmatpush1.msra.mxu0 0.0
  %236 = vmatprep.subr.mxu0 0.0
  %237 = vmatpush1.msra.mxu0 0.0
  %238 = vmatprep.subr.mxu0 0.0
  %239 = vmatpush1.msra.mxu0 0.0
  %240 = vmatprep.subr.mxu0 0.0
  %241 = vmatpush1.msra.mxu0 0.0
  %242 = vmatprep.subr.mxu0 0.0
  %243 = vmatpush1.msra.mxu0 0.0
  %244 = vmatprep.subr.mxu0 0.0
  %245 = vmatpush1.msra.mxu0 0.0
  %246 = vmatprep.subr.mxu0 0.0
  %247 = vmatpush1.msra.mxu0 0.0
  %248 = vmatprep.subr.mxu0 0.0
  %249 = vmatpush1.msra.mxu0 0.0
  %250 = vmatprep.subr.mxu0 0.0
  %251 = vmatpush1.msra.mxu0 0.0
  %252 = vmatprep.subr.mxu0 0.0
  %253 = vmatpush1.msra.mxu0 0.0
  %254 = vmatprep.subr.mxu0 0.0
  %255 = vmatpush1.msra.mxu0 0.0
  %256 = vmatprep.subr.mxu0 0.0
  %257 = vmatpush1.msra.mxu0 0.0
  %258 = vmatprep.subr.mxu0 0.0
  %259 = vmatpush1.msra.mxu0 0.0
  %260 = vmatprep.mubr.f32.mxu0 0.0
  %261 = vmatmul.mubr.f32.gmra.mrb[0].mxu0 %v191
  %v262 = vpop.f32.mrb[0].mxu0
  %v263 = vadd.f32 %v182, %v262
  %v264 = vpop.f32.mrb[0].mxu0
  %265 = vmatprep.mubr.f32.mxu0 0.0
  %266 = vmatmul.mubr.f32.gmra.mrb[0].mxu0 %v194
  %v267 = vpop.f32.mrb[0].mxu0
  %v268 = vadd.f32 %v187, %v267
  %v269 = vpop.f32.mrb[0].mxu0
  %270 = vdwg.mxu0
  %v271 = vtanh.pop %v263
  %v272 = vxor.u32 %v268, 2147483648
  %v273 = vmul.f32 %v272, 1.442695
  %v274 = vpow.pop %v273
  %v275 = vadd.f32 %v274, 1.0
  %v276 = vrcp.pop %v275
  %v277 = vmul.f32 1.0, %v276
  %v278 = vmul.f32 %v271, %v277
  %v280 = vsel %vm31, %v27, 0
  %v283 = vsel %vm31, %v28, 0
  %v286 = vsel %vm31, %v29, 0
  %288 = vmatprep.subr.mxu0 0.0
  %289 = vmatpush1.msra.mxu0 %v278
  %290 = vmatprep.subr.mxu0 0.0
  %291 = vmatpush1.msra.mxu0 0.0
  %292 = vmatprep.subr.mxu0 0.0
  %293 = vmatpush1.msra.mxu0 0.0
  %294 = vmatprep.subr.mxu0 0.0
  %295 = vmatpush1.msra.mxu0 0.0
  %296 = vmatprep.subr.mxu0 0.0
  %297 = vmatpush1.msra.mxu0 0.0
  %298 = vmatprep.subr.mxu0 0.0
  %299 = vmatpush1.msra.mxu0 0.0
  %300 = vmatprep.subr.mxu0 0.0
  %301 = vmatpush1.msra.mxu0 0.0
  %302 = vmatprep.subr.mxu0 0.0
  %303 = vmatpush1.msra.mxu0 0.0
  %304 = vmatprep.subr.mxu0 0.0
  %305 = vmatpush1.msra.mxu0 0.0
  %306 = vmatprep.subr.mxu0 0.0
  %307 = vmatpush1.msra.mxu0 0.0
  %308 = vmatprep.subr.mxu0 0.0
  %309 = vmatpush1.msra.mxu0 0.0
  %310 = vmatprep.subr.mxu0 0.0
  %311 = vmatpush1.msra.mxu0 0.0
  %312 = vmatprep.subr.mxu0 0.0
  %313 = vmatpush1.msra.mxu0 0.0
  %314 = vmatprep.subr.mxu0 0.0
  %315 = vmatpush1.msra.mxu0 0.0
  %316 = vmatprep.subr.mxu0 0.0
  %317 = vmatpush1.msra.mxu0 0.0
  %318 = vmatprep.subr.mxu0 0.0
  %319 = vmatpush1.msra.mxu0 0.0
  %320 = vmatprep.subr.mxu0 0.0
  %321 = vmatpush1.msra.mxu0 0.0
  %322 = vmatprep.subr.mxu0 0.0
  %323 = vmatpush1.msra.mxu0 0.0
  %324 = vmatprep.subr.mxu0 0.0
  %325 = vmatpush1.msra.mxu0 0.0
  %326 = vmatprep.subr.mxu0 0.0
  %327 = vmatpush1.msra.mxu0 0.0
  %328 = vmatprep.subr.mxu0 0.0
  %329 = vmatpush1.msra.mxu0 0.0
  %330 = vmatprep.subr.mxu0 0.0
  %331 = vmatpush1.msra.mxu0 0.0
  %332 = vmatprep.subr.mxu0 0.0
  %333 = vmatpush1.msra.mxu0 0.0
  %334 = vmatprep.subr.mxu0 0.0
  %335 = vmatpush1.msra.mxu0 0.0
  %336 = vmatprep.subr.mxu0 0.0
  %337 = vmatpush1.msra.mxu0 0.0
  %338 = vmatprep.subr.mxu0 0.0
  %339 = vmatpush1.msra.mxu0 0.0
  %340 = vmatprep.subr.mxu0 0.0
  %341 = vmatpush1.msra.mxu0 0.0
  %342 = vmatprep.subr.mxu0 0.0
  %343 = vmatpush1.msra.mxu0 0.0
  %344 = vmatprep.subr.mxu0 0.0
  %345 = vmatpush1.msra.mxu0 0.0
  %346 = vmatprep.subr.mxu0 0.0
  %347 = vmatpush1.msra.mxu0 0.0
  %348 = vmatprep.subr.mxu0 0.0
  %349 = vmatpush1.msra.mxu0 0.0
  %350 = vmatprep.subr.mxu0 0.0
  %351 = vmatpush1.msra.mxu0 0.0
  %352 = vmatprep.mubr.f32.mxu0 0.0
  %353 = vmatmul.mubr.f32.gmra.mrb[0].mxu0 %v280
  %v354 = vpop.f32.mrb[0].mxu0
  %v355 = vadd.f32 0.0, %v354
  %v356 = vpop.f32.mrb[0].mxu0
  %357 = vmatprep.mubr.f32.mxu0 0.0
  %358 = vmatmul.mubr.f32.gmra.mrb[0].mxu0 %v283
  %v359 = vpop.f32.mrb[0].mxu0
  %v360 = vadd.f32 0.0, %v359
  %v361 = vpop.f32.mrb[0].mxu0
  %362 = vmatprep.mubr.f32.mxu0 0.0
  %363 = vmatmul.mubr.f32.gmra.mrb[0].mxu0 %v286
  %v364 = vpop.f32.mrb[0].mxu0
  %v365 = vadd.f32 0.0, %v364
  %v366 = vpop.f32.mrb[0].mxu0
  %367 = vdwg.mxu0
  %v368 = vadd.f32 %v355, %v107
  %vm369 = vcmask 121856
  %370 = vst.msk [vmem:[%s5] sm:$0xff] %vm369, %v368
  %371 = vst.msk [vmem:[%s6] sm:$0xff] %vm369, %v360
  %372 = vst.msk [vmem:[%s6 + $0x8] sm:$0xff] %vm369, %v365
  %s373 = scalar_lea.vmem %s0, 8
  %v374 = vld [vmem:[%s373] sm:$0xff]
  %375 = vmatprep.subr.mxu0 0.0
  %376 = vmatpush1.msra.mxu0 %v374
  %377 = vmatprep.subr.mxu0 0.0
  %378 = vmatpush1.msra.mxu0 0.0
  %379 = vmatprep.subr.mxu0 0.0
  %380 = vmatpush1.msra.mxu0 0.0
  %381 = vmatprep.subr.mxu0 0.0
  %382 = vmatpush1.msra.mxu0 0.0
  %383 = vmatprep.subr.mxu0 0.0
  %384 = vmatpush1.msra.mxu0 0.0
  %385 = vmatprep.subr.mxu0 0.0
  %386 = vmatpush1.msra.mxu0 0.0
  %387 = vmatprep.subr.mxu0 0.0
  %388 = vmatpush1.msra.mxu0 0.0
  %389 = vmatprep.subr.mxu0 0.0
  %390 = vmatpush1.msra.mxu0 0.0
  %391 = vmatprep.subr.mxu0 0.0
  %392 = vmatpush1.msra.mxu0 0.0
  %393 = vmatprep.subr.mxu0 0.0
  %394 = vmatpush1.msra.mxu0 0.0
  %395 = vmatprep.subr.mxu0 0.0
  %396 = vmatpush1.msra.mxu0 0.0
  %397 = vmatprep.subr.mxu0 0.0
  %398 = vmatpush1.msra.mxu0 0.0
  %399 = vmatprep.subr.mxu0 0.0
  %400 = vmatpush1.msra.mxu0 0.0
  %401 = vmatprep.subr.mxu0 0.0
  %402 = vmatpush1.msra.mxu0 0.0
  %403 = vmatprep.subr.mxu0 0.0
  %404 = vmatpush1.msra.mxu0 0.0
  %405 = vmatprep.subr.mxu0 0.0
  %406 = vmatpush1.msra.mxu0 0.0
  %407 = vmatprep.subr.mxu0 0.0
  %408 = vmatpush1.msra.mxu0 0.0
  %409 = vmatprep.subr.mxu0 0.0
  %410 = vmatpush1.msra.mxu0 0.0
  %411 = vmatprep.subr.mxu0 0.0
  %412 = vmatpush1.msra.mxu0 0.0
  %413 = vmatprep.subr.mxu0 0.0
  %414 = vmatpush1.msra.mxu0 0.0
  %415 = vmatprep.subr.mxu0 0.0
  %416 = vmatpush1.msra.mxu0 0.0
  %417 = vmatprep.subr.mxu0 0.0
  %418 = vmatpush1.msra.mxu0 0.0
  %419 = vmatprep.subr.mxu0 0.0
  %420 = vmatpush1.msra.mxu0 0.0
  %421 = vmatprep.subr.mxu0 0.0
  %422 = vmatpush1.msra.mxu0 0.0
  %423 = vmatprep.subr.mxu0 0.0
  %424 = vmatpush1.msra.mxu0 0.0
  %425 = vmatprep.subr.mxu0 0.0
  %426 = vmatpush1.msra.mxu0 0.0
  %427 = vmatprep.subr.mxu0 0.0
  %428 = vmatpush1.msra.mxu0 0.0
  %429 = vmatprep.subr.mxu0 0.0
  %430 = vmatpush1.msra.mxu0 0.0
  %431 = vmatprep.subr.mxu0 0.0
  %432 = vmatpush1.msra.mxu0 0.0
  %433 = vmatprep.subr.mxu0 0.0
  %434 = vmatpush1.msra.mxu0 0.0
  %435 = vmatprep.subr.mxu0 0.0
  %436 = vmatpush1.msra.mxu0 0.0
  %437 = vmatprep.subr.mxu0 0.0
  %438 = vmatpush1.msra.mxu0 0.0
  %439 = vmatprep.mubr.f32.mxu0 0.0
  %440 = vmatmul.mubr.f32.gmra.mrb[0].mxu0 %v33
  %v441 = vpop.f32.mrb[0].mxu0
  %v442 = vadd.f32 0.0, %v441
  %v443 = vpop.f32.mrb[0].mxu0
  %444 = vdwg.mxu0
  %446 = vrot.lane.b32.xlu0 %v442, 127
  %v447 = vpop.permute.xlu0 %446
  %449 = vmatprep.subr.mxu0 0.0
  %450 = vmatpush1.msra.mxu0 %v447
  %451 = vmatprep.subr.mxu0 0.0
  %452 = vmatpush1.msra.mxu0 0.0
  %453 = vmatprep.subr.mxu0 0.0
  %454 = vmatpush1.msra.mxu0 0.0
  %455 = vmatprep.subr.mxu0 0.0
  %456 = vmatpush1.msra.mxu0 0.0
  %457 = vmatprep.subr.mxu0 0.0
  %458 = vmatpush1.msra.mxu0 0.0
  %459 = vmatprep.subr.mxu0 0.0
  %460 = vmatpush1.msra.mxu0 0.0
  %461 = vmatprep.subr.mxu0 0.0
  %462 = vmatpush1.msra.mxu0 0.0
  %463 = vmatprep.subr.mxu0 0.0
  %464 = vmatpush1.msra.mxu0 0.0
  %465 = vmatprep.subr.mxu0 0.0
  %466 = vmatpush1.msra.mxu0 0.0
  %467 = vmatprep.subr.mxu0 0.0
  %468 = vmatpush1.msra.mxu0 0.0
  %469 = vmatprep.subr.mxu0 0.0
  %470 = vmatpush1.msra.mxu0 0.0
  %471 = vmatprep.subr.mxu0 0.0
  %472 = vmatpush1.msra.mxu0 0.0
  %473 = vmatprep.subr.mxu0 0.0
  %474 = vmatpush1.msra.mxu0 0.0
  %475 = vmatprep.subr.mxu0 0.0
  %476 = vmatpush1.msra.mxu0 0.0
  %477 = vmatprep.subr.mxu0 0.0
  %478 = vmatpush1.msra.mxu0 0.0
  %479 = vmatprep.subr.mxu0 0.0
  %480 = vmatpush1.msra.mxu0 0.0
  %481 = vmatprep.subr.mxu0 0.0
  %482 = vmatpush1.msra.mxu0 0.0
  %483 = vmatprep.subr.mxu0 0.0
  %484 = vmatpush1.msra.mxu0 0.0
  %485 = vmatprep.subr.mxu0 0.0
  %486 = vmatpush1.msra.mxu0 0.0
  %487 = vmatprep.subr.mxu0 0.0
  %488 = vmatpush1.msra.mxu0 0.0
  %489 = vmatprep.subr.mxu0 0.0
  %490 = vmatpush1.msra.mxu0 0.0
  %491 = vmatprep.subr.mxu0 0.0
  %492 = vmatpush1.msra.mxu0 0.0
  %493 = vmatprep.subr.mxu0 0.0
  %494 = vmatpush1.msra.mxu0 0.0
  %495 = vmatprep.subr.mxu0 0.0
  %496 = vmatpush1.msra.mxu0 0.0
  %497 = vmatprep.subr.mxu0 0.0
  %498 = vmatpush1.msra.mxu0 0.0
  %499 = vmatprep.subr.mxu0 0.0
  %500 = vmatpush1.msra.mxu0 0.0
  %501 = vmatprep.subr.mxu0 0.0
  %502 = vmatpush1.msra.mxu0 0.0
  %503 = vmatprep.subr.mxu0 0.0
  %504 = vmatpush1.msra.mxu0 0.0
  %505 = vmatprep.subr.mxu0 0.0
  %506 = vmatpush1.msra.mxu0 0.0
  %507 = vmatprep.subr.mxu0 0.0
  %508 = vmatpush1.msra.mxu0 0.0
  %509 = vmatprep.subr.mxu0 0.0
  %510 = vmatpush1.msra.mxu0 0.0
  %511 = vmatprep.subr.mxu0 0.0
  %512 = vmatpush1.msra.mxu0 0.0
  %513 = vmatprep.mubr.f32.mxu0 0.0
  %514 = vmatmul.mubr.f32.gmra.mrb[0].mxu0 %v110
  %v515 = vpop.f32.mrb[0].mxu0
  %v516 = vadd.f32 0.0, %v515
  %v517 = vpop.f32.mrb[0].mxu0
  %518 = vmatprep.mubr.f32.mxu0 0.0
  %519 = vmatmul.mubr.f32.gmra.mrb[0].mxu0 %v113
  %v520 = vpop.f32.mrb[0].mxu0
  %v521 = vadd.f32 0.0, %v520
  %v522 = vpop.f32.mrb[0].mxu0
  %523 = vdwg.mxu0
  %524 = vmatprep.subr.mxu0 0.0
  %525 = vmatpush1.msra.mxu0 %v442
  %526 = vmatprep.subr.mxu0 0.0
  %527 = vmatpush1.msra.mxu0 0.0
  %528 = vmatprep.subr.mxu0 0.0
  %529 = vmatpush1.msra.mxu0 0.0
  %530 = vmatprep.subr.mxu0 0.0
  %531 = vmatpush1.msra.mxu0 0.0
  %532 = vmatprep.subr.mxu0 0.0
  %533 = vmatpush1.msra.mxu0 0.0
  %534 = vmatprep.subr.mxu0 0.0
  %535 = vmatpush1.msra.mxu0 0.0
  %536 = vmatprep.subr.mxu0 0.0
  %537 = vmatpush1.msra.mxu0 0.0
  %538 = vmatprep.subr.mxu0 0.0
  %539 = vmatpush1.msra.mxu0 0.0
  %540 = vmatprep.subr.mxu0 0.0
  %541 = vmatpush1.msra.mxu0 0.0
  %542 = vmatprep.subr.mxu0 0.0
  %543 = vmatpush1.msra.mxu0 0.0
  %544 = vmatprep.subr.mxu0 0.0
  %545 = vmatpush1.msra.mxu0 0.0
  %546 = vmatprep.subr.mxu0 0.0
  %547 = vmatpush1.msra.mxu0 0.0
  %548 = vmatprep.subr.mxu0 0.0
  %549 = vmatpush1.msra.mxu0 0.0
  %550 = vmatprep.subr.mxu0 0.0
  %551 = vmatpush1.msra.mxu0 0.0
  %552 = vmatprep.subr.mxu0 0.0
  %553 = vmatpush1.msra.mxu0 0.0
  %554 = vmatprep.subr.mxu0 0.0
  %555 = vmatpush1.msra.mxu0 0.0
  %556 = vmatprep.subr.mxu0 0.0
  %557 = vmatpush1.msra.mxu0 0.0
  %558 = vmatprep.subr.mxu0 0.0
  %559 = vmatpush1.msra.mxu0 0.0
  %560 = vmatprep.subr.mxu0 0.0
  %561 = vmatpush1.msra.mxu0 0.0
  %562 = vmatprep.subr.mxu0 0.0
  %563 = vmatpush1.msra.mxu0 0.0
  %564 = vmatprep.subr.mxu0 0.0
  %565 = vmatpush1.msra.mxu0 0.0
  %566 = vmatprep.subr.mxu0 0.0
  %567 = vmatpush1.msra.mxu0 0.0
  %568 = vmatprep.subr.mxu0 0.0
  %569 = vmatpush1.msra.mxu0 0.0
  %570 = vmatprep.subr.mxu0 0.0
  %571 = vmatpush1.msra.mxu0 0.0
  %572 = vmatprep.subr.mxu0 0.0
  %573 = vmatpush1.msra.mxu0 0.0
  %574 = vmatprep.subr.mxu0 0.0
  %575 = vmatpush1.msra.mxu0 0.0
  %576 = vmatprep.subr.mxu0 0.0
  %577 = vmatpush1.msra.mxu0 0.0
  %578 = vmatprep.subr.mxu0 0.0
  %579 = vmatpush1.msra.mxu0 0.0
  %580 = vmatprep.subr.mxu0 0.0
  %581 = vmatpush1.msra.mxu0 0.0
  %582 = vmatprep.subr.mxu0 0.0
  %583 = vmatpush1.msra.mxu0 0.0
  %584 = vmatprep.subr.mxu0 0.0
  %585 = vmatpush1.msra.mxu0 0.0
  %586 = vmatprep.subr.mxu0 0.0
  %587 = vmatpush1.msra.mxu0 0.0
  %588 = vmatprep.mubr.f32.mxu0 0.0
  %589 = vmatmul.mubr.f32.gmra.mrb[0].mxu0 %v191
  %v590 = vpop.f32.mrb[0].mxu0
  %v591 = vadd.f32 %v516, %v590
  %v592 = vpop.f32.mrb[0].mxu0
  %593 = vmatprep.mubr.f32.mxu0 0.0
  %594 = vmatmul.mubr.f32.gmra.mrb[0].mxu0 %v194
  %v595 = vpop.f32.mrb[0].mxu0
  %v596 = vadd.f32 %v521, %v595
  %v597 = vpop.f32.mrb[0].mxu0
  %598 = vdwg.mxu0
  %v599 = vtanh.pop %v591
  %v600 = vxor.u32 %v596, 2147483648
  %v601 = vmul.f32 %v600, 1.442695
  %v602 = vpow.pop %v601
  %v603 = vadd.f32 %v602, 1.0
  %v604 = vrcp.pop %v603
  %v605 = vmul.f32 1.0, %v604
  %v606 = vmul.f32 %v599, %v605
  %607 = vmatprep.subr.mxu0 0.0
  %608 = vmatpush1.msra.mxu0 %v606
  %609 = vmatprep.subr.mxu0 0.0
  %610 = vmatpush1.msra.mxu0 0.0
  %611 = vmatprep.subr.mxu0 0.0
  %612 = vmatpush1.msra.mxu0 0.0
  %613 = vmatprep.subr.mxu0 0.0
  %614 = vmatpush1.msra.mxu0 0.0
  %615 = vmatprep.subr.mxu0 0.0
  %616 = vmatpush1.msra.mxu0 0.0
  %617 = vmatprep.subr.mxu0 0.0
  %618 = vmatpush1.msra.mxu0 0.0
  %619 = vmatprep.subr.mxu0 0.0
  %620 = vmatpush1.msra.mxu0 0.0
  %621 = vmatprep.subr.mxu0 0.0
  %622 = vmatpush1.msra.mxu0 0.0
  %623 = vmatprep.subr.mxu0 0.0
  %624 = vmatpush1.msra.mxu0 0.0
  %625 = vmatprep.subr.mxu0 0.0
  %626 = vmatpush1.msra.mxu0 0.0
  %627 = vmatprep.subr.mxu0 0.0
  %628 = vmatpush1.msra.mxu0 0.0
  %629 = vmatprep.subr.mxu0 0.0
  %630 = vmatpush1.msra.mxu0 0.0
  %631 = vmatprep.subr.mxu0 0.0
  %632 = vmatpush1.msra.mxu0 0.0
  %633 = vmatprep.subr.mxu0 0.0
  %634 = vmatpush1.msra.mxu0 0.0
  %635 = vmatprep.subr.mxu0 0.0
  %636 = vmatpush1.msra.mxu0 0.0
  %637 = vmatprep.subr.mxu0 0.0
  %638 = vmatpush1.msra.mxu0 0.0
  %639 = vmatprep.subr.mxu0 0.0
  %640 = vmatpush1.msra.mxu0 0.0
  %641 = vmatprep.subr.mxu0 0.0
  %642 = vmatpush1.msra.mxu0 0.0
  %643 = vmatprep.subr.mxu0 0.0
  %644 = vmatpush1.msra.mxu0 0.0
  %645 = vmatprep.subr.mxu0 0.0
  %646 = vmatpush1.msra.mxu0 0.0
  %647 = vmatprep.subr.mxu0 0.0
  %648 = vmatpush1.msra.mxu0 0.0
  %649 = vmatprep.subr.mxu0 0.0
  %650 = vmatpush1.msra.mxu0 0.0
  %651 = vmatprep.subr.mxu0 0.0
  %652 = vmatpush1.msra.mxu0 0.0
  %653 = vmatprep.subr.mxu0 0.0
  %654 = vmatpush1.msra.mxu0 0.0
  %655 = vmatprep.subr.mxu0 0.0
  %656 = vmatpush1.msra.mxu0 0.0
  %657 = vmatprep.subr.mxu0 0.0
  %658 = vmatpush1.msra.mxu0 0.0
  %659 = vmatprep.subr.mxu0 0.0
  %660 = vmatpush1.msra.mxu0 0.0
  %661 = vmatprep.subr.mxu0 0.0
  %662 = vmatpush1.msra.mxu0 0.0
  %663 = vmatprep.subr.mxu0 0.0
  %664 = vmatpush1.msra.mxu0 0.0
  %665 = vmatprep.subr.mxu0 0.0
  %666 = vmatpush1.msra.mxu0 0.0
  %667 = vmatprep.subr.mxu0 0.0
  %668 = vmatpush1.msra.mxu0 0.0
  %669 = vmatprep.subr.mxu0 0.0
  %670 = vmatpush1.msra.mxu0 0.0
  %671 = vmatprep.mubr.f32.mxu0 0.0
  %672 = vmatmul.mubr.f32.gmra.mrb[0].mxu0 %v280
  %v673 = vpop.f32.mrb[0].mxu0
  %v674 = vadd.f32 0.0, %v673
  %v675 = vpop.f32.mrb[0].mxu0
  %676 = vmatprep.mubr.f32.mxu0 0.0
  %677 = vmatmul.mubr.f32.gmra.mrb[0].mxu0 %v283
  %v678 = vpop.f32.mrb[0].mxu0
  %v679 = vadd.f32 0.0, %v678
  %v680 = vpop.f32.mrb[0].mxu0
  %681 = vmatprep.mubr.f32.mxu0 0.0
  %682 = vmatmul.mubr.f32.gmra.mrb[0].mxu0 %v286
  %v683 = vpop.f32.mrb[0].mxu0
  %v684 = vadd.f32 0.0, %v683
  %v685 = vpop.f32.mrb[0].mxu0
  %686 = vdwg.mxu0
  %v687 = vadd.f32 %v674, %v447
  %s688 = scalar_lea.vmem %s5, 8
  %689 = vst.msk [vmem:[%s688] sm:$0xff] %vm369, %v687
  %s690 = scalar_lea.vmem %s6, 16
  %691 = vst.msk [vmem:[%s690] sm:$0xff] %vm369, %v679
  %692 = vst.msk [vmem:[%s690 + $0x8] sm:$0xff] %vm369, %v684
  // Predicated region
  $region22: #{_lambda_.5} parent=0 // pred_check
    _
  $region23: #{_lambda_.5} parent=0 // pred_check_branch
    %694 = sbr.rel (0) target = $region25
  $region24: #{_lambda_.5} parent=0 // pred_region
    _
  $region25: #{_lambda_.5} parent=0 // pred_fallthru
    _
  // Predicated region
  $region26: #{_lambda_.5} parent=0 // pred_check
    _
  $region27: #{_lambda_.5} parent=0 // pred_check_branch
    %696 = sbr.rel (0) target = $region29
  $region28: #{_lambda_.5} parent=0 // pred_region
    _
  $region29: #{_lambda_.5} parent=0 // pred_fallthru
    _
  // Predicated region
  $region30: #{_lambda_.5} parent=0 // pred_check
    _
  $region31: #{_lambda_.5} parent=0 // pred_check_branch
    %698 = sbr.rel (0) target = $region33
  $region32: #{_lambda_.5} parent=0 // pred_region
    _
  $region33: #{_lambda_.5} parent=0 // pred_fallthru
    _
  // Predicated region
  $region34: #{_lambda_.5} parent=0 // pred_check
    _
  $region35: #{_lambda_.5} parent=0 // pred_check_branch
    %700 = sbr.rel (0) target = $region37
  $region36: #{_lambda_.5} parent=0 // pred_region
    _
  $region37: #{_lambda_.5} parent=0 // pred_fallthru
    _

// kernel: _lambda_.7
$region0: #{_lambda_.7}
  #allocation0 [shape = 'u32[]', space=smem, size = 0x4, offset = 0x4, fixed_abs, tag = 'smem constant byte address 0x4 - core index']
  #allocation1 [shape = 'u32[144,128]{1,0:T(1,128)}', space=vmem, size = 0x12000, scoped, tag = 'internal scratch']
  %s0 = inlined_call_operand.vmem [shape: f32[2,8,14], index: 0, kind: input, shape index: {}]
  %s1 = inlined_call_operand.vmem [shape: f32[16,8], index: 1, kind: input, shape index: {}]
  %s2 = inlined_call_operand.vmem [shape: f32[16,8], index: 2, kind: input, shape index: {}]
  %s3 = inlined_call_operand.vmem [shape: f32[24,8], index: 3, kind: input, shape index: {}]
  %s4 = inlined_call_operand.vmem [shape: f32[2,8,13], index: 4, kind: output, shape index: {0}]
  %s5 = inlined_call_operand.vmem [shape: f32[2,16,13], index: 5, kind: output, shape index: {1}]
  %6 = xla_tuple %s4, %s5
  %s7 = sld [smem:[#allocation0]]
  $region34: #{_lambda_.7} parent=0
    _
  %s9 = ssub.s32 1, %s7
  %s10 = scalar_select 0, %s9, %s7
  // Predicated region
  $region2: #{_lambda_.7} parent=0 // pred_check
    _
  $region3: #{_lambda_.7} parent=0 // pred_check_branch
    %12 = sbr.rel (0) target = $region5
  $region4: #{_lambda_.7} parent=0 // pred_region
    _
  $region5: #{_lambda_.7} parent=0 // pred_fallthru
    _
  // Predicated region
  $region6: #{_lambda_.7} parent=0 // pred_check
    _
  $region7: #{_lambda_.7} parent=0 // pred_check_branch
    %14 = sbr.rel (0) target = $region9
  $region8: #{_lambda_.7} parent=0 // pred_region
    _
  $region9: #{_lambda_.7} parent=0 // pred_fallthru
    _
  // Predicated region
  $region10: #{_lambda_.7} parent=0 // pred_check
    _
  $region11: #{_lambda_.7} parent=0 // pred_check_branch
    %16 = sbr.rel (0) target = $region13
  $region12: #{_lambda_.7} parent=0 // pred_region
    _
  $region13: #{_lambda_.7} parent=0 // pred_fallthru
    _
  // Predicated region
  $region14: #{_lambda_.7} parent=0 // pred_check
    _
  $region15: #{_lambda_.7} parent=0 // pred_check_branch
    %18 = sbr.rel (0) target = $region17
  $region16: #{_lambda_.7} parent=0 // pred_region
    _
  $region17: #{_lambda_.7} parent=0 // pred_fallthru
    _
  %v19 = vld [vmem:[%s1] sm:$0xff]
  %v20 = vld [vmem:[%s1 + $0x8] sm:$0xff]
  %v21 = vld [vmem:[%s2] sm:$0xff]
  %v22 = vld [vmem:[%s2 + $0x8] sm:$0xff]
  %v23 = vld [vmem:[%s3] sm:$0xff]
  %v24 = vld [vmem:[%s3 + $0x8] sm:$0xff]
  %v25 = vld [vmem:[%s3 + $0x10] sm:$0xff]
  %v26 = vld [vmem:[%s0] sm:$0xff]
  %28 = vrot.lane.b32.xlu0 %v26, 127
  %v29 = vpop.permute.xlu0 %28
  %vm31 = vcmask 64512
  %v33 = vsel %vm31, %v21, 0
  %v36 = vsel %vm31, %v22, 0
  %38 = vmatprep.subr.mxu0 0.0
  %39 = vmatpush1.msra.mxu0 %v29
  %40 = vmatprep.subr.mxu0 0.0
  %41 = vmatpush1.msra.mxu0 0.0
  %42 = vmatprep.subr.mxu0 0.0
  %43 = vmatpush1.msra.mxu0 0.0
  %44 = vmatprep.subr.mxu0 0.0
  %45 = vmatpush1.msra.mxu0 0.0
  %46 = vmatprep.subr.mxu0 0.0
  %47 = vmatpush1.msra.mxu0 0.0
  %48 = vmatprep.subr.mxu0 0.0
  %49 = vmatpush1.msra.mxu0 0.0
  %50 = vmatprep.subr.mxu0 0.0
  %51 = vmatpush1.msra.mxu0 0.0
  %52 = vmatprep.subr.mxu0 0.0
  %53 = vmatpush1.msra.mxu0 0.0
  %54 = vmatprep.subr.mxu0 0.0
  %55 = vmatpush1.msra.mxu0 0.0
  %56 = vmatprep.subr.mxu0 0.0
  %57 = vmatpush1.msra.mxu0 0.0
  %58 = vmatprep.subr.mxu0 0.0
  %59 = vmatpush1.msra.mxu0 0.0
  %60 = vmatprep.subr.mxu0 0.0
  %61 = vmatpush1.msra.mxu0 0.0
  %62 = vmatprep.subr.mxu0 0.0
  %63 = vmatpush1.msra.mxu0 0.0
  %64 = vmatprep.subr.mxu0 0.0
  %65 = vmatpush1.msra.mxu0 0.0
  %66 = vmatprep.subr.mxu0 0.0
  %67 = vmatpush1.msra.mxu0 0.0
  %68 = vmatprep.subr.mxu0 0.0
  %69 = vmatpush1.msra.mxu0 0.0
  %70 = vmatprep.subr.mxu0 0.0
  %71 = vmatpush1.msra.mxu0 0.0
  %72 = vmatprep.subr.mxu0 0.0
  %73 = vmatpush1.msra.mxu0 0.0
  %74 = vmatprep.subr.mxu0 0.0
  %75 = vmatpush1.msra.mxu0 0.0
  %76 = vmatprep.subr.mxu0 0.0
  %77 = vmatpush1.msra.mxu0 0.0
  %78 = vmatprep.subr.mxu0 0.0
  %79 = vmatpush1.msra.mxu0 0.0
  %80 = vmatprep.subr.mxu0 0.0
  %81 = vmatpush1.msra.mxu0 0.0
  %82 = vmatprep.subr.mxu0 0.0
  %83 = vmatpush1.msra.mxu0 0.0
  %84 = vmatprep.subr.mxu0 0.0
  %85 = vmatpush1.msra.mxu0 0.0
  %86 = vmatprep.subr.mxu0 0.0
  %87 = vmatpush1.msra.mxu0 0.0
  %88 = vmatprep.subr.mxu0 0.0
  %89 = vmatpush1.msra.mxu0 0.0
  %90 = vmatprep.subr.mxu0 0.0
  %91 = vmatpush1.msra.mxu0 0.0
  %92 = vmatprep.subr.mxu0 0.0
  %93 = vmatpush1.msra.mxu0 0.0
  %94 = vmatprep.subr.mxu0 0.0
  %95 = vmatpush1.msra.mxu0 0.0
  %96 = vmatprep.subr.mxu0 0.0
  %97 = vmatpush1.msra.mxu0 0.0
  %98 = vmatprep.subr.mxu0 0.0
  %99 = vmatpush1.msra.mxu0 0.0
  %100 = vmatprep.subr.mxu0 0.0
  %101 = vmatpush1.msra.mxu0 0.0
  %102 = vmatprep.mubr.f32.mxu0 0.0
  %103 = vmatmul.mubr.f32.gmra.mrb[0].mxu0 %v33
  %v104 = vpop.f32.mrb[0].mxu0
  %v105 = vadd.f32 0.0, %v104
  %v106 = vpop.f32.mrb[0].mxu0
  %107 = vmatprep.mubr.f32.mxu0 0.0
  %108 = vmatmul.mubr.f32.gmra.mrb[0].mxu0 %v36
  %v109 = vpop.f32.mrb[0].mxu0
  %v110 = vadd.f32 0.0, %v109
  %v111 = vpop.f32.mrb[0].mxu0
  %112 = vdwg.mxu0
  %v114 = vsel %vm31, %v19, 0
  %v117 = vsel %vm31, %v20, 0
  %119 = vmatprep.subr.mxu0 0.0
  %120 = vmatpush1.msra.mxu0 %v26
  %121 = vmatprep.subr.mxu0 0.0
  %122 = vmatpush1.msra.mxu0 0.0
  %123 = vmatprep.subr.mxu0 0.0
  %124 = vmatpush1.msra.mxu0 0.0
  %125 = vmatprep.subr.mxu0 0.0
  %126 = vmatpush1.msra.mxu0 0.0
  %127 = vmatprep.subr.mxu0 0.0
  %128 = vmatpush1.msra.mxu0 0.0
  %129 = vmatprep.subr.mxu0 0.0
  %130 = vmatpush1.msra.mxu0 0.0
  %131 = vmatprep.subr.mxu0 0.0
  %132 = vmatpush1.msra.mxu0 0.0
  %133 = vmatprep.subr.mxu0 0.0
  %134 = vmatpush1.msra.mxu0 0.0
  %135 = vmatprep.subr.mxu0 0.0
  %136 = vmatpush1.msra.mxu0 0.0
  %137 = vmatprep.subr.mxu0 0.0
  %138 = vmatpush1.msra.mxu0 0.0
  %139 = vmatprep.subr.mxu0 0.0
  %140 = vmatpush1.msra.mxu0 0.0
  %141 = vmatprep.subr.mxu0 0.0
  %142 = vmatpush1.msra.mxu0 0.0
  %143 = vmatprep.subr.mxu0 0.0
  %144 = vmatpush1.msra.mxu0 0.0
  %145 = vmatprep.subr.mxu0 0.0
  %146 = vmatpush1.msra.mxu0 0.0
  %147 = vmatprep.subr.mxu0 0.0
  %148 = vmatpush1.msra.mxu0 0.0
  %149 = vmatprep.subr.mxu0 0.0
  %150 = vmatpush1.msra.mxu0 0.0
  %151 = vmatprep.subr.mxu0 0.0
  %152 = vmatpush1.msra.mxu0 0.0
  %153 = vmatprep.subr.mxu0 0.0
  %154 = vmatpush1.msra.mxu0 0.0
  %155 = vmatprep.subr.mxu0 0.0
  %156 = vmatpush1.msra.mxu0 0.0
  %157 = vmatprep.subr.mxu0 0.0
  %158 = vmatpush1.msra.mxu0 0.0
  %159 = vmatprep.subr.mxu0 0.0
  %160 = vmatpush1.msra.mxu0 0.0
  %161 = vmatprep.subr.mxu0 0.0
  %162 = vmatpush1.msra.mxu0 0.0
  %163 = vmatprep.subr.mxu0 0.0
  %164 = vmatpush1.msra.mxu0 0.0
  %165 = vmatprep.subr.mxu0 0.0
  %166 = vmatpush1.msra.mxu0 0.0
  %167 = vmatprep.subr.mxu0 0.0
  %168 = vmatpush1.msra.mxu0 0.0
  %169 = vmatprep.subr.mxu0 0.0
  %170 = vmatpush1.msra.mxu0 0.0
  %171 = vmatprep.subr.mxu0 0.0
  %172 = vmatpush1.msra.mxu0 0.0
  %173 = vmatprep.subr.mxu0 0.0
  %174 = vmatpush1.msra.mxu0 0.0
  %175 = vmatprep.subr.mxu0 0.0
  %176 = vmatpush1.msra.mxu0 0.0
  %177 = vmatprep.subr.mxu0 0.0
  %178 = vmatpush1.msra.mxu0 0.0
  %179 = vmatprep.subr.mxu0 0.0
  %180 = vmatpush1.msra.mxu0 0.0
  %181 = vmatprep.subr.mxu0 0.0
  %182 = vmatpush1.msra.mxu0 0.0
  %183 = vmatprep.mubr.f32.mxu0 0.0
  %184 = vmatmul.mubr.f32.gmra.mrb[0].mxu0 %v114
  %v185 = vpop.f32.mrb[0].mxu0
  %v186 = vadd.f32 %v105, %v185
  %v187 = vpop.f32.mrb[0].mxu0
  %188 = vmatprep.mubr.f32.mxu0 0.0
  %189 = vmatmul.mubr.f32.gmra.mrb[0].mxu0 %v117
  %v190 = vpop.f32.mrb[0].mxu0
  %v191 = vadd.f32 %v110, %v190
  %v192 = vpop.f32.mrb[0].mxu0
  %193 = vdwg.mxu0
  %v194 = vtanh.pop %v186
  %v195 = vxor.u32 %v191, 2147483648
  %v196 = vmul.f32 %v195, 1.442695
  %v197 = vpow.pop %v196
  %v198 = vadd.f32 %v197, 1.0
  %v199 = vrcp.pop %v198
  %v200 = vmul.f32 1.0, %v199
  %v201 = vmul.f32 %v194, %v200
  %v203 = vsel %vm31, %v23, 0
  %v206 = vsel %vm31, %v24, 0
  %v209 = vsel %vm31, %v25, 0
  %211 = vmatprep.subr.mxu0 0.0
  %212 = vmatpush1.msra.mxu0 %v201
  %213 = vmatprep.subr.mxu0 0.0
  %214 = vmatpush1.msra.mxu0 0.0
  %215 = vmatprep.subr.mxu0 0.0
  %216 = vmatpush1.msra.mxu0 0.0
  %217 = vmatprep.subr.mxu0 0.0
  %218 = vmatpush1.msra.mxu0 0.0
  %219 = vmatprep.subr.mxu0 0.0
  %220 = vmatpush1.msra.mxu0 0.0
  %221 = vmatprep.subr.mxu0 0.0
  %222 = vmatpush1.msra.mxu0 0.0
  %223 = vmatprep.subr.mxu0 0.0
  %224 = vmatpush1.msra.mxu0 0.0
  %225 = vmatprep.subr.mxu0 0.0
  %226 = vmatpush1.msra.mxu0 0.0
  %227 = vmatprep.subr.mxu0 0.0
  %228 = vmatpush1.msra.mxu0 0.0
  %229 = vmatprep.subr.mxu0 0.0
  %230 = vmatpush1.msra.mxu0 0.0
  %231 = vmatprep.subr.mxu0 0.0
  %232 = vmatpush1.msra.mxu0 0.0
  %233 = vmatprep.subr.mxu0 0.0
  %234 = vmatpush1.msra.mxu0 0.0
  %235 = vmatprep.subr.mxu0 0.0
  %236 = vmatpush1.msra.mxu0 0.0
  %237 = vmatprep.subr.mxu0 0.0
  %238 = vmatpush1.msra.mxu0 0.0
  %239 = vmatprep.subr.mxu0 0.0
  %240 = vmatpush1.msra.mxu0 0.0
  %241 = vmatprep.subr.mxu0 0.0
  %242 = vmatpush1.msra.mxu0 0.0
  %243 = vmatprep.subr.mxu0 0.0
  %244 = vmatpush1.msra.mxu0 0.0
  %245 = vmatprep.subr.mxu0 0.0
  %246 = vmatpush1.msra.mxu0 0.0
  %247 = vmatprep.subr.mxu0 0.0
  %248 = vmatpush1.msra.mxu0 0.0
  %249 = vmatprep.subr.mxu0 0.0
  %250 = vmatpush1.msra.mxu0 0.0
  %251 = vmatprep.subr.mxu0 0.0
  %252 = vmatpush1.msra.mxu0 0.0
  %253 = vmatprep.subr.mxu0 0.0
  %254 = vmatpush1.msra.mxu0 0.0
  %255 = vmatprep.subr.mxu0 0.0
  %256 = vmatpush1.msra.mxu0 0.0
  %257 = vmatprep.subr.mxu0 0.0
  %258 = vmatpush1.msra.mxu0 0.0
  %259 = vmatprep.subr.mxu0 0.0
  %260 = vmatpush1.msra.mxu0 0.0
  %261 = vmatprep.subr.mxu0 0.0
  %262 = vmatpush1.msra.mxu0 0.0
  %263 = vmatprep.subr.mxu0 0.0
  %264 = vmatpush1.msra.mxu0 0.0
  %265 = vmatprep.subr.mxu0 0.0
  %266 = vmatpush1.msra.mxu0 0.0
  %267 = vmatprep.subr.mxu0 0.0
  %268 = vmatpush1.msra.mxu0 0.0
  %269 = vmatprep.subr.mxu0 0.0
  %270 = vmatpush1.msra.mxu0 0.0
  %271 = vmatprep.subr.mxu0 0.0
  %272 = vmatpush1.msra.mxu0 0.0
  %273 = vmatprep.subr.mxu0 0.0
  %274 = vmatpush1.msra.mxu0 0.0
  %275 = vmatprep.mubr.f32.mxu0 0.0
  %276 = vmatmul.mubr.f32.gmra.mrb[0].mxu0 %v203
  %v277 = vpop.f32.mrb[0].mxu0
  %v278 = vadd.f32 0.0, %v277
  %v279 = vpop.f32.mrb[0].mxu0
  %280 = vmatprep.mubr.f32.mxu0 0.0
  %281 = vmatmul.mubr.f32.gmra.mrb[0].mxu0 %v206
  %v282 = vpop.f32.mrb[0].mxu0
  %v283 = vadd.f32 0.0, %v282
  %v284 = vpop.f32.mrb[0].mxu0
  %285 = vmatprep.mubr.f32.mxu0 0.0
  %286 = vmatmul.mubr.f32.gmra.mrb[0].mxu0 %v209
  %v287 = vpop.f32.mrb[0].mxu0
  %v288 = vadd.f32 0.0, %v287
  %v289 = vpop.f32.mrb[0].mxu0
  %290 = vdwg.mxu0
  %v291 = vadd.f32 %v278, %v29
  %vm292 = vcmask 105472
  %293 = vst.msk [vmem:[%s4] sm:$0xff] %vm292, %v291
  %294 = vst.msk [vmem:[%s5] sm:$0xff] %vm292, %v283
  %295 = vst.msk [vmem:[%s5 + $0x8] sm:$0xff] %vm292, %v288
  %s296 = scalar_lea.vmem %s0, 8
  %v297 = vld [vmem:[%s296] sm:$0xff]
  %299 = vrot.lane.b32.xlu0 %v297, 127
  %v300 = vpop.permute.xlu0 %299
  %302 = vmatprep.subr.mxu0 0.0
  %303 = vmatpush1.msra.mxu0 %v300
  %304 = vmatprep.subr.mxu0 0.0
  %305 = vmatpush1.msra.mxu0 0.0
  %306 = vmatprep.subr.mxu0 0.0
  %307 = vmatpush1.msra.mxu0 0.0
  %308 = vmatprep.subr.mxu0 0.0
  %309 = vmatpush1.msra.mxu0 0.0
  %310 = vmatprep.subr.mxu0 0.0
  %311 = vmatpush1.msra.mxu0 0.0
  %312 = vmatprep.subr.mxu0 0.0
  %313 = vmatpush1.msra.mxu0 0.0
  %314 = vmatprep.subr.mxu0 0.0
  %315 = vmatpush1.msra.mxu0 0.0
  %316 = vmatprep.subr.mxu0 0.0
  %317 = vmatpush1.msra.mxu0 0.0
  %318 = vmatprep.subr.mxu0 0.0
  %319 = vmatpush1.msra.mxu0 0.0
  %320 = vmatprep.subr.mxu0 0.0
  %321 = vmatpush1.msra.mxu0 0.0
  %322 = vmatprep.subr.mxu0 0.0
  %323 = vmatpush1.msra.mxu0 0.0
  %324 = vmatprep.subr.mxu0 0.0
  %325 = vmatpush1.msra.mxu0 0.0
  %326 = vmatprep.subr.mxu0 0.0
  %327 = vmatpush1.msra.mxu0 0.0
  %328 = vmatprep.subr.mxu0 0.0
  %329 = vmatpush1.msra.mxu0 0.0
  %330 = vmatprep.subr.mxu0 0.0
  %331 = vmatpush1.msra.mxu0 0.0
  %332 = vmatprep.subr.mxu0 0.0
  %333 = vmatpush1.msra.mxu0 0.0
  %334 = vmatprep.subr.mxu0 0.0
  %335 = vmatpush1.msra.mxu0 0.0
  %336 = vmatprep.subr.mxu0 0.0
  %337 = vmatpush1.msra.mxu0 0.0
  %338 = vmatprep.subr.mxu0 0.0
  %339 = vmatpush1.msra.mxu0 0.0
  %340 = vmatprep.subr.mxu0 0.0
  %341 = vmatpush1.msra.mxu0 0.0
  %342 = vmatprep.subr.mxu0 0.0
  %343 = vmatpush1.msra.mxu0 0.0
  %344 = vmatprep.subr.mxu0 0.0
  %345 = vmatpush1.msra.mxu0 0.0
  %346 = vmatprep.subr.mxu0 0.0
  %347 = vmatpush1.msra.mxu0 0.0
  %348 = vmatprep.subr.mxu0 0.0
  %349 = vmatpush1.msra.mxu0 0.0
  %350 = vmatprep.subr.mxu0 0.0
  %351 = vmatpush1.msra.mxu0 0.0
  %352 = vmatprep.subr.mxu0 0.0
  %353 = vmatpush1.msra.mxu0 0.0
  %354 = vmatprep.subr.mxu0 0.0
  %355 = vmatpush1.msra.mxu0 0.0
  %356 = vmatprep.subr.mxu0 0.0
  %357 = vmatpush1.msra.mxu0 0.0
  %358 = vmatprep.subr.mxu0 0.0
  %359 = vmatpush1.msra.mxu0 0.0
  %360 = vmatprep.subr.mxu0 0.0
  %361 = vmatpush1.msra.mxu0 0.0
  %362 = vmatprep.subr.mxu0 0.0
  %363 = vmatpush1.msra.mxu0 0.0
  %364 = vmatprep.subr.mxu0 0.0
  %365 = vmatpush1.msra.mxu0 0.0
  %366 = vmatprep.mubr.f32.mxu0 0.0
  %367 = vmatmul.mubr.f32.gmra.mrb[0].mxu0 %v33
  %v368 = vpop.f32.mrb[0].mxu0
  %v369 = vadd.f32 0.0, %v368
  %v370 = vpop.f32.mrb[0].mxu0
  %371 = vmatprep.mubr.f32.mxu0 0.0
  %372 = vmatmul.mubr.f32.gmra.mrb[0].mxu0 %v36
  %v373 = vpop.f32.mrb[0].mxu0
  %v374 = vadd.f32 0.0, %v373
  %v375 = vpop.f32.mrb[0].mxu0
  %376 = vdwg.mxu0
  %377 = vmatprep.subr.mxu0 0.0
  %378 = vmatpush1.msra.mxu0 %v297
  %379 = vmatprep.subr.mxu0 0.0
  %380 = vmatpush1.msra.mxu0 0.0
  %381 = vmatprep.subr.mxu0 0.0
  %382 = vmatpush1.msra.mxu0 0.0
  %383 = vmatprep.subr.mxu0 0.0
  %384 = vmatpush1.msra.mxu0 0.0
  %385 = vmatprep.subr.mxu0 0.0
  %386 = vmatpush1.msra.mxu0 0.0
  %387 = vmatprep.subr.mxu0 0.0
  %388 = vmatpush1.msra.mxu0 0.0
  %389 = vmatprep.subr.mxu0 0.0
  %390 = vmatpush1.msra.mxu0 0.0
  %391 = vmatprep.subr.mxu0 0.0
  %392 = vmatpush1.msra.mxu0 0.0
  %393 = vmatprep.subr.mxu0 0.0
  %394 = vmatpush1.msra.mxu0 0.0
  %395 = vmatprep.subr.mxu0 0.0
  %396 = vmatpush1.msra.mxu0 0.0
  %397 = vmatprep.subr.mxu0 0.0
  %398 = vmatpush1.msra.mxu0 0.0
  %399 = vmatprep.subr.mxu0 0.0
  %400 = vmatpush1.msra.mxu0 0.0
  %401 = vmatprep.subr.mxu0 0.0
  %402 = vmatpush1.msra.mxu0 0.0
  %403 = vmatprep.subr.mxu0 0.0
  %404 = vmatpush1.msra.mxu0 0.0
  %405 = vmatprep.subr.mxu0 0.0
  %406 = vmatpush1.msra.mxu0 0.0
  %407 = vmatprep.subr.mxu0 0.0
  %408 = vmatpush1.msra.mxu0 0.0
  %409 = vmatprep.subr.mxu0 0.0
  %410 = vmatpush1.msra.mxu0 0.0
  %411 = vmatprep.subr.mxu0 0.0
  %412 = vmatpush1.msra.mxu0 0.0
  %413 = vmatprep.subr.mxu0 0.0
  %414 = vmatpush1.msra.mxu0 0.0
  %415 = vmatprep.subr.mxu0 0.0
  %416 = vmatpush1.msra.mxu0 0.0
  %417 = vmatprep.subr.mxu0 0.0
  %418 = vmatpush1.msra.mxu0 0.0
  %419 = vmatprep.subr.mxu0 0.0
  %420 = vmatpush1.msra.mxu0 0.0
  %421 = vmatprep.subr.mxu0 0.0
  %422 = vmatpush1.msra.mxu0 0.0
  %423 = vmatprep.subr.mxu0 0.0
  %424 = vmatpush1.msra.mxu0 0.0
  %425 = vmatprep.subr.mxu0 0.0
  %426 = vmatpush1.msra.mxu0 0.0
  %427 = vmatprep.subr.mxu0 0.0
  %428 = vmatpush1.msra.mxu0 0.0
  %429 = vmatprep.subr.mxu0 0.0
  %430 = vmatpush1.msra.mxu0 0.0
  %431 = vmatprep.subr.mxu0 0.0
  %432 = vmatpush1.msra.mxu0 0.0
  %433 = vmatprep.subr.mxu0 0.0
  %434 = vmatpush1.msra.mxu0 0.0
  %435 = vmatprep.subr.mxu0 0.0
  %436 = vmatpush1.msra.mxu0 0.0
  %437 = vmatprep.subr.mxu0 0.0
  %438 = vmatpush1.msra.mxu0 0.0
  %439 = vmatprep.subr.mxu0 0.0
  %440 = vmatpush1.msra.mxu0 0.0
  %441 = vmatprep.mubr.f32.mxu0 0.0
  %442 = vmatmul.mubr.f32.gmra.mrb[0].mxu0 %v114
  %v443 = vpop.f32.mrb[0].mxu0
  %v444 = vadd.f32 %v369, %v443
  %v445 = vpop.f32.mrb[0].mxu0
  %446 = vmatprep.mubr.f32.mxu0 0.0
  %447 = vmatmul.mubr.f32.gmra.mrb[0].mxu0 %v117
  %v448 = vpop.f32.mrb[0].mxu0
  %v449 = vadd.f32 %v374, %v448
  %v450 = vpop.f32.mrb[0].mxu0
  %451 = vdwg.mxu0
  %v452 = vtanh.pop %v444
  %v453 = vxor.u32 %v449, 2147483648
  %v454 = vmul.f32 %v453, 1.442695
  %v455 = vpow.pop %v454
  %v456 = vadd.f32 %v455, 1.0
  %v457 = vrcp.pop %v456
  %v458 = vmul.f32 1.0, %v457
  %v459 = vmul.f32 %v452, %v458
  %460 = vmatprep.subr.mxu0 0.0
  %461 = vmatpush1.msra.mxu0 %v459
  %462 = vmatprep.subr.mxu0 0.0
  %463 = vmatpush1.msra.mxu0 0.0
  %464 = vmatprep.subr.mxu0 0.0
  %465 = vmatpush1.msra.mxu0 0.0
  %466 = vmatprep.subr.mxu0 0.0
  %467 = vmatpush1.msra.mxu0 0.0
  %468 = vmatprep.subr.mxu0 0.0
  %469 = vmatpush1.msra.mxu0 0.0
  %470 = vmatprep.subr.mxu0 0.0
  %471 = vmatpush1.msra.mxu0 0.0
  %472 = vmatprep.subr.mxu0 0.0
  %473 = vmatpush1.msra.mxu0 0.0
  %474 = vmatprep.subr.mxu0 0.0
  %475 = vmatpush1.msra.mxu0 0.0
  %476 = vmatprep.subr.mxu0 0.0
  %477 = vmatpush1.msra.mxu0 0.0
  %478 = vmatprep.subr.mxu0 0.0
  %479 = vmatpush1.msra.mxu0 0.0
  %480 = vmatprep.subr.mxu0 0.0
  %481 = vmatpush1.msra.mxu0 0.0
  %482 = vmatprep.subr.mxu0 0.0
  %483 = vmatpush1.msra.mxu0 0.0
  %484 = vmatprep.subr.mxu0 0.0
  %485 = vmatpush1.msra.mxu0 0.0
  %486 = vmatprep.subr.mxu0 0.0
  %487 = vmatpush1.msra.mxu0 0.0
  %488 = vmatprep.subr.mxu0 0.0
  %489 = vmatpush1.msra.mxu0 0.0
  %490 = vmatprep.subr.mxu0 0.0
  %491 = vmatpush1.msra.mxu0 0.0
  %492 = vmatprep.subr.mxu0 0.0
  %493 = vmatpush1.msra.mxu0 0.0
  %494 = vmatprep.subr.mxu0 0.0
  %495 = vmatpush1.msra.mxu0 0.0
  %496 = vmatprep.subr.mxu0 0.0
  %497 = vmatpush1.msra.mxu0 0.0
  %498 = vmatprep.subr.mxu0 0.0
  %499 = vmatpush1.msra.mxu0 0.0
  %500 = vmatprep.subr.mxu0 0.0
  %501 = vmatpush1.msra.mxu0 0.0
  %502 = vmatprep.subr.mxu0 0.0
  %503 = vmatpush1.msra.mxu0 0.0
  %504 = vmatprep.subr.mxu0 0.0
  %505 = vmatpush1.msra.mxu0 0.0
  %506 = vmatprep.subr.mxu0 0.0
  %507 = vmatpush1.msra.mxu0 0.0
  %508 = vmatprep.subr.mxu0 0.0
  %509 = vmatpush1.msra.mxu0 0.0
  %510 = vmatprep.subr.mxu0 0.0
  %511 = vmatpush1.msra.mxu0 0.0
  %512 = vmatprep.subr.mxu0 0.0
  %513 = vmatpush1.msra.mxu0 0.0
  %514 = vmatprep.subr.mxu0 0.0
  %515 = vmatpush1.msra.mxu0 0.0
  %516 = vmatprep.subr.mxu0 0.0
  %517 = vmatpush1.msra.mxu0 0.0
  %518 = vmatprep.subr.mxu0 0.0
  %519 = vmatpush1.msra.mxu0 0.0
  %520 = vmatprep.subr.mxu0 0.0
  %521 = vmatpush1.msra.mxu0 0.0
  %522 = vmatprep.subr.mxu0 0.0
  %523 = vmatpush1.msra.mxu0 0.0
  %524 = vmatprep.mubr.f32.mxu0 0.0
  %525 = vmatmul.mubr.f32.gmra.mrb[0].mxu0 %v203
  %v526 = vpop.f32.mrb[0].mxu0
  %v527 = vadd.f32 0.0, %v526
  %v528 = vpop.f32.mrb[0].mxu0
  %529 = vmatprep.mubr.f32.mxu0 0.0
  %530 = vmatmul.mubr.f32.gmra.mrb[0].mxu0 %v206
  %v531 = vpop.f32.mrb[0].mxu0
  %v532 = vadd.f32 0.0, %v531
  %v533 = vpop.f32.mrb[0].mxu0
  %534 = vmatprep.mubr.f32.mxu0 0.0
  %535 = vmatmul.mubr.f32.gmra.mrb[0].mxu0 %v209
  %v536 = vpop.f32.mrb[0].mxu0
  %v537 = vadd.f32 0.0, %v536
  %v538 = vpop.f32.mrb[0].mxu0
  %539 = vdwg.mxu0
  %v540 = vadd.f32 %v527, %v300
  %s541 = scalar_lea.vmem %s4, 8
  %542 = vst.msk [vmem:[%s541] sm:$0xff] %vm292, %v540
  %s543 = scalar_lea.vmem %s5, 16
  %544 = vst.msk [vmem:[%s543] sm:$0xff] %vm292, %v532
  %545 = vst.msk [vmem:[%s543 + $0x8] sm:$0xff] %vm292, %v537
  // Predicated region
  $region18: #{_lambda_.7} parent=0 // pred_check
    _
  $region19: #{_lambda_.7} parent=0 // pred_check_branch
    %547 = sbr.rel (0) target = $region21
  $region20: #{_lambda_.7} parent=0 // pred_region
    _
  $region21: #{_lambda_.7} parent=0 // pred_fallthru
    _
  // Predicated region
  $region22: #{_lambda_.7} parent=0 // pred_check
    _
  $region23: #{_lambda_.7} parent=0 // pred_check_branch
    %549 = sbr.rel (0) target = $region25
  $region24: #{_lambda_.7} parent=0 // pred_region
    _
  $region25: #{_lambda_.7} parent=0 // pred_fallthru
    _
  // Predicated region
  $region26: #{_lambda_.7} parent=0 // pred_check
    _
  $region27: #{_lambda_.7} parent=0 // pred_check_branch
    %551 = sbr.rel (0) target = $region29
  $region28: #{_lambda_.7} parent=0 // pred_region
    _
  $region29: #{_lambda_.7} parent=0 // pred_fallthru
    _
  // Predicated region
  $region30: #{_lambda_.7} parent=0 // pred_check
    _
  $region31: #{_lambda_.7} parent=0 // pred_check_branch
    %553 = sbr.rel (0) target = $region33
  $region32: #{_lambda_.7} parent=0 // pred_region
    _
  $region33: #{_lambda_.7} parent=0 // pred_fallthru
    _

// kernel: _lambda_.6
$region0: #{_lambda_.6}
  #allocation0 [shape = 'u32[]', space=smem, size = 0x4, offset = 0x4, fixed_abs, tag = 'smem constant byte address 0x4 - core index']
  #allocation1 [shape = 'u32[144,128]{1,0:T(1,128)}', space=vmem, size = 0x12000, scoped, tag = 'internal scratch']
  %s0 = inlined_call_operand.vmem [shape: f32[4,8,8], index: 0, kind: input, shape index: {}]
  %s1 = inlined_call_operand.vmem [shape: f32[16,8], index: 1, kind: input, shape index: {}]
  %s2 = inlined_call_operand.vmem [shape: f32[16,8], index: 2, kind: input, shape index: {}]
  %s3 = inlined_call_operand.vmem [shape: f32[24,8], index: 3, kind: input, shape index: {}]
  %s4 = inlined_call_operand.vmem [shape: f32[4,8,7], index: 4, kind: output, shape index: {0}]
  %s5 = inlined_call_operand.vmem [shape: f32[4,16,7], index: 5, kind: output, shape index: {1}]
  %6 = xla_tuple %s4, %s5
  %s7 = sld [smem:[#allocation0]]
  $region34: #{_lambda_.6} parent=0
    _
  %s9 = ssub.s32 1, %s7
  %s10 = scalar_select 0, %s9, %s7
  // Predicated region
  $region2: #{_lambda_.6} parent=0 // pred_check
    _
  $region3: #{_lambda_.6} parent=0 // pred_check_branch
    %12 = sbr.rel (0) target = $region5
  $region4: #{_lambda_.6} parent=0 // pred_region
    _
  $region5: #{_lambda_.6} parent=0 // pred_fallthru
    _
  // Predicated region
  $region6: #{_lambda_.6} parent=0 // pred_check
    _
  $region7: #{_lambda_.6} parent=0 // pred_check_branch
    %14 = sbr.rel (0) target = $region9
  $region8: #{_lambda_.6} parent=0 // pred_region
    _
  $region9: #{_lambda_.6} parent=0 // pred_fallthru
    _
  // Predicated region
  $region10: #{_lambda_.6} parent=0 // pred_check
    _
  $region11: #{_lambda_.6} parent=0 // pred_check_branch
    %16 = sbr.rel (0) target = $region13
  $region12: #{_lambda_.6} parent=0 // pred_region
    _
  $region13: #{_lambda_.6} parent=0 // pred_fallthru
    _
  // Predicated region
  $region14: #{_lambda_.6} parent=0 // pred_check
    _
  $region15: #{_lambda_.6} parent=0 // pred_check_branch
    %18 = sbr.rel (0) target = $region17
  $region16: #{_lambda_.6} parent=0 // pred_region
    _
  $region17: #{_lambda_.6} parent=0 // pred_fallthru
    _
  %v19 = vld [vmem:[%s1] sm:$0xff]
  %v20 = vld [vmem:[%s1 + $0x8] sm:$0xff]
  %v21 = vld [vmem:[%s2] sm:$0xff]
  %v22 = vld [vmem:[%s2 + $0x8] sm:$0xff]
  %v23 = vld [vmem:[%s3] sm:$0xff]
  %v24 = vld [vmem:[%s3 + $0x8] sm:$0xff]
  %v25 = vld [vmem:[%s3 + $0x10] sm:$0xff]
  %v26 = vld [vmem:[%s0] sm:$0xff]
  %28 = vrot.lane.b32.xlu0 %v26, 127
  %v29 = vpop.permute.xlu0 %28
  %vm31 = vcmask 64512
  %v33 = vsel %vm31, %v21, 0
  %v36 = vsel %vm31, %v22, 0
  %38 = vmatprep.subr.mxu0 0.0
  %39 = vmatpush1.msra.mxu0 %v29
  %40 = vmatprep.subr.mxu0 0.0
  %41 = vmatpush1.msra.mxu0 0.0
  %42 = vmatprep.subr.mxu0 0.0
  %43 = vmatpush1.msra.mxu0 0.0
  %44 = vmatprep.subr.mxu0 0.0
  %45 = vmatpush1.msra.mxu0 0.0
  %46 = vmatprep.subr.mxu0 0.0
  %47 = vmatpush1.msra.mxu0 0.0
  %48 = vmatprep.subr.mxu0 0.0
  %49 = vmatpush1.msra.mxu0 0.0
  %50 = vmatprep.subr.mxu0 0.0
  %51 = vmatpush1.msra.mxu0 0.0
  %52 = vmatprep.subr.mxu0 0.0
  %53 = vmatpush1.msra.mxu0 0.0
  %54 = vmatprep.subr.mxu0 0.0
  %55 = vmatpush1.msra.mxu0 0.0
  %56 = vmatprep.subr.mxu0 0.0
  %57 = vmatpush1.msra.mxu0 0.0
  %58 = vmatprep.subr.mxu0 0.0
  %59 = vmatpush1.msra.mxu0 0.0
  %60 = vmatprep.subr.mxu0 0.0
  %61 = vmatpush1.msra.mxu0 0.0
  %62 = vmatprep.subr.mxu0 0.0
  %63 = vmatpush1.msra.mxu0 0.0
  %64 = vmatprep.subr.mxu0 0.0
  %65 = vmatpush1.msra.mxu0 0.0
  %66 = vmatprep.subr.mxu0 0.0
  %67 = vmatpush1.msra.mxu0 0.0
  %68 = vmatprep.subr.mxu0 0.0
  %69 = vmatpush1.msra.mxu0 0.0
  %70 = vmatprep.subr.mxu0 0.0
  %71 = vmatpush1.msra.mxu0 0.0
  %72 = vmatprep.subr.mxu0 0.0
  %73 = vmatpush1.msra.mxu0 0.0
  %74 = vmatprep.subr.mxu0 0.0
  %75 = vmatpush1.msra.mxu0 0.0
  %76 = vmatprep.subr.mxu0 0.0
  %77 = vmatpush1.msra.mxu0 0.0
  %78 = vmatprep.subr.mxu0 0.0
  %79 = vmatpush1.msra.mxu0 0.0
  %80 = vmatprep.subr.mxu0 0.0
  %81 = vmatpush1.msra.mxu0 0.0
  %82 = vmatprep.subr.mxu0 0.0
  %83 = vmatpush1.msra.mxu0 0.0
  %84 = vmatprep.subr.mxu0 0.0
  %85 = vmatpush1.msra.mxu0 0.0
  %86 = vmatprep.subr.mxu0 0.0
  %87 = vmatpush1.msra.mxu0 0.0
  %88 = vmatprep.subr.mxu0 0.0
  %89 = vmatpush1.msra.mxu0 0.0
  %90 = vmatprep.subr.mxu0 0.0
  %91 = vmatpush1.msra.mxu0 0.0
  %92 = vmatprep.subr.mxu0 0.0
  %93 = vmatpush1.msra.mxu0 0.0
  %94 = vmatprep.subr.mxu0 0.0
  %95 = vmatpush1.msra.mxu0 0.0
  %96 = vmatprep.subr.mxu0 0.0
  %97 = vmatpush1.msra.mxu0 0.0
  %98 = vmatprep.subr.mxu0 0.0
  %99 = vmatpush1.msra.mxu0 0.0
  %100 = vmatprep.subr.mxu0 0.0
  %101 = vmatpush1.msra.mxu0 0.0
  %102 = vmatprep.mubr.f32.mxu0 0.0
  %103 = vmatmul.mubr.f32.gmra.mrb[0].mxu0 %v33
  %v104 = vpop.f32.mrb[0].mxu0
  %v105 = vadd.f32 0.0, %v104
  %v106 = vpop.f32.mrb[0].mxu0
  %107 = vmatprep.mubr.f32.mxu0 0.0
  %108 = vmatmul.mubr.f32.gmra.mrb[0].mxu0 %v36
  %v109 = vpop.f32.mrb[0].mxu0
  %v110 = vadd.f32 0.0, %v109
  %v111 = vpop.f32.mrb[0].mxu0
  %112 = vdwg.mxu0
  %v114 = vsel %vm31, %v19, 0
  %v117 = vsel %vm31, %v20, 0
  %119 = vmatprep.subr.mxu0 0.0
  %120 = vmatpush1.msra.mxu0 %v26
  %121 = vmatprep.subr.mxu0 0.0
  %122 = vmatpush1.msra.mxu0 0.0
  %123 = vmatprep.subr.mxu0 0.0
  %124 = vmatpush1.msra.mxu0 0.0
  %125 = vmatprep.subr.mxu0 0.0
  %126 = vmatpush1.msra.mxu0 0.0
  %127 = vmatprep.subr.mxu0 0.0
  %128 = vmatpush1.msra.mxu0 0.0
  %129 = vmatprep.subr.mxu0 0.0
  %130 = vmatpush1.msra.mxu0 0.0
  %131 = vmatprep.subr.mxu0 0.0
  %132 = vmatpush1.msra.mxu0 0.0
  %133 = vmatprep.subr.mxu0 0.0
  %134 = vmatpush1.msra.mxu0 0.0
  %135 = vmatprep.subr.mxu0 0.0
  %136 = vmatpush1.msra.mxu0 0.0
  %137 = vmatprep.subr.mxu0 0.0
  %138 = vmatpush1.msra.mxu0 0.0
  %139 = vmatprep.subr.mxu0 0.0
  %140 = vmatpush1.msra.mxu0 0.0
  %141 = vmatprep.subr.mxu0 0.0
  %142 = vmatpush1.msra.mxu0 0.0
  %143 = vmatprep.subr.mxu0 0.0
  %144 = vmatpush1.msra.mxu0 0.0
  %145 = vmatprep.subr.mxu0 0.0
  %146 = vmatpush1.msra.mxu0 0.0
  %147 = vmatprep.subr.mxu0 0.0
  %148 = vmatpush1.msra.mxu0 0.0
  %149 = vmatprep.subr.mxu0 0.0
  %150 = vmatpush1.msra.mxu0 0.0
  %151 = vmatprep.subr.mxu0 0.0
  %152 = vmatpush1.msra.mxu0 0.0
  %153 = vmatprep.subr.mxu0 0.0
  %154 = vmatpush1.msra.mxu0 0.0
  %155 = vmatprep.subr.mxu0 0.0
  %156 = vmatpush1.msra.mxu0 0.0
  %157 = vmatprep.subr.mxu0 0.0
  %158 = vmatpush1.msra.mxu0 0.0
  %159 = vmatprep.subr.mxu0 0.0
  %160 = vmatpush1.msra.mxu0 0.0
  %161 = vmatprep.subr.mxu0 0.0
  %162 = vmatpush1.msra.mxu0 0.0
  %163 = vmatprep.subr.mxu0 0.0
  %164 = vmatpush1.msra.mxu0 0.0
  %165 = vmatprep.subr.mxu0 0.0
  %166 = vmatpush1.msra.mxu0 0.0
  %167 = vmatprep.subr.mxu0 0.0
  %168 = vmatpush1.msra.mxu0 0.0
  %169 = vmatprep.subr.mxu0 0.0
  %170 = vmatpush1.msra.mxu0 0.0
  %171 = vmatprep.subr.mxu0 0.0
  %172 = vmatpush1.msra.mxu0 0.0
  %173 = vmatprep.subr.mxu0 0.0
  %174 = vmatpush1.msra.mxu0 0.0
  %175 = vmatprep.subr.mxu0 0.0
  %176 = vmatpush1.msra.mxu0 0.0
  %177 = vmatprep.subr.mxu0 0.0
  %178 = vmatpush1.msra.mxu0 0.0
  %179 = vmatprep.subr.mxu0 0.0
  %180 = vmatpush1.msra.mxu0 0.0
  %181 = vmatprep.subr.mxu0 0.0
  %182 = vmatpush1.msra.mxu0 0.0
  %183 = vmatprep.mubr.f32.mxu0 0.0
  %184 = vmatmul.mubr.f32.gmra.mrb[0].mxu0 %v114
  %v185 = vpop.f32.mrb[0].mxu0
  %v186 = vadd.f32 %v105, %v185
  %v187 = vpop.f32.mrb[0].mxu0
  %188 = vmatprep.mubr.f32.mxu0 0.0
  %189 = vmatmul.mubr.f32.gmra.mrb[0].mxu0 %v117
  %v190 = vpop.f32.mrb[0].mxu0
  %v191 = vadd.f32 %v110, %v190
  %v192 = vpop.f32.mrb[0].mxu0
  %193 = vdwg.mxu0
  %v194 = vtanh.pop %v186
  %v195 = vxor.u32 %v191, 2147483648
  %v196 = vmul.f32 %v195, 1.442695
  %v197 = vpow.pop %v196
  %v198 = vadd.f32 %v197, 1.0
  %v199 = vrcp.pop %v198
  %v200 = vmul.f32 1.0, %v199
  %v201 = vmul.f32 %v194, %v200
  %v203 = vsel %vm31, %v23, 0
  %v206 = vsel %vm31, %v24, 0
  %v209 = vsel %vm31, %v25, 0
  %211 = vmatprep.subr.mxu0 0.0
  %212 = vmatpush1.msra.mxu0 %v201
  %213 = vmatprep.subr.mxu0 0.0
  %214 = vmatpush1.msra.mxu0 0.0
  %215 = vmatprep.subr.mxu0 0.0
  %216 = vmatpush1.msra.mxu0 0.0
  %217 = vmatprep.subr.mxu0 0.0
  %218 = vmatpush1.msra.mxu0 0.0
  %219 = vmatprep.subr.mxu0 0.0
  %220 = vmatpush1.msra.mxu0 0.0
  %221 = vmatprep.subr.mxu0 0.0
  %222 = vmatpush1.msra.mxu0 0.0
  %223 = vmatprep.subr.mxu0 0.0
  %224 = vmatpush1.msra.mxu0 0.0
  %225 = vmatprep.subr.mxu0 0.0
  %226 = vmatpush1.msra.mxu0 0.0
  %227 = vmatprep.subr.mxu0 0.0
  %228 = vmatpush1.msra.mxu0 0.0
  %229 = vmatprep.subr.mxu0 0.0
  %230 = vmatpush1.msra.mxu0 0.0
  %231 = vmatprep.subr.mxu0 0.0
  %232 = vmatpush1.msra.mxu0 0.0
  %233 = vmatprep.subr.mxu0 0.0
  %234 = vmatpush1.msra.mxu0 0.0
  %235 = vmatprep.subr.mxu0 0.0
  %236 = vmatpush1.msra.mxu0 0.0
  %237 = vmatprep.subr.mxu0 0.0
  %238 = vmatpush1.msra.mxu0 0.0
  %239 = vmatprep.subr.mxu0 0.0
  %240 = vmatpush1.msra.mxu0 0.0
  %241 = vmatprep.subr.mxu0 0.0
  %242 = vmatpush1.msra.mxu0 0.0
  %243 = vmatprep.subr.mxu0 0.0
  %244 = vmatpush1.msra.mxu0 0.0
  %245 = vmatprep.subr.mxu0 0.0
  %246 = vmatpush1.msra.mxu0 0.0
  %247 = vmatprep.subr.mxu0 0.0
  %248 = vmatpush1.msra.mxu0 0.0
  %249 = vmatprep.subr.mxu0 0.0
  %250 = vmatpush1.msra.mxu0 0.0
  %251 = vmatprep.subr.mxu0 0.0
  %252 = vmatpush1.msra.mxu0 0.0
  %253 = vmatprep.subr.mxu0 0.0
  %254 = vmatpush1.msra.mxu0 0.0
  %255 = vmatprep.subr.mxu0 0.0
  %256 = vmatpush1.msra.mxu0 0.0
  %257 = vmatprep.subr.mxu0 0.0
  %258 = vmatpush1.msra.mxu0 0.0
  %259 = vmatprep.subr.mxu0 0.0
  %260 = vmatpush1.msra.mxu0 0.0
  %261 = vmatprep.subr.mxu0 0.0
  %262 = vmatpush1.msra.mxu0 0.0
  %263 = vmatprep.subr.mxu0 0.0
  %264 = vmatpush1.msra.mxu0 0.0
  %265 = vmatprep.subr.mxu0 0.0
  %266 = vmatpush1.msra.mxu0 0.0
  %267 = vmatprep.subr.mxu0 0.0
  %268 = vmatpush1.msra.mxu0 0.0
  %269 = vmatprep.subr.mxu0 0.0
  %270 = vmatpush1.msra.mxu0 0.0
  %271 = vmatprep.subr.mxu0 0.0
  %272 = vmatpush1.msra.mxu0 0.0
  %273 = vmatprep.subr.mxu0 0.0
  %274 = vmatpush1.msra.mxu0 0.0
  %275 = vmatprep.mubr.f32.mxu0 0.0
  %276 = vmatmul.mubr.f32.gmra.mrb[0].mxu0 %v203
  %v277 = vpop.f32.mrb[0].mxu0
  %v278 = vadd.f32 0.0, %v277
  %v279 = vpop.f32.mrb[0].mxu0
  %280 = vmatprep.mubr.f32.mxu0 0.0
  %281 = vmatmul.mubr.f32.gmra.mrb[0].mxu0 %v206
  %v282 = vpop.f32.mrb[0].mxu0
  %v283 = vadd.f32 0.0, %v282
  %v284 = vpop.f32.mrb[0].mxu0
  %285 = vmatprep.mubr.f32.mxu0 0.0
  %286 = vmatmul.mubr.f32.gmra.mrb[0].mxu0 %v209
  %v287 = vpop.f32.mrb[0].mxu0
  %v288 = vadd.f32 0.0, %v287
  %v289 = vpop.f32.mrb[0].mxu0
  %290 = vdwg.mxu0
  %v291 = vadd.f32 %v278, %v29
  %vm292 = vcmask 56320
  %293 = vst.msk [vmem:[%s4] sm:$0xff] %vm292, %v291
  %294 = vst.msk [vmem:[%s5] sm:$0xff] %vm292, %v283
  %295 = vst.msk [vmem:[%s5 + $0x8] sm:$0xff] %vm292, %v288
  %s296 = scalar_lea.vmem %s0, 8
  %v297 = vld [vmem:[%s296] sm:$0xff]
  %299 = vrot.lane.b32.xlu0 %v297, 127
  %v300 = vpop.permute.xlu0 %299
  %302 = vmatprep.subr.mxu0 0.0
  %303 = vmatpush1.msra.mxu0 %v300
  %304 = vmatprep.subr.mxu0 0.0
  %305 = vmatpush1.msra.mxu0 0.0
  %306 = vmatprep.subr.mxu0 0.0
  %307 = vmatpush1.msra.mxu0 0.0
  %308 = vmatprep.subr.mxu0 0.0
  %309 = vmatpush1.msra.mxu0 0.0
  %310 = vmatprep.subr.mxu0 0.0
  %311 = vmatpush1.msra.mxu0 0.0
  %312 = vmatprep.subr.mxu0 0.0
  %313 = vmatpush1.msra.mxu0 0.0
  %314 = vmatprep.subr.mxu0 0.0
  %315 = vmatpush1.msra.mxu0 0.0
  %316 = vmatprep.subr.mxu0 0.0
  %317 = vmatpush1.msra.mxu0 0.0
  %318 = vmatprep.subr.mxu0 0.0
  %319 = vmatpush1.msra.mxu0 0.0
  %320 = vmatprep.subr.mxu0 0.0
  %321 = vmatpush1.msra.mxu0 0.0
  %322 = vmatprep.subr.mxu0 0.0
  %323 = vmatpush1.msra.mxu0 0.0
  %324 = vmatprep.subr.mxu0 0.0
  %325 = vmatpush1.msra.mxu0 0.0
  %326 = vmatprep.subr.mxu0 0.0
  %327 = vmatpush1.msra.mxu0 0.0
  %328 = vmatprep.subr.mxu0 0.0
  %329 = vmatpush1.msra.mxu0 0.0
  %330 = vmatprep.subr.mxu0 0.0
  %331 = vmatpush1.msra.mxu0 0.0
  %332 = vmatprep.subr.mxu0 0.0
  %333 = vmatpush1.msra.mxu0 0.0
  %334 = vmatprep.subr.mxu0 0.0
  %335 = vmatpush1.msra.mxu0 0.0
  %336 = vmatprep.subr.mxu0 0.0
  %337 = vmatpush1.msra.mxu0 0.0
  %338 = vmatprep.subr.mxu0 0.0
  %339 = vmatpush1.msra.mxu0 0.0
  %340 = vmatprep.subr.mxu0 0.0
  %341 = vmatpush1.msra.mxu0 0.0
  %342 = vmatprep.subr.mxu0 0.0
  %343 = vmatpush1.msra.mxu0 0.0
  %344 = vmatprep.subr.mxu0 0.0
  %345 = vmatpush1.msra.mxu0 0.0
  %346 = vmatprep.subr.mxu0 0.0
  %347 = vmatpush1.msra.mxu0 0.0
  %348 = vmatprep.subr.mxu0 0.0
  %349 = vmatpush1.msra.mxu0 0.0
  %350 = vmatprep.subr.mxu0 0.0
  %351 = vmatpush1.msra.mxu0 0.0
  %352 = vmatprep.subr.mxu0 0.0
  %353 = vmatpush1.msra.mxu0 0.0
  %354 = vmatprep.subr.mxu0 0.0
  %355 = vmatpush1.msra.mxu0 0.0
  %356 = vmatprep.subr.mxu0 0.0
  %357 = vmatpush1.msra.mxu0 0.0
  %358 = vmatprep.subr.mxu0 0.0
  %359 = vmatpush1.msra.mxu0 0.0
  %360 = vmatprep.subr.mxu0 0.0
  %361 = vmatpush1.msra.mxu0 0.0
  %362 = vmatprep.subr.mxu0 0.0
  %363 = vmatpush1.msra.mxu0 0.0
  %364 = vmatprep.subr.mxu0 0.0
  %365 = vmatpush1.msra.mxu0 0.0
  %366 = vmatprep.mubr.f32.mxu0 0.0
  %367 = vmatmul.mubr.f32.gmra.mrb[0].mxu0 %v33
  %v368 = vpop.f32.mrb[0].mxu0
  %v369 = vadd.f32 0.0, %v368
  %v370 = vpop.f32.mrb[0].mxu0
  %371 = vmatprep.mubr.f32.mxu0 0.0
  %372 = vmatmul.mubr.f32.gmra.mrb[0].mxu0 %v36
  %v373 = vpop.f32.mrb[0].mxu0
  %v374 = vadd.f32 0.0, %v373
  %v375 = vpop.f32.mrb[0].mxu0
  %376 = vdwg.mxu0
  %377 = vmatprep.subr.mxu0 0.0
  %378 = vmatpush1.msra.mxu0 %v297
  %379 = vmatprep.subr.mxu0 0.0
  %380 = vmatpush1.msra.mxu0 0.0
  %381 = vmatprep.subr.mxu0 0.0
  %382 = vmatpush1.msra.mxu0 0.0
  %383 = vmatprep.subr.mxu0 0.0
  %384 = vmatpush1.msra.mxu0 0.0
  %385 = vmatprep.subr.mxu0 0.0
  %386 = vmatpush1.msra.mxu0 0.0
  %387 = vmatprep.subr.mxu0 0.0
  %388 = vmatpush1.msra.mxu0 0.0
  %389 = vmatprep.subr.mxu0 0.0
  %390 = vmatpush1.msra.mxu0 0.0
  %391 = vmatprep.subr.mxu0 0.0
  %392 = vmatpush1.msra.mxu0 0.0
  %393 = vmatprep.subr.mxu0 0.0
  %394 = vmatpush1.msra.mxu0 0.0
  %395 = vmatprep.subr.mxu0 0.0
  %396 = vmatpush1.msra.mxu0 0.0
  %397 = vmatprep.subr.mxu0 0.0
  %398 = vmatpush1.msra.mxu0 0.0
  %399 = vmatprep.subr.mxu0 0.0
  %400 = vmatpush1.msra.mxu0 0.0
  %401 = vmatprep.subr.mxu0 0.0
  %402 = vmatpush1.msra.mxu0 0.0
  %403 = vmatprep.subr.mxu0 0.0
  %404 = vmatpush1.msra.mxu0 0.0
  %405 = vmatprep.subr.mxu0 0.0
  %406 = vmatpush1.msra.mxu0 0.0
  %407 = vmatprep.subr.mxu0 0.0
  %408 = vmatpush1.msra.mxu0 0.0
  %409 = vmatprep.subr.mxu0 0.0
  %410 = vmatpush1.msra.mxu0 0.0
  %411 = vmatprep.subr.mxu0 0.0
  %412 = vmatpush1.msra.mxu0 0.0
  %413 = vmatprep.subr.mxu0 0.0
  %414 = vmatpush1.msra.mxu0 0.0
  %415 = vmatprep.subr.mxu0 0.0
  %416 = vmatpush1.msra.mxu0 0.0
  %417 = vmatprep.subr.mxu0 0.0
  %418 = vmatpush1.msra.mxu0 0.0
  %419 = vmatprep.subr.mxu0 0.0
  %420 = vmatpush1.msra.mxu0 0.0
  %421 = vmatprep.subr.mxu0 0.0
  %422 = vmatpush1.msra.mxu0 0.0
  %423 = vmatprep.subr.mxu0 0.0
  %424 = vmatpush1.msra.mxu0 0.0
  %425 = vmatprep.subr.mxu0 0.0
  %426 = vmatpush1.msra.mxu0 0.0
  %427 = vmatprep.subr.mxu0 0.0
  %428 = vmatpush1.msra.mxu0 0.0
  %429 = vmatprep.subr.mxu0 0.0
  %430 = vmatpush1.msra.mxu0 0.0
  %431 = vmatprep.subr.mxu0 0.0
  %432 = vmatpush1.msra.mxu0 0.0
  %433 = vmatprep.subr.mxu0 0.0
  %434 = vmatpush1.msra.mxu0 0.0
  %435 = vmatprep.subr.mxu0 0.0
  %436 = vmatpush1.msra.mxu0 0.0
  %437 = vmatprep.subr.mxu0 0.0
  %438 = vmatpush1.msra.mxu0 0.0
  %439 = vmatprep.subr.mxu0 0.0
  %440 = vmatpush1.msra.mxu0 0.0
  %441 = vmatprep.mubr.f32.mxu0 0.0
  %442 = vmatmul.mubr.f32.gmra.mrb[0].mxu0 %v114
  %v443 = vpop.f32.mrb[0].mxu0
  %v444 = vadd.f32 %v369, %v443
  %v445 = vpop.f32.mrb[0].mxu0
  %446 = vmatprep.mubr.f32.mxu0 0.0
  %447 = vmatmul.mubr.f32.gmra.mrb[0].mxu0 %v117
  %v448 = vpop.f32.mrb[0].mxu0
  %v449 = vadd.f32 %v374, %v448
  %v450 = vpop.f32.mrb[0].mxu0
  %451 = vdwg.mxu0
  %v452 = vtanh.pop %v444
  %v453 = vxor.u32 %v449, 2147483648
  %v454 = vmul.f32 %v453, 1.442695
  %v455 = vpow.pop %v454
  %v456 = vadd.f32 %v455, 1.0
  %v457 = vrcp.pop %v456
  %v458 = vmul.f32 1.0, %v457
  %v459 = vmul.f32 %v452, %v458
  %460 = vmatprep.subr.mxu0 0.0
  %461 = vmatpush1.msra.mxu0 %v459
  %462 = vmatprep.subr.mxu0 0.0
  %463 = vmatpush1.msra.mxu0 0.0
  %464 = vmatprep.subr.mxu0 0.0
  %465 = vmatpush1.msra.mxu0 0.0
  %466 = vmatprep.subr.mxu0 0.0
  %467 = vmatpush1.msra.mxu0 0.0
  %468 = vmatprep.subr.mxu0 0.0
  %469 = vmatpush1.msra.mxu0 0.0
  %470 = vmatprep.subr.mxu0 0.0
  %471 = vmatpush1.msra.mxu0 0.0
  %472 = vmatprep.subr.mxu0 0.0
  %473 = vmatpush1.msra.mxu0 0.0
  %474 = vmatprep.subr.mxu0 0.0
  %475 = vmatpush1.msra.mxu0 0.0
  %476 = vmatprep.subr.mxu0 0.0
  %477 = vmatpush1.msra.mxu0 0.0
  %478 = vmatprep.subr.mxu0 0.0
  %479 = vmatpush1.msra.mxu0 0.0
  %480 = vmatprep.subr.mxu0 0.0
  %481 = vmatpush1.msra.mxu0 0.0
  %482 = vmatprep.subr.mxu0 0.0
  %483 = vmatpush1.msra.mxu0 0.0
  %484 = vmatprep.subr.mxu0 0.0
  %485 = vmatpush1.msra.mxu0 0.0
  %486 = vmatprep.subr.mxu0 0.0
  %487 = vmatpush1.msra.mxu0 0.0
  %488 = vmatprep.subr.mxu0 0.0
  %489 = vmatpush1.msra.mxu0 0.0
  %490 = vmatprep.subr.mxu0 0.0
  %491 = vmatpush1.msra.mxu0 0.0
  %492 = vmatprep.subr.mxu0 0.0
  %493 = vmatpush1.msra.mxu0 0.0
  %494 = vmatprep.subr.mxu0 0.0
  %495 = vmatpush1.msra.mxu0 0.0
  %496 = vmatprep.subr.mxu0 0.0
  %497 = vmatpush1.msra.mxu0 0.0
  %498 = vmatprep.subr.mxu0 0.0
  %499 = vmatpush1.msra.mxu0 0.0
  %500 = vmatprep.subr.mxu0 0.0
  %501 = vmatpush1.msra.mxu0 0.0
  %502 = vmatprep.subr.mxu0 0.0
  %503 = vmatpush1.msra.mxu0 0.0
  %504 = vmatprep.subr.mxu0 0.0
  %505 = vmatpush1.msra.mxu0 0.0
  %506 = vmatprep.subr.mxu0 0.0
  %507 = vmatpush1.msra.mxu0 0.0
  %508 = vmatprep.subr.mxu0 0.0
  %509 = vmatpush1.msra.mxu0 0.0
  %510 = vmatprep.subr.mxu0 0.0
  %511 = vmatpush1.msra.mxu0 0.0
  %512 = vmatprep.subr.mxu0 0.0
  %513 = vmatpush1.msra.mxu0 0.0
  %514 = vmatprep.subr.mxu0 0.0
  %515 = vmatpush1.msra.mxu0 0.0
  %516 = vmatprep.subr.mxu0 0.0
  %517 = vmatpush1.msra.mxu0 0.0
  %518 = vmatprep.subr.mxu0 0.0
  %519 = vmatpush1.msra.mxu0 0.0
  %520 = vmatprep.subr.mxu0 0.0
  %521 = vmatpush1.msra.mxu0 0.0
  %522 = vmatprep.subr.mxu0 0.0
  %523 = vmatpush1.msra.mxu0 0.0
  %524 = vmatprep.mubr.f32.mxu0 0.0
  %525 = vmatmul.mubr.f32.gmra.mrb[0].mxu0 %v203
  %v526 = vpop.f32.mrb[0].mxu0
  %v527 = vadd.f32 0.0, %v526
  %v528 = vpop.f32.mrb[0].mxu0
  %529 = vmatprep.mubr.f32.mxu0 0.0
  %530 = vmatmul.mubr.f32.gmra.mrb[0].mxu0 %v206
  %v531 = vpop.f32.mrb[0].mxu0
  %v532 = vadd.f32 0.0, %v531
  %v533 = vpop.f32.mrb[0].mxu0
  %534 = vmatprep.mubr.f32.mxu0 0.0
  %535 = vmatmul.mubr.f32.gmra.mrb[0].mxu0 %v209
  %v536 = vpop.f32.mrb[0].mxu0
  %v537 = vadd.f32 0.0, %v536
  %v538 = vpop.f32.mrb[0].mxu0
  %539 = vdwg.mxu0
  %v540 = vadd.f32 %v527, %v300
  %s541 = scalar_lea.vmem %s4, 8
  %542 = vst.msk [vmem:[%s541] sm:$0xff] %vm292, %v540
  %s543 = scalar_lea.vmem %s5, 16
  %544 = vst.msk [vmem:[%s543] sm:$0xff] %vm292, %v532
  %545 = vst.msk [vmem:[%s543 + $0x8] sm:$0xff] %vm292, %v537
  %s546 = scalar_lea.vmem %s0, 16
  %v547 = vld [vmem:[%s546] sm:$0xff]
  %549 = vrot.lane.b32.xlu0 %v547, 127
  %v550 = vpop.permute.xlu0 %549
  %552 = vmatprep.subr.mxu0 0.0
  %553 = vmatpush1.msra.mxu0 %v550
  %554 = vmatprep.subr.mxu0 0.0
  %555 = vmatpush1.msra.mxu0 0.0
  %556 = vmatprep.subr.mxu0 0.0
  %557 = vmatpush1.msra.mxu0 0.0
  %558 = vmatprep.subr.mxu0 0.0
  %559 = vmatpush1.msra.mxu0 0.0
  %560 = vmatprep.subr.mxu0 0.0
  %561 = vmatpush1.msra.mxu0 0.0
  %562 = vmatprep.subr.mxu0 0.0
  %563 = vmatpush1.msra.mxu0 0.0
  %564 = vmatprep.subr.mxu0 0.0
  %565 = vmatpush1.msra.mxu0 0.0
  %566 = vmatprep.subr.mxu0 0.0
  %567 = vmatpush1.msra.mxu0 0.0
  %568 = vmatprep.subr.mxu0 0.0
  %569 = vmatpush1.msra.mxu0 0.0
  %570 = vmatprep.subr.mxu0 0.0
  %571 = vmatpush1.msra.mxu0 0.0
  %572 = vmatprep.subr.mxu0 0.0
  %573 = vmatpush1.msra.mxu0 0.0
  %574 = vmatprep.subr.mxu0 0.0
  %575 = vmatpush1.msra.mxu0 0.0
  %576 = vmatprep.subr.mxu0 0.0
  %577 = vmatpush1.msra.mxu0 0.0
  %578 = vmatprep.subr.mxu0 0.0
  %579 = vmatpush1.msra.mxu0 0.0
  %580 = vmatprep.subr.mxu0 0.0
  %581 = vmatpush1.msra.mxu0 0.0
  %582 = vmatprep.subr.mxu0 0.0
  %583 = vmatpush1.msra.mxu0 0.0
  %584 = vmatprep.subr.mxu0 0.0
  %585 = vmatpush1.msra.mxu0 0.0
  %586 = vmatprep.subr.mxu0 0.0
  %587 = vmatpush1.msra.mxu0 0.0
  %588 = vmatprep.subr.mxu0 0.0
  %589 = vmatpush1.msra.mxu0 0.0
  %590 = vmatprep.subr.mxu0 0.0
  %591 = vmatpush1.msra.mxu0 0.0
  %592 = vmatprep.subr.mxu0 0.0
  %593 = vmatpush1.msra.mxu0 0.0
  %594 = vmatprep.subr.mxu0 0.0
  %595 = vmatpush1.msra.mxu0 0.0
  %596 = vmatprep.subr.mxu0 0.0
  %597 = vmatpush1.msra.mxu0 0.0
  %598 = vmatprep.subr.mxu0 0.0
  %599 = vmatpush1.msra.mxu0 0.0
  %600 = vmatprep.subr.mxu0 0.0
  %601 = vmatpush1.msra.mxu0 0.0
  %602 = vmatprep.subr.mxu0 0.0
  %603 = vmatpush1.msra.mxu0 0.0
  %604 = vmatprep.subr.mxu0 0.0
  %605 = vmatpush1.msra.mxu0 0.0
  %606 = vmatprep.subr.mxu0 0.0
  %607 = vmatpush1.msra.mxu0 0.0
  %608 = vmatprep.subr.mxu0 0.0
  %609 = vmatpush1.msra.mxu0 0.0
  %610 = vmatprep.subr.mxu0 0.0
  %611 = vmatpush1.msra.mxu0 0.0
  %612 = vmatprep.subr.mxu0 0.0
  %613 = vmatpush1.msra.mxu0 0.0
  %614 = vmatprep.subr.mxu0 0.0
  %615 = vmatpush1.msra.mxu0 0.0
  %616 = vmatprep.mubr.f32.mxu0 0.0
  %617 = vmatmul.mubr.f32.gmra.mrb[0].mxu0 %v33
  %v618 = vpop.f32.mrb[0].mxu0
  %v619 = vadd.f32 0.0, %v618
  %v620 = vpop.f32.mrb[0].mxu0
  %621 = vmatprep.mubr.f32.mxu0 0.0
  %622 = vmatmul.mubr.f32.gmra.mrb[0].mxu0 %v36
  %v623 = vpop.f32.mrb[0].mxu0
  %v624 = vadd.f32 0.0, %v623
  %v625 = vpop.f32.mrb[0].mxu0
  %626 = vdwg.mxu0
  %627 = vmatprep.subr.mxu0 0.0
  %628 = vmatpush1.msra.mxu0 %v547
  %629 = vmatprep.subr.mxu0 0.0
  %630 = vmatpush1.msra.mxu0 0.0
  %631 = vmatprep.subr.mxu0 0.0
  %632 = vmatpush1.msra.mxu0 0.0
  %633 = vmatprep.subr.mxu0 0.0
  %634 = vmatpush1.msra.mxu0 0.0
  %635 = vmatprep.subr.mxu0 0.0
  %636 = vmatpush1.msra.mxu0 0.0
  %637 = vmatprep.subr.mxu0 0.0
  %638 = vmatpush1.msra.mxu0 0.0
  %639 = vmatprep.subr.mxu0 0.0
  %640 = vmatpush1.msra.mxu0 0.0
  %641 = vmatprep.subr.mxu0 0.0
  %642 = vmatpush1.msra.mxu0 0.0
  %643 = vmatprep.subr.mxu0 0.0
  %644 = vmatpush1.msra.mxu0 0.0
  %645 = vmatprep.subr.mxu0 0.0
  %646 = vmatpush1.msra.mxu0 0.0
  %647 = vmatprep.subr.mxu0 0.0
  %648 = vmatpush1.msra.mxu0 0.0
  %649 = vmatprep.subr.mxu0 0.0
  %650 = vmatpush1.msra.mxu0 0.0
  %651 = vmatprep.subr.mxu0 0.0
  %652 = vmatpush1.msra.mxu0 0.0
  %653 = vmatprep.subr.mxu0 0.0
  %654 = vmatpush1.msra.mxu0 0.0
  %655 = vmatprep.subr.mxu0 0.0
  %656 = vmatpush1.msra.mxu0 0.0
  %657 = vmatprep.subr.mxu0 0.0
  %658 = vmatpush1.msra.mxu0 0.0
  %659 = vmatprep.subr.mxu0 0.0
  %660 = vmatpush1.msra.mxu0 0.0
  %661 = vmatprep.subr.mxu0 0.0
  %662 = vmatpush1.msra.mxu0 0.0
  %663 = vmatprep.subr.mxu0 0.0
  %664 = vmatpush1.msra.mxu0 0.0
  %665 = vmatprep.subr.mxu0 0.0
  %666 = vmatpush1.msra.mxu0 0.0
  %667 = vmatprep.subr.mxu0 0.0
  %668 = vmatpush1.msra.mxu0 0.0
  %669 = vmatprep.subr.mxu0 0.0
  %670 = vmatpush1.msra.mxu0 0.0
  %671 = vmatprep.subr.mxu0 0.0
  %672 = vmatpush1.msra.mxu0 0.0
  %673 = vmatprep.subr.mxu0 0.0
  %674 = vmatpush1.msra.mxu0 0.0
  %675 = vmatprep.subr.mxu0 0.0
  %676 = vmatpush1.msra.mxu0 0.0
  %677 = vmatprep.subr.mxu0 0.0
  %678 = vmatpush1.msra.mxu0 0.0
  %679 = vmatprep.subr.mxu0 0.0
  %680 = vmatpush1.msra.mxu0 0.0
  %681 = vmatprep.subr.mxu0 0.0
  %682 = vmatpush1.msra.mxu0 0.0
  %683 = vmatprep.subr.mxu0 0.0
  %684 = vmatpush1.msra.mxu0 0.0
  %685 = vmatprep.subr.mxu0 0.0
  %686 = vmatpush1.msra.mxu0 0.0
  %687 = vmatprep.subr.mxu0 0.0
  %688 = vmatpush1.msra.mxu0 0.0
  %689 = vmatprep.subr.mxu0 0.0
  %690 = vmatpush1.msra.mxu0 0.0
  %691 = vmatprep.mubr.f32.mxu0 0.0
  %692 = vmatmul.mubr.f32.gmra.mrb[0].mxu0 %v114
  %v693 = vpop.f32.mrb[0].mxu0
  %v694 = vadd.f32 %v619, %v693
  %v695 = vpop.f32.mrb[0].mxu0
  %696 = vmatprep.mubr.f32.mxu0 0.0
  %697 = vmatmul.mubr.f32.gmra.mrb[0].mxu0 %v117
  %v698 = vpop.f32.mrb[0].mxu0
  %v699 = vadd.f32 %v624, %v698
  %v700 = vpop.f32.mrb[0].mxu0
  %701 = vdwg.mxu0
  %v702 = vtanh.pop %v694
  %v703 = vxor.u32 %v699, 2147483648
  %v704 = vmul.f32 %v703, 1.442695
  %v705 = vpow.pop %v704
  %v706 = vadd.f32 %v705, 1.0
  %v707 = vrcp.pop %v706
  %v708 = vmul.f32 1.0, %v707
  %v709 = vmul.f32 %v702, %v708
  %710 = vmatprep.subr.mxu0 0.0
  %711 = vmatpush1.msra.mxu0 %v709
  %712 = vmatprep.subr.mxu0 0.0
  %713 = vmatpush1.msra.mxu0 0.0
  %714 = vmatprep.subr.mxu0 0.0
  %715 = vmatpush1.msra.mxu0 0.0
  %716 = vmatprep.subr.mxu0 0.0
  %717 = vmatpush1.msra.mxu0 0.0
  %718 = vmatprep.subr.mxu0 0.0
  %719 = vmatpush1.msra.mxu0 0.0
  %720 = vmatprep.subr.mxu0 0.0
  %721 = vmatpush1.msra.mxu0 0.0
  %722 = vmatprep.subr.mxu0 0.0
  %723 = vmatpush1.msra.mxu0 0.0
  %724 = vmatprep.subr.mxu0 0.0
  %725 = vmatpush1.msra.mxu0 0.0
  %726 = vmatprep.subr.mxu0 0.0
  %727 = vmatpush1.msra.mxu0 0.0
  %728 = vmatprep.subr.mxu0 0.0
  %729 = vmatpush1.msra.mxu0 0.0
  %730 = vmatprep.subr.mxu0 0.0
  %731 = vmatpush1.msra.mxu0 0.0
  %732 = vmatprep.subr.mxu0 0.0
  %733 = vmatpush1.msra.mxu0 0.0
  %734 = vmatprep.subr.mxu0 0.0
  %735 = vmatpush1.msra.mxu0 0.0
  %736 = vmatprep.subr.mxu0 0.0
  %737 = vmatpush1.msra.mxu0 0.0
  %738 = vmatprep.subr.mxu0 0.0
  %739 = vmatpush1.msra.mxu0 0.0
  %740 = vmatprep.subr.mxu0 0.0
  %741 = vmatpush1.msra.mxu0 0.0
  %742 = vmatprep.subr.mxu0 0.0
  %743 = vmatpush1.msra.mxu0 0.0
  %744 = vmatprep.subr.mxu0 0.0
  %745 = vmatpush1.msra.mxu0 0.0
  %746 = vmatprep.subr.mxu0 0.0
  %747 = vmatpush1.msra.mxu0 0.0
  %748 = vmatprep.subr.mxu0 0.0
  %749 = vmatpush1.msra.mxu0 0.0
  %750 = vmatprep.subr.mxu0 0.0
  %751 = vmatpush1.msra.mxu0 0.0
  %752 = vmatprep.subr.mxu0 0.0
  %753 = vmatpush1.msra.mxu0 0.0
  %754 = vmatprep.subr.mxu0 0.0
  %755 = vmatpush1.msra.mxu0 0.0
  %756 = vmatprep.subr.mxu0 0.0
  %757 = vmatpush1.msra.mxu0 0.0
  %758 = vmatprep.subr.mxu0 0.0
  %759 = vmatpush1.msra.mxu0 0.0
  %760 = vmatprep.subr.mxu0 0.0
  %761 = vmatpush1.msra.mxu0 0.0
  %762 = vmatprep.subr.mxu0 0.0
  %763 = vmatpush1.msra.mxu0 0.0
  %764 = vmatprep.subr.mxu0 0.0
  %765 = vmatpush1.msra.mxu0 0.0
  %766 = vmatprep.subr.mxu0 0.0
  %767 = vmatpush1.msra.mxu0 0.0
  %768 = vmatprep.subr.mxu0 0.0
  %769 = vmatpush1.msra.mxu0 0.0
  %770 = vmatprep.subr.mxu0 0.0
  %771 = vmatpush1.msra.mxu0 0.0
  %772 = vmatprep.subr.mxu0 0.0
  %773 = vmatpush1.msra.mxu0 0.0
  %774 = vmatprep.mubr.f32.mxu0 0.0
  %775 = vmatmul.mubr.f32.gmra.mrb[0].mxu0 %v203
  %v776 = vpop.f32.mrb[0].mxu0
  %v777 = vadd.f32 0.0, %v776
  %v778 = vpop.f32.mrb[0].mxu0
  %779 = vmatprep.mubr.f32.mxu0 0.0
  %780 = vmatmul.mubr.f32.gmra.mrb[0].mxu0 %v206
  %v781 = vpop.f32.mrb[0].mxu0
  %v782 = vadd.f32 0.0, %v781
  %v783 = vpop.f32.mrb[0].mxu0
  %784 = vmatprep.mubr.f32.mxu0 0.0
  %785 = vmatmul.mubr.f32.gmra.mrb[0].mxu0 %v209
  %v786 = vpop.f32.mrb[0].mxu0
  %v787 = vadd.f32 0.0, %v786
  %v788 = vpop.f32.mrb[0].mxu0
  %789 = vdwg.mxu0
  %v790 = vadd.f32 %v777, %v550
  %s791 = scalar_lea.vmem %s4, 16
  %792 = vst.msk [vmem:[%s791] sm:$0xff] %vm292, %v790
  %s793 = scalar_lea.vmem %s5, 32
  %794 = vst.msk [vmem:[%s793] sm:$0xff] %vm292, %v782
  %795 = vst.msk [vmem:[%s793 + $0x8] sm:$0xff] %vm292, %v787
  %s796 = scalar_lea.vmem %s0, 24
  %v797 = vld [vmem:[%s796] sm:$0xff]
  %799 = vrot.lane.b32.xlu0 %v797, 127
  %v800 = vpop.permute.xlu0 %799
  %802 = vmatprep.subr.mxu0 0.0
  %803 = vmatpush1.msra.mxu0 %v800
  %804 = vmatprep.subr.mxu0 0.0
  %805 = vmatpush1.msra.mxu0 0.0
  %806 = vmatprep.subr.mxu0 0.0
  %807 = vmatpush1.msra.mxu0 0.0
  %808 = vmatprep.subr.mxu0 0.0
  %809 = vmatpush1.msra.mxu0 0.0
  %810 = vmatprep.subr.mxu0 0.0
  %811 = vmatpush1.msra.mxu0 0.0
  %812 = vmatprep.subr.mxu0 0.0
  %813 = vmatpush1.msra.mxu0 0.0
  %814 = vmatprep.subr.mxu0 0.0
  %815 = vmatpush1.msra.mxu0 0.0
  %816 = vmatprep.subr.mxu0 0.0
  %817 = vmatpush1.msra.mxu0 0.0
  %818 = vmatprep.subr.mxu0 0.0
  %819 = vmatpush1.msra.mxu0 0.0
  %820 = vmatprep.subr.mxu0 0.0
  %821 = vmatpush1.msra.mxu0 0.0
  %822 = vmatprep.subr.mxu0 0.0
  %823 = vmatpush1.msra.mxu0 0.0
  %824 = vmatprep.subr.mxu0 0.0
  %825 = vmatpush1.msra.mxu0 0.0
  %826 = vmatprep.subr.mxu0 0.0
  %827 = vmatpush1.msra.mxu0 0.0
  %828 = vmatprep.subr.mxu0 0.0
  %829 = vmatpush1.msra.mxu0 0.0
  %830 = vmatprep.subr.mxu0 0.0
  %831 = vmatpush1.msra.mxu0 0.0
  %832 = vmatprep.subr.mxu0 0.0
  %833 = vmatpush1.msra.mxu0 0.0
  %834 = vmatprep.subr.mxu0 0.0
  %835 = vmatpush1.msra.mxu0 0.0
  %836 = vmatprep.subr.mxu0 0.0
  %837 = vmatpush1.msra.mxu0 0.0
  %838 = vmatprep.subr.mxu0 0.0
  %839 = vmatpush1.msra.mxu0 0.0
  %840 = vmatprep.subr.mxu0 0.0
  %841 = vmatpush1.msra.mxu0 0.0
  %842 = vmatprep.subr.mxu0 0.0
  %843 = vmatpush1.msra.mxu0 0.0
  %844 = vmatprep.subr.mxu0 0.0
  %845 = vmatpush1.msra.mxu0 0.0
  %846 = vmatprep.subr.mxu0 0.0
  %847 = vmatpush1.msra.mxu0 0.0
  %848 = vmatprep.subr.mxu0 0.0
  %849 = vmatpush1.msra.mxu0 0.0
  %850 = vmatprep.subr.mxu0 0.0
  %851 = vmatpush1.msra.mxu0 0.0
  %852 = vmatprep.subr.mxu0 0.0
  %853 = vmatpush1.msra.mxu0 0.0
  %854 = vmatprep.subr.mxu0 0.0
  %855 = vmatpush1.msra.mxu0 0.0
  %856 = vmatprep.subr.mxu0 0.0
  %857 = vmatpush1.msra.mxu0 0.0
  %858 = vmatprep.subr.mxu0 0.0
  %859 = vmatpush1.msra.mxu0 0.0
  %860 = vmatprep.subr.mxu0 0.0
  %861 = vmatpush1.msra.mxu0 0.0
  %862 = vmatprep.subr.mxu0 0.0
  %863 = vmatpush1.msra.mxu0 0.0
  %864 = vmatprep.subr.mxu0 0.0
  %865 = vmatpush1.msra.mxu0 0.0
  %866 = vmatprep.mubr.f32.mxu0 0.0
  %867 = vmatmul.mubr.f32.gmra.mrb[0].mxu0 %v33
  %v868 = vpop.f32.mrb[0].mxu0
  %v869 = vadd.f32 0.0, %v868
  %v870 = vpop.f32.mrb[0].mxu0
  %871 = vmatprep.mubr.f32.mxu0 0.0
  %872 = vmatmul.mubr.f32.gmra.mrb[0].mxu0 %v36
  %v873 = vpop.f32.mrb[0].mxu0
  %v874 = vadd.f32 0.0, %v873
  %v875 = vpop.f32.mrb[0].mxu0
  %876 = vdwg.mxu0
  %877 = vmatprep.subr.mxu0 0.0
  %878 = vmatpush1.msra.mxu0 %v797
  %879 = vmatprep.subr.mxu0 0.0
  %880 = vmatpush1.msra.mxu0 0.0
  %881 = vmatprep.subr.mxu0 0.0
  %882 = vmatpush1.msra.mxu0 0.0
  %883 = vmatprep.subr.mxu0 0.0
  %884 = vmatpush1.msra.mxu0 0.0
  %885 = vmatprep.subr.mxu0 0.0
  %886 = vmatpush1.msra.mxu0 0.0
  %887 = vmatprep.subr.mxu0 0.0
  %888 = vmatpush1.msra.mxu0 0.0
  %889 = vmatprep.subr.mxu0 0.0
  %890 = vmatpush1.msra.mxu0 0.0
  %891 = vmatprep.subr.mxu0 0.0
  %892 = vmatpush1.msra.mxu0 0.0
  %893 = vmatprep.subr.mxu0 0.0
  %894 = vmatpush1.msra.mxu0 0.0
  %895 = vmatprep.subr.mxu0 0.0
  %896 = vmatpush1.msra.mxu0 0.0
  %897 = vmatprep.subr.mxu0 0.0
  %898 = vmatpush1.msra.mxu0 0.0
  %899 = vmatprep.subr.mxu0 0.0
  %900 = vmatpush1.msra.mxu0 0.0
  %901 = vmatprep.subr.mxu0 0.0
  %902 = vmatpush1.msra.mxu0 0.0
  %903 = vmatprep.subr.mxu0 0.0
  %904 = vmatpush1.msra.mxu0 0.0
  %905 = vmatprep.subr.mxu0 0.0
  %906 = vmatpush1.msra.mxu0 0.0
  %907 = vmatprep.subr.mxu0 0.0
  %908 = vmatpush1.msra.mxu0 0.0
  %909 = vmatprep.subr.mxu0 0.0
  %910 = vmatpush1.msra.mxu0 0.0
  %911 = vmatprep.subr.mxu0 0.0
  %912 = vmatpush1.msra.mxu0 0.0
  %913 = vmatprep.subr.mxu0 0.0
  %914 = vmatpush1.msra.mxu0 0.0
  %915 = vmatprep.subr.mxu0 0.0
  %916 = vmatpush1.msra.mxu0 0.0
  %917 = vmatprep.subr.mxu0 0.0
  %918 = vmatpush1.msra.mxu0 0.0
  %919 = vmatprep.subr.mxu0 0.0
  %920 = vmatpush1.msra.mxu0 0.0
  %921 = vmatprep.subr.mxu0 0.0
  %922 = vmatpush1.msra.mxu0 0.0
  %923 = vmatprep.subr.mxu0 0.0
  %924 = vmatpush1.msra.mxu0 0.0
  %925 = vmatprep.subr.mxu0 0.0
  %926 = vmatpush1.msra.mxu0 0.0
  %927 = vmatprep.subr.mxu0 0.0
  %928 = vmatpush1.msra.mxu0 0.0
  %929 = vmatprep.subr.mxu0 0.0
  %930 = vmatpush1.msra.mxu0 0.0
  %931 = vmatprep.subr.mxu0 0.0
  %932 = vmatpush1.msra.mxu0 0.0
  %933 = vmatprep.subr.mxu0 0.0
  %934 = vmatpush1.msra.mxu0 0.0
  %935 = vmatprep.subr.mxu0 0.0
  %936 = vmatpush1.msra.mxu0 0.0
  %937 = vmatprep.subr.mxu0 0.0
  %938 = vmatpush1.msra.mxu0 0.0
  %939 = vmatprep.subr.mxu0 0.0
  %940 = vmatpush1.msra.mxu0 0.0
  %941 = vmatprep.mubr.f32.mxu0 0.0
  %942 = vmatmul.mubr.f32.gmra.mrb[0].mxu0 %v114
  %v943 = vpop.f32.mrb[0].mxu0
  %v944 = vadd.f32 %v869, %v943
  %v945 = vpop.f32.mrb[0].mxu0
  %946 = vmatprep.mubr.f32.mxu0 0.0
  %947 = vmatmul.mubr.f32.gmra.mrb[0].mxu0 %v117
  %v948 = vpop.f32.mrb[0].mxu0
  %v949 = vadd.f32 %v874, %v948
  %v950 = vpop.f32.mrb[0].mxu0
  %951 = vdwg.mxu0
  %v952 = vtanh.pop %v944
  %v953 = vxor.u32 %v949, 2147483648
  %v954 = vmul.f32 %v953, 1.442695
  %v955 = vpow.pop %v954
  %v956 = vadd.f32 %v955, 1.0
  %v957 = vrcp.pop %v956
  %v958 = vmul.f32 1.0, %v957
  %v959 = vmul.f32 %v952, %v958
  %960 = vmatprep.subr.mxu0 0.0
  %961 = vmatpush1.msra.mxu0 %v959
  %962 = vmatprep.subr.mxu0 0.0
  %963 = vmatpush1.msra.mxu0 0.0
  %964 = vmatprep.subr.mxu0 0.0
  %965 = vmatpush1.msra.mxu0 0.0
  %966 = vmatprep.subr.mxu0 0.0
  %967 = vmatpush1.msra.mxu0 0.0
  %968 = vmatprep.subr.mxu0 0.0
  %969 = vmatpush1.msra.mxu0 0.0
  %970 = vmatprep.subr.mxu0 0.0
  %971 = vmatpush1.msra.mxu0 0.0
  %972 = vmatprep.subr.mxu0 0.0
  %973 = vmatpush1.msra.mxu0 0.0
  %974 = vmatprep.subr.mxu0 0.0
  %975 = vmatpush1.msra.mxu0 0.0
  %976 = vmatprep.subr.mxu0 0.0
  %977 = vmatpush1.msra.mxu0 0.0
  %978 = vmatprep.subr.mxu0 0.0
  %979 = vmatpush1.msra.mxu0 0.0
  %980 = vmatprep.subr.mxu0 0.0
  %981 = vmatpush1.msra.mxu0 0.0
  %982 = vmatprep.subr.mxu0 0.0
  %983 = vmatpush1.msra.mxu0 0.0
  %984 = vmatprep.subr.mxu0 0.0
  %985 = vmatpush1.msra.mxu0 0.0
  %986 = vmatprep.subr.mxu0 0.0
  %987 = vmatpush1.msra.mxu0 0.0
  %988 = vmatprep.subr.mxu0 0.0
  %989 = vmatpush1.msra.mxu0 0.0
  %990 = vmatprep.subr.mxu0 0.0
  %991 = vmatpush1.msra.mxu0 0.0
  %992 = vmatprep.subr.mxu0 0.0
  %993 = vmatpush1.msra.mxu0 0.0
  %994 = vmatprep.subr.mxu0 0.0
  %995 = vmatpush1.msra.mxu0 0.0
  %996 = vmatprep.subr.mxu0 0.0
  %997 = vmatpush1.msra.mxu0 0.0
  %998 = vmatprep.subr.mxu0 0.0
  %999 = vmatpush1.msra.mxu0 0.0
  %1000 = vmatprep.subr.mxu0 0.0
  %1001 = vmatpush1.msra.mxu0 0.0
  %1002 = vmatprep.subr.mxu0 0.0
  %1003 = vmatpush1.msra.mxu0 0.0
  %1004 = vmatprep.subr.mxu0 0.0
  %1005 = vmatpush1.msra.mxu0 0.0
  %1006 = vmatprep.subr.mxu0 0.0
  %1007 = vmatpush1.msra.mxu0 0.0
  %1008 = vmatprep.subr.mxu0 0.0
  %1009 = vmatpush1.msra.mxu0 0.0
  %1010 = vmatprep.subr.mxu0 0.0
  %1011 = vmatpush1.msra.mxu0 0.0
  %1012 = vmatprep.subr.mxu0 0.0
  %1013 = vmatpush1.msra.mxu0 0.0
  %1014 = vmatprep.subr.mxu0 0.0
  %1015 = vmatpush1.msra.mxu0 0.0
  %1016 = vmatprep.subr.mxu0 0.0
  %1017 = vmatpush1.msra.mxu0 0.0
  %1018 = vmatprep.subr.mxu0 0.0
  %1019 = vmatpush1.msra.mxu0 0.0
  %1020 = vmatprep.subr.mxu0 0.0
  %1021 = vmatpush1.msra.mxu0 0.0
  %1022 = vmatprep.subr.mxu0 0.0
  %1023 = vmatpush1.msra.mxu0 0.0
  %1024 = vmatprep.mubr.f32.mxu0 0.0
  %1025 = vmatmul.mubr.f32.gmra.mrb[0].mxu0 %v203
  %v1026 = vpop.f32.mrb[0].mxu0
  %v1027 = vadd.f32 0.0, %v1026
  %v1028 = vpop.f32.mrb[0].mxu0
  %1029 = vmatprep.mubr.f32.mxu0 0.0
  %1030 = vmatmul.mubr.f32.gmra.mrb[0].mxu0 %v206
  %v1031 = vpop.f32.mrb[0].mxu0
  %v1032 = vadd.f32 0.0, %v1031
  %v1033 = vpop.f32.mrb[0].mxu0
  %1034 = vmatprep.mubr.f32.mxu0 0.0
  %1035 = vmatmul.mubr.f32.gmra.mrb[0].mxu0 %v209
  %v1036 = vpop.f32.mrb[0].mxu0
  %v1037 = vadd.f32 0.0, %v1036
  %v1038 = vpop.f32.mrb[0].mxu0
  %1039 = vdwg.mxu0
  %v1040 = vadd.f32 %v1027, %v800
  %s1041 = scalar_lea.vmem %s4, 24
  %1042 = vst.msk [vmem:[%s1041] sm:$0xff] %vm292, %v1040
  %s1043 = scalar_lea.vmem %s5, 48
  %1044 = vst.msk [vmem:[%s1043] sm:$0xff] %vm292, %v1032
  %1045 = vst.msk [vmem:[%s1043 + $0x8] sm:$0xff] %vm292, %v1037
  // Predicated region
  $region18: #{_lambda_.6} parent=0 // pred_check
    _
  $region19: #{_lambda_.6} parent=0 // pred_check_branch
    %1047 = sbr.rel (0) target = $region21
  $region20: #{_lambda_.6} parent=0 // pred_region
    _
  $region21: #{_lambda_.6} parent=0 // pred_fallthru
    _
  // Predicated region
  $region22: #{_lambda_.6} parent=0 // pred_check
    _
  $region23: #{_lambda_.6} parent=0 // pred_check_branch
    %1049 = sbr.rel (0) target = $region25
  $region24: #{_lambda_.6} parent=0 // pred_region
    _
  $region25: #{_lambda_.6} parent=0 // pred_fallthru
    _
  // Predicated region
  $region26: #{_lambda_.6} parent=0 // pred_check
    _
  $region27: #{_lambda_.6} parent=0 // pred_check_branch
    %1051 = sbr.rel (0) target = $region29
  $region28: #{_lambda_.6} parent=0 // pred_region
    _
  $region29: #{_lambda_.6} parent=0 // pred_fallthru
    _
  // Predicated region
  $region30: #{_lambda_.6} parent=0 // pred_check
    _
  $region31: #{_lambda_.6} parent=0 // pred_check_branch
    %1053 = sbr.rel (0) target = $region33
  $region32: #{_lambda_.6} parent=0 // pred_region
    _
  $region33: #{_lambda_.6} parent=0 // pred_fallthru
    _

// kernel: _lambda_.8
$region0: #{_lambda_.8}
  #allocation0 [shape = 'u32[]', space=smem, size = 0x4, offset = 0x4, fixed_abs, tag = 'smem constant byte address 0x4 - core index']
  #allocation1 [shape = 'u32[144,128]{1,0:T(1,128)}', space=vmem, size = 0x12000, scoped, tag = 'internal scratch']
  %s0 = inlined_call_operand.vmem [shape: f32[4,8,7], index: 0, kind: input, shape index: {}]
  %s1 = inlined_call_operand.vmem [shape: f32[16,8], index: 1, kind: input, shape index: {}]
  %s2 = inlined_call_operand.vmem [shape: f32[16,8], index: 2, kind: input, shape index: {}]
  %s3 = inlined_call_operand.vmem [shape: f32[24,8], index: 3, kind: input, shape index: {}]
  %s4 = inlined_call_operand.hbm [shape: f32[4,8,6], index: 4, kind: output, shape index: {0}]
  %s5 = inlined_call_operand.vmem [shape: f32[4,16,6], index: 5, kind: output, shape index: {1}]
  %6 = xla_tuple %s4, %s5
  %s7 = sld [smem:[#allocation0]]
  $region34: #{_lambda_.8} parent=0
    _
  %s9 = ssub.s32 1, %s7
  %s10 = scalar_select 0, %s9, %s7
  $region1: #{_lambda_.8} parent=0
    #allocation2 [shape = 'u8[16384]{0}', space=vmem, size = 0x4000, scoped, tag = 'output window, operand 0, single buffered']
    #allocation3 [shape = 's32[1]{0}', space=sflag, size = 0x4, scoped, tag = 'scoped memory for _lambda_.8']
    %11 = vsyncpa [#allocation3], 0
    // Predicated region
    $region2: #{_lambda_.8} parent=1 // pred_check
      _
    $region3: #{_lambda_.8} parent=1 // pred_check_branch
      %13 = sbr.rel (0) target = $region5
    $region4: #{_lambda_.8} parent=1 // pred_region
      _
    $region5: #{_lambda_.8} parent=1 // pred_fallthru
      _
    // Predicated region
    $region6: #{_lambda_.8} parent=1 // pred_check
      _
    $region7: #{_lambda_.8} parent=1 // pred_check_branch
      %15 = sbr.rel (0) target = $region9
    $region8: #{_lambda_.8} parent=1 // pred_region
      _
    $region9: #{_lambda_.8} parent=1 // pred_fallthru
      _
    // Predicated region
    $region10: #{_lambda_.8} parent=1 // pred_check
      _
    $region11: #{_lambda_.8} parent=1 // pred_check_branch
      %17 = sbr.rel (0) target = $region13
    $region12: #{_lambda_.8} parent=1 // pred_region
      _
    $region13: #{_lambda_.8} parent=1 // pred_fallthru
      _
    // Predicated region
    $region14: #{_lambda_.8} parent=1 // pred_check
      _
    $region15: #{_lambda_.8} parent=1 // pred_check_branch
      %19 = sbr.rel (0) target = $region17
    $region16: #{_lambda_.8} parent=1 // pred_region
      _
    $region17: #{_lambda_.8} parent=1 // pred_fallthru
      _
    %v20 = vld [vmem:[%s1] sm:$0xff]
    %v21 = vld [vmem:[%s1 + $0x8] sm:$0xff]
    %v22 = vld [vmem:[%s2] sm:$0xff]
    %v23 = vld [vmem:[%s2 + $0x8] sm:$0xff]
    %v24 = vld [vmem:[%s3] sm:$0xff]
    %v25 = vld [vmem:[%s3 + $0x8] sm:$0xff]
    %v26 = vld [vmem:[%s3 + $0x10] sm:$0xff]
    %v27 = vld [vmem:[%s0] sm:$0xff]
    %29 = vrot.lane.b32.xlu0 %v27, 127
    %v30 = vpop.permute.xlu0 %29
    %vm32 = vcmask 64512
    %v34 = vsel %vm32, %v22, 0
    %v37 = vsel %vm32, %v23, 0
    %39 = vmatprep.subr.mxu0 0.0
    %40 = vmatpush1.msra.mxu0 %v30
    %41 = vmatprep.subr.mxu0 0.0
    %42 = vmatpush1.msra.mxu0 0.0
    %43 = vmatprep.subr.mxu0 0.0
    %44 = vmatpush1.msra.mxu0 0.0
    %45 = vmatprep.subr.mxu0 0.0
    %46 = vmatpush1.msra.mxu0 0.0
    %47 = vmatprep.subr.mxu0 0.0
    %48 = vmatpush1.msra.mxu0 0.0
    %49 = vmatprep.subr.mxu0 0.0
    %50 = vmatpush1.msra.mxu0 0.0
    %51 = vmatprep.subr.mxu0 0.0
    %52 = vmatpush1.msra.mxu0 0.0
    %53 = vmatprep.subr.mxu0 0.0
    %54 = vmatpush1.msra.mxu0 0.0
    %55 = vmatprep.subr.mxu0 0.0
    %56 = vmatpush1.msra.mxu0 0.0
    %57 = vmatprep.subr.mxu0 0.0
    %58 = vmatpush1.msra.mxu0 0.0
    %59 = vmatprep.subr.mxu0 0.0
    %60 = vmatpush1.msra.mxu0 0.0
    %61 = vmatprep.subr.mxu0 0.0
    %62 = vmatpush1.msra.mxu0 0.0
    %63 = vmatprep.subr.mxu0 0.0
    %64 = vmatpush1.msra.mxu0 0.0
    %65 = vmatprep.subr.mxu0 0.0
    %66 = vmatpush1.msra.mxu0 0.0
    %67 = vmatprep.subr.mxu0 0.0
    %68 = vmatpush1.msra.mxu0 0.0
    %69 = vmatprep.subr.mxu0 0.0
    %70 = vmatpush1.msra.mxu0 0.0
    %71 = vmatprep.subr.mxu0 0.0
    %72 = vmatpush1.msra.mxu0 0.0
    %73 = vmatprep.subr.mxu0 0.0
    %74 = vmatpush1.msra.mxu0 0.0
    %75 = vmatprep.subr.mxu0 0.0
    %76 = vmatpush1.msra.mxu0 0.0
    %77 = vmatprep.subr.mxu0 0.0
    %78 = vmatpush1.msra.mxu0 0.0
    %79 = vmatprep.subr.mxu0 0.0
    %80 = vmatpush1.msra.mxu0 0.0
    %81 = vmatprep.subr.mxu0 0.0
    %82 = vmatpush1.msra.mxu0 0.0
    %83 = vmatprep.subr.mxu0 0.0
    %84 = vmatpush1.msra.mxu0 0.0
    %85 = vmatprep.subr.mxu0 0.0
    %86 = vmatpush1.msra.mxu0 0.0
    %87 = vmatprep.subr.mxu0 0.0
    %88 = vmatpush1.msra.mxu0 0.0
    %89 = vmatprep.subr.mxu0 0.0
    %90 = vmatpush1.msra.mxu0 0.0
    %91 = vmatprep.subr.mxu0 0.0
    %92 = vmatpush1.msra.mxu0 0.0
    %93 = vmatprep.subr.mxu0 0.0
    %94 = vmatpush1.msra.mxu0 0.0
    %95 = vmatprep.subr.mxu0 0.0
    %96 = vmatpush1.msra.mxu0 0.0
    %97 = vmatprep.subr.mxu0 0.0
    %98 = vmatpush1.msra.mxu0 0.0
    %99 = vmatprep.subr.mxu0 0.0
    %100 = vmatpush1.msra.mxu0 0.0
    %101 = vmatprep.subr.mxu0 0.0
    %102 = vmatpush1.msra.mxu0 0.0
    %103 = vmatprep.mubr.f32.mxu0 0.0
    %104 = vmatmul.mubr.f32.gmra.mrb[0].mxu0 %v34
    %v105 = vpop.f32.mrb[0].mxu0
    %v106 = vadd.f32 0.0, %v105
    %v107 = vpop.f32.mrb[0].mxu0
    %108 = vmatprep.mubr.f32.mxu0 0.0
    %109 = vmatmul.mubr.f32.gmra.mrb[0].mxu0 %v37
    %v110 = vpop.f32.mrb[0].mxu0
    %v111 = vadd.f32 0.0, %v110
    %v112 = vpop.f32.mrb[0].mxu0
    %113 = vdwg.mxu0
    %v115 = vsel %vm32, %v20, 0
    %v118 = vsel %vm32, %v21, 0
    %120 = vmatprep.subr.mxu0 0.0
    %121 = vmatpush1.msra.mxu0 %v27
    %122 = vmatprep.subr.mxu0 0.0
    %123 = vmatpush1.msra.mxu0 0.0
    %124 = vmatprep.subr.mxu0 0.0
    %125 = vmatpush1.msra.mxu0 0.0
    %126 = vmatprep.subr.mxu0 0.0
    %127 = vmatpush1.msra.mxu0 0.0
    %128 = vmatprep.subr.mxu0 0.0
    %129 = vmatpush1.msra.mxu0 0.0
    %130 = vmatprep.subr.mxu0 0.0
    %131 = vmatpush1.msra.mxu0 0.0
    %132 = vmatprep.subr.mxu0 0.0
    %133 = vmatpush1.msra.mxu0 0.0
    %134 = vmatprep.subr.mxu0 0.0
    %135 = vmatpush1.msra.mxu0 0.0
    %136 = vmatprep.subr.mxu0 0.0
    %137 = vmatpush1.msra.mxu0 0.0
    %138 = vmatprep.subr.mxu0 0.0
    %139 = vmatpush1.msra.mxu0 0.0
    %140 = vmatprep.subr.mxu0 0.0
    %141 = vmatpush1.msra.mxu0 0.0
    %142 = vmatprep.subr.mxu0 0.0
    %143 = vmatpush1.msra.mxu0 0.0
    %144 = vmatprep.subr.mxu0 0.0
    %145 = vmatpush1.msra.mxu0 0.0
    %146 = vmatprep.subr.mxu0 0.0
    %147 = vmatpush1.msra.mxu0 0.0
    %148 = vmatprep.subr.mxu0 0.0
    %149 = vmatpush1.msra.mxu0 0.0
    %150 = vmatprep.subr.mxu0 0.0
    %151 = vmatpush1.msra.mxu0 0.0
    %152 = vmatprep.subr.mxu0 0.0
    %153 = vmatpush1.msra.mxu0 0.0
    %154 = vmatprep.subr.mxu0 0.0
    %155 = vmatpush1.msra.mxu0 0.0
    %156 = vmatprep.subr.mxu0 0.0
    %157 = vmatpush1.msra.mxu0 0.0
    %158 = vmatprep.subr.mxu0 0.0
    %159 = vmatpush1.msra.mxu0 0.0
    %160 = vmatprep.subr.mxu0 0.0
    %161 = vmatpush1.msra.mxu0 0.0
    %162 = vmatprep.subr.mxu0 0.0
    %163 = vmatpush1.msra.mxu0 0.0
    %164 = vmatprep.subr.mxu0 0.0
    %165 = vmatpush1.msra.mxu0 0.0
    %166 = vmatprep.subr.mxu0 0.0
    %167 = vmatpush1.msra.mxu0 0.0
    %168 = vmatprep.subr.mxu0 0.0
    %169 = vmatpush1.msra.mxu0 0.0
    %170 = vmatprep.subr.mxu0 0.0
    %171 = vmatpush1.msra.mxu0 0.0
    %172 = vmatprep.subr.mxu0 0.0
    %173 = vmatpush1.msra.mxu0 0.0
    %174 = vmatprep.subr.mxu0 0.0
    %175 = vmatpush1.msra.mxu0 0.0
    %176 = vmatprep.subr.mxu0 0.0
    %177 = vmatpush1.msra.mxu0 0.0
    %178 = vmatprep.subr.mxu0 0.0
    %179 = vmatpush1.msra.mxu0 0.0
    %180 = vmatprep.subr.mxu0 0.0
    %181 = vmatpush1.msra.mxu0 0.0
    %182 = vmatprep.subr.mxu0 0.0
    %183 = vmatpush1.msra.mxu0 0.0
    %184 = vmatprep.mubr.f32.mxu0 0.0
    %185 = vmatmul.mubr.f32.gmra.mrb[0].mxu0 %v115
    %v186 = vpop.f32.mrb[0].mxu0
    %v187 = vadd.f32 %v106, %v186
    %v188 = vpop.f32.mrb[0].mxu0
    %189 = vmatprep.mubr.f32.mxu0 0.0
    %190 = vmatmul.mubr.f32.gmra.mrb[0].mxu0 %v118
    %v191 = vpop.f32.mrb[0].mxu0
    %v192 = vadd.f32 %v111, %v191
    %v193 = vpop.f32.mrb[0].mxu0
    %194 = vdwg.mxu0
    %v195 = vtanh.pop %v187
    %v196 = vxor.u32 %v192, 2147483648
    %v197 = vmul.f32 %v196, 1.442695
    %v198 = vpow.pop %v197
    %v199 = vadd.f32 %v198, 1.0
    %v200 = vrcp.pop %v199
    %v201 = vmul.f32 1.0, %v200
    %v202 = vmul.f32 %v195, %v201
    %v204 = vsel %vm32, %v24, 0
    %v207 = vsel %vm32, %v25, 0
    %v210 = vsel %vm32, %v26, 0
    %212 = vmatprep.subr.mxu0 0.0
    %213 = vmatpush1.msra.mxu0 %v202
    %214 = vmatprep.subr.mxu0 0.0
    %215 = vmatpush1.msra.mxu0 0.0
    %216 = vmatprep.subr.mxu0 0.0
    %217 = vmatpush1.msra.mxu0 0.0
    %218 = vmatprep.subr.mxu0 0.0
    %219 = vmatpush1.msra.mxu0 0.0
    %220 = vmatprep.subr.mxu0 0.0
    %221 = vmatpush1.msra.mxu0 0.0
    %222 = vmatprep.subr.mxu0 0.0
    %223 = vmatpush1.msra.mxu0 0.0
    %224 = vmatprep.subr.mxu0 0.0
    %225 = vmatpush1.msra.mxu0 0.0
    %226 = vmatprep.subr.mxu0 0.0
    %227 = vmatpush1.msra.mxu0 0.0
    %228 = vmatprep.subr.mxu0 0.0
    %229 = vmatpush1.msra.mxu0 0.0
    %230 = vmatprep.subr.mxu0 0.0
    %231 = vmatpush1.msra.mxu0 0.0
    %232 = vmatprep.subr.mxu0 0.0
    %233 = vmatpush1.msra.mxu0 0.0
    %234 = vmatprep.subr.mxu0 0.0
    %235 = vmatpush1.msra.mxu0 0.0
    %236 = vmatprep.subr.mxu0 0.0
    %237 = vmatpush1.msra.mxu0 0.0
    %238 = vmatprep.subr.mxu0 0.0
    %239 = vmatpush1.msra.mxu0 0.0
    %240 = vmatprep.subr.mxu0 0.0
    %241 = vmatpush1.msra.mxu0 0.0
    %242 = vmatprep.subr.mxu0 0.0
    %243 = vmatpush1.msra.mxu0 0.0
    %244 = vmatprep.subr.mxu0 0.0
    %245 = vmatpush1.msra.mxu0 0.0
    %246 = vmatprep.subr.mxu0 0.0
    %247 = vmatpush1.msra.mxu0 0.0
    %248 = vmatprep.subr.mxu0 0.0
    %249 = vmatpush1.msra.mxu0 0.0
    %250 = vmatprep.subr.mxu0 0.0
    %251 = vmatpush1.msra.mxu0 0.0
    %252 = vmatprep.subr.mxu0 0.0
    %253 = vmatpush1.msra.mxu0 0.0
    %254 = vmatprep.subr.mxu0 0.0
    %255 = vmatpush1.msra.mxu0 0.0
    %256 = vmatprep.subr.mxu0 0.0
    %257 = vmatpush1.msra.mxu0 0.0
    %258 = vmatprep.subr.mxu0 0.0
    %259 = vmatpush1.msra.mxu0 0.0
    %260 = vmatprep.subr.mxu0 0.0
    %261 = vmatpush1.msra.mxu0 0.0
    %262 = vmatprep.subr.mxu0 0.0
    %263 = vmatpush1.msra.mxu0 0.0
    %264 = vmatprep.subr.mxu0 0.0
    %265 = vmatpush1.msra.mxu0 0.0
    %266 = vmatprep.subr.mxu0 0.0
    %267 = vmatpush1.msra.mxu0 0.0
    %268 = vmatprep.subr.mxu0 0.0
    %269 = vmatpush1.msra.mxu0 0.0
    %270 = vmatprep.subr.mxu0 0.0
    %271 = vmatpush1.msra.mxu0 0.0
    %272 = vmatprep.subr.mxu0 0.0
    %273 = vmatpush1.msra.mxu0 0.0
    %274 = vmatprep.subr.mxu0 0.0
    %275 = vmatpush1.msra.mxu0 0.0
    %276 = vmatprep.mubr.f32.mxu0 0.0
    %277 = vmatmul.mubr.f32.gmra.mrb[0].mxu0 %v204
    %v278 = vpop.f32.mrb[0].mxu0
    %v279 = vadd.f32 0.0, %v278
    %v280 = vpop.f32.mrb[0].mxu0
    %281 = vmatprep.mubr.f32.mxu0 0.0
    %282 = vmatmul.mubr.f32.gmra.mrb[0].mxu0 %v207
    %v283 = vpop.f32.mrb[0].mxu0
    %v284 = vadd.f32 0.0, %v283
    %v285 = vpop.f32.mrb[0].mxu0
    %286 = vmatprep.mubr.f32.mxu0 0.0
    %287 = vmatmul.mubr.f32.gmra.mrb[0].mxu0 %v210
    %v288 = vpop.f32.mrb[0].mxu0
    %v289 = vadd.f32 0.0, %v288
    %v290 = vpop.f32.mrb[0].mxu0
    %291 = vdwg.mxu0
    %v292 = vadd.f32 %v279, %v30
    %vm293 = vcmask 48128
    %294 = vst.msk [vmem:[#allocation2] sm:$0xff] %vm293, %v292
    %295 = vst.msk [vmem:[%s5] sm:$0xff] %vm293, %v284
    %296 = vst.msk [vmem:[%s5 + $0x8] sm:$0xff] %vm293, %v289
    %s297 = scalar_lea.vmem %s0, 8
    %v298 = vld [vmem:[%s297] sm:$0xff]
    %300 = vrot.lane.b32.xlu0 %v298, 127
    %v301 = vpop.permute.xlu0 %300
    %303 = vmatprep.subr.mxu0 0.0
    %304 = vmatpush1.msra.mxu0 %v301
    %305 = vmatprep.subr.mxu0 0.0
    %306 = vmatpush1.msra.mxu0 0.0
    %307 = vmatprep.subr.mxu0 0.0
    %308 = vmatpush1.msra.mxu0 0.0
    %309 = vmatprep.subr.mxu0 0.0
    %310 = vmatpush1.msra.mxu0 0.0
    %311 = vmatprep.subr.mxu0 0.0
    %312 = vmatpush1.msra.mxu0 0.0
    %313 = vmatprep.subr.mxu0 0.0
    %314 = vmatpush1.msra.mxu0 0.0
    %315 = vmatprep.subr.mxu0 0.0
    %316 = vmatpush1.msra.mxu0 0.0
    %317 = vmatprep.subr.mxu0 0.0
    %318 = vmatpush1.msra.mxu0 0.0
    %319 = vmatprep.subr.mxu0 0.0
    %320 = vmatpush1.msra.mxu0 0.0
    %321 = vmatprep.subr.mxu0 0.0
    %322 = vmatpush1.msra.mxu0 0.0
    %323 = vmatprep.subr.mxu0 0.0
    %324 = vmatpush1.msra.mxu0 0.0
    %325 = vmatprep.subr.mxu0 0.0
    %326 = vmatpush1.msra.mxu0 0.0
    %327 = vmatprep.subr.mxu0 0.0
    %328 = vmatpush1.msra.mxu0 0.0
    %329 = vmatprep.subr.mxu0 0.0
    %330 = vmatpush1.msra.mxu0 0.0
    %331 = vmatprep.subr.mxu0 0.0
    %332 = vmatpush1.msra.mxu0 0.0
    %333 = vmatprep.subr.mxu0 0.0
    %334 = vmatpush1.msra.mxu0 0.0
    %335 = vmatprep.subr.mxu0 0.0
    %336 = vmatpush1.msra.mxu0 0.0
    %337 = vmatprep.subr.mxu0 0.0
    %338 = vmatpush1.msra.mxu0 0.0
    %339 = vmatprep.subr.mxu0 0.0
    %340 = vmatpush1.msra.mxu0 0.0
    %341 = vmatprep.subr.mxu0 0.0
    %342 = vmatpush1.msra.mxu0 0.0
    %343 = vmatprep.subr.mxu0 0.0
    %344 = vmatpush1.msra.mxu0 0.0
    %345 = vmatprep.subr.mxu0 0.0
    %346 = vmatpush1.msra.mxu0 0.0
    %347 = vmatprep.subr.mxu0 0.0
    %348 = vmatpush1.msra.mxu0 0.0
    %349 = vmatprep.subr.mxu0 0.0
    %350 = vmatpush1.msra.mxu0 0.0
    %351 = vmatprep.subr.mxu0 0.0
    %352 = vmatpush1.msra.mxu0 0.0
    %353 = vmatprep.subr.mxu0 0.0
    %354 = vmatpush1.msra.mxu0 0.0
    %355 = vmatprep.subr.mxu0 0.0
    %356 = vmatpush1.msra.mxu0 0.0
    %357 = vmatprep.subr.mxu0 0.0
    %358 = vmatpush1.msra.mxu0 0.0
    %359 = vmatprep.subr.mxu0 0.0
    %360 = vmatpush1.msra.mxu0 0.0
    %361 = vmatprep.subr.mxu0 0.0
    %362 = vmatpush1.msra.mxu0 0.0
    %363 = vmatprep.subr.mxu0 0.0
    %364 = vmatpush1.msra.mxu0 0.0
    %365 = vmatprep.subr.mxu0 0.0
    %366 = vmatpush1.msra.mxu0 0.0
    %367 = vmatprep.mubr.f32.mxu0 0.0
    %368 = vmatmul.mubr.f32.gmra.mrb[0].mxu0 %v34
    %v369 = vpop.f32.mrb[0].mxu0
    %v370 = vadd.f32 0.0, %v369
    %v371 = vpop.f32.mrb[0].mxu0
    %372 = vmatprep.mubr.f32.mxu0 0.0
    %373 = vmatmul.mubr.f32.gmra.mrb[0].mxu0 %v37
    %v374 = vpop.f32.mrb[0].mxu0
    %v375 = vadd.f32 0.0, %v374
    %v376 = vpop.f32.mrb[0].mxu0
    %377 = vdwg.mxu0
    %378 = vmatprep.subr.mxu0 0.0
    %379 = vmatpush1.msra.mxu0 %v298
    %380 = vmatprep.subr.mxu0 0.0
    %381 = vmatpush1.msra.mxu0 0.0
    %382 = vmatprep.subr.mxu0 0.0
    %383 = vmatpush1.msra.mxu0 0.0
    %384 = vmatprep.subr.mxu0 0.0
    %385 = vmatpush1.msra.mxu0 0.0
    %386 = vmatprep.subr.mxu0 0.0
    %387 = vmatpush1.msra.mxu0 0.0
    %388 = vmatprep.subr.mxu0 0.0
    %389 = vmatpush1.msra.mxu0 0.0
    %390 = vmatprep.subr.mxu0 0.0
    %391 = vmatpush1.msra.mxu0 0.0
    %392 = vmatprep.subr.mxu0 0.0
    %393 = vmatpush1.msra.mxu0 0.0
    %394 = vmatprep.subr.mxu0 0.0
    %395 = vmatpush1.msra.mxu0 0.0
    %396 = vmatprep.subr.mxu0 0.0
    %397 = vmatpush1.msra.mxu0 0.0
    %398 = vmatprep.subr.mxu0 0.0
    %399 = vmatpush1.msra.mxu0 0.0
    %400 = vmatprep.subr.mxu0 0.0
    %401 = vmatpush1.msra.mxu0 0.0
    %402 = vmatprep.subr.mxu0 0.0
    %403 = vmatpush1.msra.mxu0 0.0
    %404 = vmatprep.subr.mxu0 0.0
    %405 = vmatpush1.msra.mxu0 0.0
    %406 = vmatprep.subr.mxu0 0.0
    %407 = vmatpush1.msra.mxu0 0.0
    %408 = vmatprep.subr.mxu0 0.0
    %409 = vmatpush1.msra.mxu0 0.0
    %410 = vmatprep.subr.mxu0 0.0
    %411 = vmatpush1.msra.mxu0 0.0
    %412 = vmatprep.subr.mxu0 0.0
    %413 = vmatpush1.msra.mxu0 0.0
    %414 = vmatprep.subr.mxu0 0.0
    %415 = vmatpush1.msra.mxu0 0.0
    %416 = vmatprep.subr.mxu0 0.0
    %417 = vmatpush1.msra.mxu0 0.0
    %418 = vmatprep.subr.mxu0 0.0
    %419 = vmatpush1.msra.mxu0 0.0
    %420 = vmatprep.subr.mxu0 0.0
    %421 = vmatpush1.msra.mxu0 0.0
    %422 = vmatprep.subr.mxu0 0.0
    %423 = vmatpush1.msra.mxu0 0.0
    %424 = vmatprep.subr.mxu0 0.0
    %425 = vmatpush1.msra.mxu0 0.0
    %426 = vmatprep.subr.mxu0 0.0
    %427 = vmatpush1.msra.mxu0 0.0
    %428 = vmatprep.subr.mxu0 0.0
    %429 = vmatpush1.msra.mxu0 0.0
    %430 = vmatprep.subr.mxu0 0.0
    %431 = vmatpush1.msra.mxu0 0.0
    %432 = vmatprep.subr.mxu0 0.0
    %433 = vmatpush1.msra.mxu0 0.0
    %434 = vmatprep.subr.mxu0 0.0
    %435 = vmatpush1.msra.mxu0 0.0
    %436 = vmatprep.subr.mxu0 0.0
    %437 = vmatpush1.msra.mxu0 0.0
    %438 = vmatprep.subr.mxu0 0.0
    %439 = vmatpush1.msra.mxu0 0.0
    %440 = vmatprep.subr.mxu0 0.0
    %441 = vmatpush1.msra.mxu0 0.0
    %442 = vmatprep.mubr.f32.mxu0 0.0
    %443 = vmatmul.mubr.f32.gmra.mrb[0].mxu0 %v115
    %v444 = vpop.f32.mrb[0].mxu0
    %v445 = vadd.f32 %v370, %v444
    %v446 = vpop.f32.mrb[0].mxu0
    %447 = vmatprep.mubr.f32.mxu0 0.0
    %448 = vmatmul.mubr.f32.gmra.mrb[0].mxu0 %v118
    %v449 = vpop.f32.mrb[0].mxu0
    %v450 = vadd.f32 %v375, %v449
    %v451 = vpop.f32.mrb[0].mxu0
    %452 = vdwg.mxu0
    %v453 = vtanh.pop %v445
    %v454 = vxor.u32 %v450, 2147483648
    %v455 = vmul.f32 %v454, 1.442695
    %v456 = vpow.pop %v455
    %v457 = vadd.f32 %v456, 1.0
    %v458 = vrcp.pop %v457
    %v459 = vmul.f32 1.0, %v458
    %v460 = vmul.f32 %v453, %v459
    %461 = vmatprep.subr.mxu0 0.0
    %462 = vmatpush1.msra.mxu0 %v460
    %463 = vmatprep.subr.mxu0 0.0
    %464 = vmatpush1.msra.mxu0 0.0
    %465 = vmatprep.subr.mxu0 0.0
    %466 = vmatpush1.msra.mxu0 0.0
    %467 = vmatprep.subr.mxu0 0.0
    %468 = vmatpush1.msra.mxu0 0.0
    %469 = vmatprep.subr.mxu0 0.0
    %470 = vmatpush1.msra.mxu0 0.0
    %471 = vmatprep.subr.mxu0 0.0
    %472 = vmatpush1.msra.mxu0 0.0
    %473 = vmatprep.subr.mxu0 0.0
    %474 = vmatpush1.msra.mxu0 0.0
    %475 = vmatprep.subr.mxu0 0.0
    %476 = vmatpush1.msra.mxu0 0.0
    %477 = vmatprep.subr.mxu0 0.0
    %478 = vmatpush1.msra.mxu0 0.0
    %479 = vmatprep.subr.mxu0 0.0
    %480 = vmatpush1.msra.mxu0 0.0
    %481 = vmatprep.subr.mxu0 0.0
    %482 = vmatpush1.msra.mxu0 0.0
    %483 = vmatprep.subr.mxu0 0.0
    %484 = vmatpush1.msra.mxu0 0.0
    %485 = vmatprep.subr.mxu0 0.0
    %486 = vmatpush1.msra.mxu0 0.0
    %487 = vmatprep.subr.mxu0 0.0
    %488 = vmatpush1.msra.mxu0 0.0
    %489 = vmatprep.subr.mxu0 0.0
    %490 = vmatpush1.msra.mxu0 0.0
    %491 = vmatprep.subr.mxu0 0.0
    %492 = vmatpush1.msra.mxu0 0.0
    %493 = vmatprep.subr.mxu0 0.0
    %494 = vmatpush1.msra.mxu0 0.0
    %495 = vmatprep.subr.mxu0 0.0
    %496 = vmatpush1.msra.mxu0 0.0
    %497 = vmatprep.subr.mxu0 0.0
    %498 = vmatpush1.msra.mxu0 0.0
    %499 = vmatprep.subr.mxu0 0.0
    %500 = vmatpush1.msra.mxu0 0.0
    %501 = vmatprep.subr.mxu0 0.0
    %502 = vmatpush1.msra.mxu0 0.0
    %503 = vmatprep.subr.mxu0 0.0
    %504 = vmatpush1.msra.mxu0 0.0
    %505 = vmatprep.subr.mxu0 0.0
    %506 = vmatpush1.msra.mxu0 0.0
    %507 = vmatprep.subr.mxu0 0.0
    %508 = vmatpush1.msra.mxu0 0.0
    %509 = vmatprep.subr.mxu0 0.0
    %510 = vmatpush1.msra.mxu0 0.0
    %511 = vmatprep.subr.mxu0 0.0
    %512 = vmatpush1.msra.mxu0 0.0
    %513 = vmatprep.subr.mxu0 0.0
    %514 = vmatpush1.msra.mxu0 0.0
    %515 = vmatprep.subr.mxu0 0.0
    %516 = vmatpush1.msra.mxu0 0.0
    %517 = vmatprep.subr.mxu0 0.0
    %518 = vmatpush1.msra.mxu0 0.0
    %519 = vmatprep.subr.mxu0 0.0
    %520 = vmatpush1.msra.mxu0 0.0
    %521 = vmatprep.subr.mxu0 0.0
    %522 = vmatpush1.msra.mxu0 0.0
    %523 = vmatprep.subr.mxu0 0.0
    %524 = vmatpush1.msra.mxu0 0.0
    %525 = vmatprep.mubr.f32.mxu0 0.0
    %526 = vmatmul.mubr.f32.gmra.mrb[0].mxu0 %v204
    %v527 = vpop.f32.mrb[0].mxu0
    %v528 = vadd.f32 0.0, %v527
    %v529 = vpop.f32.mrb[0].mxu0
    %530 = vmatprep.mubr.f32.mxu0 0.0
    %531 = vmatmul.mubr.f32.gmra.mrb[0].mxu0 %v207
    %v532 = vpop.f32.mrb[0].mxu0
    %v533 = vadd.f32 0.0, %v532
    %v534 = vpop.f32.mrb[0].mxu0
    %535 = vmatprep.mubr.f32.mxu0 0.0
    %536 = vmatmul.mubr.f32.gmra.mrb[0].mxu0 %v210
    %v537 = vpop.f32.mrb[0].mxu0
    %v538 = vadd.f32 0.0, %v537
    %v539 = vpop.f32.mrb[0].mxu0
    %540 = vdwg.mxu0
    %v541 = vadd.f32 %v528, %v301
    %s542 = scalar_lea.vmem [#allocation2], 8
    %543 = vst.msk [vmem:[%s542] sm:$0xff] %vm293, %v541
    %s544 = scalar_lea.vmem %s5, 16
    %545 = vst.msk [vmem:[%s544] sm:$0xff] %vm293, %v533
    %546 = vst.msk [vmem:[%s544 + $0x8] sm:$0xff] %vm293, %v538
    %s547 = scalar_lea.vmem %s0, 16
    %v548 = vld [vmem:[%s547] sm:$0xff]
    %550 = vrot.lane.b32.xlu0 %v548, 127
    %v551 = vpop.permute.xlu0 %550
    %553 = vmatprep.subr.mxu0 0.0
    %554 = vmatpush1.msra.mxu0 %v551
    %555 = vmatprep.subr.mxu0 0.0
    %556 = vmatpush1.msra.mxu0 0.0
    %557 = vmatprep.subr.mxu0 0.0
    %558 = vmatpush1.msra.mxu0 0.0
    %559 = vmatprep.subr.mxu0 0.0
    %560 = vmatpush1.msra.mxu0 0.0
    %561 = vmatprep.subr.mxu0 0.0
    %562 = vmatpush1.msra.mxu0 0.0
    %563 = vmatprep.subr.mxu0 0.0
    %564 = vmatpush1.msra.mxu0 0.0
    %565 = vmatprep.subr.mxu0 0.0
    %566 = vmatpush1.msra.mxu0 0.0
    %567 = vmatprep.subr.mxu0 0.0
    %568 = vmatpush1.msra.mxu0 0.0
    %569 = vmatprep.subr.mxu0 0.0
    %570 = vmatpush1.msra.mxu0 0.0
    %571 = vmatprep.subr.mxu0 0.0
    %572 = vmatpush1.msra.mxu0 0.0
    %573 = vmatprep.subr.mxu0 0.0
    %574 = vmatpush1.msra.mxu0 0.0
    %575 = vmatprep.subr.mxu0 0.0
    %576 = vmatpush1.msra.mxu0 0.0
    %577 = vmatprep.subr.mxu0 0.0
    %578 = vmatpush1.msra.mxu0 0.0
    %579 = vmatprep.subr.mxu0 0.0
    %580 = vmatpush1.msra.mxu0 0.0
    %581 = vmatprep.subr.mxu0 0.0
    %582 = vmatpush1.msra.mxu0 0.0
    %583 = vmatprep.subr.mxu0 0.0
    %584 = vmatpush1.msra.mxu0 0.0
    %585 = vmatprep.subr.mxu0 0.0
    %586 = vmatpush1.msra.mxu0 0.0
    %587 = vmatprep.subr.mxu0 0.0
    %588 = vmatpush1.msra.mxu0 0.0
    %589 = vmatprep.subr.mxu0 0.0
    %590 = vmatpush1.msra.mxu0 0.0
    %591 = vmatprep.subr.mxu0 0.0
    %592 = vmatpush1.msra.mxu0 0.0
    %593 = vmatprep.subr.mxu0 0.0
    %594 = vmatpush1.msra.mxu0 0.0
    %595 = vmatprep.subr.mxu0 0.0
    %596 = vmatpush1.msra.mxu0 0.0
    %597 = vmatprep.subr.mxu0 0.0
    %598 = vmatpush1.msra.mxu0 0.0
    %599 = vmatprep.subr.mxu0 0.0
    %600 = vmatpush1.msra.mxu0 0.0
    %601 = vmatprep.subr.mxu0 0.0
    %602 = vmatpush1.msra.mxu0 0.0
    %603 = vmatprep.subr.mxu0 0.0
    %604 = vmatpush1.msra.mxu0 0.0
    %605 = vmatprep.subr.mxu0 0.0
    %606 = vmatpush1.msra.mxu0 0.0
    %607 = vmatprep.subr.mxu0 0.0
    %608 = vmatpush1.msra.mxu0 0.0
    %609 = vmatprep.subr.mxu0 0.0
    %610 = vmatpush1.msra.mxu0 0.0
    %611 = vmatprep.subr.mxu0 0.0
    %612 = vmatpush1.msra.mxu0 0.0
    %613 = vmatprep.subr.mxu0 0.0
    %614 = vmatpush1.msra.mxu0 0.0
    %615 = vmatprep.subr.mxu0 0.0
    %616 = vmatpush1.msra.mxu0 0.0
    %617 = vmatprep.mubr.f32.mxu0 0.0
    %618 = vmatmul.mubr.f32.gmra.mrb[0].mxu0 %v34
    %v619 = vpop.f32.mrb[0].mxu0
    %v620 = vadd.f32 0.0, %v619
    %v621 = vpop.f32.mrb[0].mxu0
    %622 = vmatprep.mubr.f32.mxu0 0.0
    %623 = vmatmul.mubr.f32.gmra.mrb[0].mxu0 %v37
    %v624 = vpop.f32.mrb[0].mxu0
    %v625 = vadd.f32 0.0, %v624
    %v626 = vpop.f32.mrb[0].mxu0
    %627 = vdwg.mxu0
    %628 = vmatprep.subr.mxu0 0.0
    %629 = vmatpush1.msra.mxu0 %v548
    %630 = vmatprep.subr.mxu0 0.0
    %631 = vmatpush1.msra.mxu0 0.0
    %632 = vmatprep.subr.mxu0 0.0
    %633 = vmatpush1.msra.mxu0 0.0
    %634 = vmatprep.subr.mxu0 0.0
    %635 = vmatpush1.msra.mxu0 0.0
    %636 = vmatprep.subr.mxu0 0.0
    %637 = vmatpush1.msra.mxu0 0.0
    %638 = vmatprep.subr.mxu0 0.0
    %639 = vmatpush1.msra.mxu0 0.0
    %640 = vmatprep.subr.mxu0 0.0
    %641 = vmatpush1.msra.mxu0 0.0
    %642 = vmatprep.subr.mxu0 0.0
    %643 = vmatpush1.msra.mxu0 0.0
    %644 = vmatprep.subr.mxu0 0.0
    %645 = vmatpush1.msra.mxu0 0.0
    %646 = vmatprep.subr.mxu0 0.0
    %647 = vmatpush1.msra.mxu0 0.0
    %648 = vmatprep.subr.mxu0 0.0
    %649 = vmatpush1.msra.mxu0 0.0
    %650 = vmatprep.subr.mxu0 0.0
    %651 = vmatpush1.msra.mxu0 0.0
    %652 = vmatprep.subr.mxu0 0.0
    %653 = vmatpush1.msra.mxu0 0.0
    %654 = vmatprep.subr.mxu0 0.0
    %655 = vmatpush1.msra.mxu0 0.0
    %656 = vmatprep.subr.mxu0 0.0
    %657 = vmatpush1.msra.mxu0 0.0
    %658 = vmatprep.subr.mxu0 0.0
    %659 = vmatpush1.msra.mxu0 0.0
    %660 = vmatprep.subr.mxu0 0.0
    %661 = vmatpush1.msra.mxu0 0.0
    %662 = vmatprep.subr.mxu0 0.0
    %663 = vmatpush1.msra.mxu0 0.0
    %664 = vmatprep.subr.mxu0 0.0
    %665 = vmatpush1.msra.mxu0 0.0
    %666 = vmatprep.subr.mxu0 0.0
    %667 = vmatpush1.msra.mxu0 0.0
    %668 = vmatprep.subr.mxu0 0.0
    %669 = vmatpush1.msra.mxu0 0.0
    %670 = vmatprep.subr.mxu0 0.0
    %671 = vmatpush1.msra.mxu0 0.0
    %672 = vmatprep.subr.mxu0 0.0
    %673 = vmatpush1.msra.mxu0 0.0
    %674 = vmatprep.subr.mxu0 0.0
    %675 = vmatpush1.msra.mxu0 0.0
    %676 = vmatprep.subr.mxu0 0.0
    %677 = vmatpush1.msra.mxu0 0.0
    %678 = vmatprep.subr.mxu0 0.0
    %679 = vmatpush1.msra.mxu0 0.0
    %680 = vmatprep.subr.mxu0 0.0
    %681 = vmatpush1.msra.mxu0 0.0
    %682 = vmatprep.subr.mxu0 0.0
    %683 = vmatpush1.msra.mxu0 0.0
    %684 = vmatprep.subr.mxu0 0.0
    %685 = vmatpush1.msra.mxu0 0.0
    %686 = vmatprep.subr.mxu0 0.0
    %687 = vmatpush1.msra.mxu0 0.0
    %688 = vmatprep.subr.mxu0 0.0
    %689 = vmatpush1.msra.mxu0 0.0
    %690 = vmatprep.subr.mxu0 0.0
    %691 = vmatpush1.msra.mxu0 0.0
    %692 = vmatprep.mubr.f32.mxu0 0.0
    %693 = vmatmul.mubr.f32.gmra.mrb[0].mxu0 %v115
    %v694 = vpop.f32.mrb[0].mxu0
    %v695 = vadd.f32 %v620, %v694
    %v696 = vpop.f32.mrb[0].mxu0
    %697 = vmatprep.mubr.f32.mxu0 0.0
    %698 = vmatmul.mubr.f32.gmra.mrb[0].mxu0 %v118
    %v699 = vpop.f32.mrb[0].mxu0
    %v700 = vadd.f32 %v625, %v699
    %v701 = vpop.f32.mrb[0].mxu0
    %702 = vdwg.mxu0
    %v703 = vtanh.pop %v695
    %v704 = vxor.u32 %v700, 2147483648
    %v705 = vmul.f32 %v704, 1.442695
    %v706 = vpow.pop %v705
    %v707 = vadd.f32 %v706, 1.0
    %v708 = vrcp.pop %v707
    %v709 = vmul.f32 1.0, %v708
    %v710 = vmul.f32 %v703, %v709
    %711 = vmatprep.subr.mxu0 0.0
    %712 = vmatpush1.msra.mxu0 %v710
    %713 = vmatprep.subr.mxu0 0.0
    %714 = vmatpush1.msra.mxu0 0.0
    %715 = vmatprep.subr.mxu0 0.0
    %716 = vmatpush1.msra.mxu0 0.0
    %717 = vmatprep.subr.mxu0 0.0
    %718 = vmatpush1.msra.mxu0 0.0
    %719 = vmatprep.subr.mxu0 0.0
    %720 = vmatpush1.msra.mxu0 0.0
    %721 = vmatprep.subr.mxu0 0.0
    %722 = vmatpush1.msra.mxu0 0.0
    %723 = vmatprep.subr.mxu0 0.0
    %724 = vmatpush1.msra.mxu0 0.0
    %725 = vmatprep.subr.mxu0 0.0
    %726 = vmatpush1.msra.mxu0 0.0
    %727 = vmatprep.subr.mxu0 0.0
    %728 = vmatpush1.msra.mxu0 0.0
    %729 = vmatprep.subr.mxu0 0.0
    %730 = vmatpush1.msra.mxu0 0.0
    %731 = vmatprep.subr.mxu0 0.0
    %732 = vmatpush1.msra.mxu0 0.0
    %733 = vmatprep.subr.mxu0 0.0
    %734 = vmatpush1.msra.mxu0 0.0
    %735 = vmatprep.subr.mxu0 0.0
    %736 = vmatpush1.msra.mxu0 0.0
    %737 = vmatprep.subr.mxu0 0.0
    %738 = vmatpush1.msra.mxu0 0.0
    %739 = vmatprep.subr.mxu0 0.0
    %740 = vmatpush1.msra.mxu0 0.0
    %741 = vmatprep.subr.mxu0 0.0
    %742 = vmatpush1.msra.mxu0 0.0
    %743 = vmatprep.subr.mxu0 0.0
    %744 = vmatpush1.msra.mxu0 0.0
    %745 = vmatprep.subr.mxu0 0.0
    %746 = vmatpush1.msra.mxu0 0.0
    %747 = vmatprep.subr.mxu0 0.0
    %748 = vmatpush1.msra.mxu0 0.0
    %749 = vmatprep.subr.mxu0 0.0
    %750 = vmatpush1.msra.mxu0 0.0
    %751 = vmatprep.subr.mxu0 0.0
    %752 = vmatpush1.msra.mxu0 0.0
    %753 = vmatprep.subr.mxu0 0.0
    %754 = vmatpush1.msra.mxu0 0.0
    %755 = vmatprep.subr.mxu0 0.0
    %756 = vmatpush1.msra.mxu0 0.0
    %757 = vmatprep.subr.mxu0 0.0
    %758 = vmatpush1.msra.mxu0 0.0
    %759 = vmatprep.subr.mxu0 0.0
    %760 = vmatpush1.msra.mxu0 0.0
    %761 = vmatprep.subr.mxu0 0.0
    %762 = vmatpush1.msra.mxu0 0.0
    %763 = vmatprep.subr.mxu0 0.0
    %764 = vmatpush1.msra.mxu0 0.0
    %765 = vmatprep.subr.mxu0 0.0
    %766 = vmatpush1.msra.mxu0 0.0
    %767 = vmatprep.subr.mxu0 0.0
    %768 = vmatpush1.msra.mxu0 0.0
    %769 = vmatprep.subr.mxu0 0.0
    %770 = vmatpush1.msra.mxu0 0.0
    %771 = vmatprep.subr.mxu0 0.0
    %772 = vmatpush1.msra.mxu0 0.0
    %773 = vmatprep.subr.mxu0 0.0
    %774 = vmatpush1.msra.mxu0 0.0
    %775 = vmatprep.mubr.f32.mxu0 0.0
    %776 = vmatmul.mubr.f32.gmra.mrb[0].mxu0 %v204
    %v777 = vpop.f32.mrb[0].mxu0
    %v778 = vadd.f32 0.0, %v777
    %v779 = vpop.f32.mrb[0].mxu0
    %780 = vmatprep.mubr.f32.mxu0 0.0
    %781 = vmatmul.mubr.f32.gmra.mrb[0].mxu0 %v207
    %v782 = vpop.f32.mrb[0].mxu0
    %v783 = vadd.f32 0.0, %v782
    %v784 = vpop.f32.mrb[0].mxu0
    %785 = vmatprep.mubr.f32.mxu0 0.0
    %786 = vmatmul.mubr.f32.gmra.mrb[0].mxu0 %v210
    %v787 = vpop.f32.mrb[0].mxu0
    %v788 = vadd.f32 0.0, %v787
    %v789 = vpop.f32.mrb[0].mxu0
    %790 = vdwg.mxu0
    %v791 = vadd.f32 %v778, %v551
    %s792 = scalar_lea.vmem [#allocation2], 16
    %793 = vst.msk [vmem:[%s792] sm:$0xff] %vm293, %v791
    %s794 = scalar_lea.vmem %s5, 32
    %795 = vst.msk [vmem:[%s794] sm:$0xff] %vm293, %v783
    %796 = vst.msk [vmem:[%s794 + $0x8] sm:$0xff] %vm293, %v788
    %s797 = scalar_lea.vmem %s0, 24
    %v798 = vld [vmem:[%s797] sm:$0xff]
    %800 = vrot.lane.b32.xlu0 %v798, 127
    %v801 = vpop.permute.xlu0 %800
    %803 = vmatprep.subr.mxu0 0.0
    %804 = vmatpush1.msra.mxu0 %v801
    %805 = vmatprep.subr.mxu0 0.0
    %806 = vmatpush1.msra.mxu0 0.0
    %807 = vmatprep.subr.mxu0 0.0
    %808 = vmatpush1.msra.mxu0 0.0
    %809 = vmatprep.subr.mxu0 0.0
    %810 = vmatpush1.msra.mxu0 0.0
    %811 = vmatprep.subr.mxu0 0.0
    %812 = vmatpush1.msra.mxu0 0.0
    %813 = vmatprep.subr.mxu0 0.0
    %814 = vmatpush1.msra.mxu0 0.0
    %815 = vmatprep.subr.mxu0 0.0
    %816 = vmatpush1.msra.mxu0 0.0
    %817 = vmatprep.subr.mxu0 0.0
    %818 = vmatpush1.msra.mxu0 0.0
    %819 = vmatprep.subr.mxu0 0.0
    %820 = vmatpush1.msra.mxu0 0.0
    %821 = vmatprep.subr.mxu0 0.0
    %822 = vmatpush1.msra.mxu0 0.0
    %823 = vmatprep.subr.mxu0 0.0
    %824 = vmatpush1.msra.mxu0 0.0
    %825 = vmatprep.subr.mxu0 0.0
    %826 = vmatpush1.msra.mxu0 0.0
    %827 = vmatprep.subr.mxu0 0.0
    %828 = vmatpush1.msra.mxu0 0.0
    %829 = vmatprep.subr.mxu0 0.0
    %830 = vmatpush1.msra.mxu0 0.0
    %831 = vmatprep.subr.mxu0 0.0
    %832 = vmatpush1.msra.mxu0 0.0
    %833 = vmatprep.subr.mxu0 0.0
    %834 = vmatpush1.msra.mxu0 0.0
    %835 = vmatprep.subr.mxu0 0.0
    %836 = vmatpush1.msra.mxu0 0.0
    %837 = vmatprep.subr.mxu0 0.0
    %838 = vmatpush1.msra.mxu0 0.0
    %839 = vmatprep.subr.mxu0 0.0
    %840 = vmatpush1.msra.mxu0 0.0
    %841 = vmatprep.subr.mxu0 0.0
    %842 = vmatpush1.msra.mxu0 0.0
    %843 = vmatprep.subr.mxu0 0.0
    %844 = vmatpush1.msra.mxu0 0.0
    %845 = vmatprep.subr.mxu0 0.0
    %846 = vmatpush1.msra.mxu0 0.0
    %847 = vmatprep.subr.mxu0 0.0
    %848 = vmatpush1.msra.mxu0 0.0
    %849 = vmatprep.subr.mxu0 0.0
    %850 = vmatpush1.msra.mxu0 0.0
    %851 = vmatprep.subr.mxu0 0.0
    %852 = vmatpush1.msra.mxu0 0.0
    %853 = vmatprep.subr.mxu0 0.0
    %854 = vmatpush1.msra.mxu0 0.0
    %855 = vmatprep.subr.mxu0 0.0
    %856 = vmatpush1.msra.mxu0 0.0
    %857 = vmatprep.subr.mxu0 0.0
    %858 = vmatpush1.msra.mxu0 0.0
    %859 = vmatprep.subr.mxu0 0.0
    %860 = vmatpush1.msra.mxu0 0.0
    %861 = vmatprep.subr.mxu0 0.0
    %862 = vmatpush1.msra.mxu0 0.0
    %863 = vmatprep.subr.mxu0 0.0
    %864 = vmatpush1.msra.mxu0 0.0
    %865 = vmatprep.subr.mxu0 0.0
    %866 = vmatpush1.msra.mxu0 0.0
    %867 = vmatprep.mubr.f32.mxu0 0.0
    %868 = vmatmul.mubr.f32.gmra.mrb[0].mxu0 %v34
    %v869 = vpop.f32.mrb[0].mxu0
    %v870 = vadd.f32 0.0, %v869
    %v871 = vpop.f32.mrb[0].mxu0
    %872 = vmatprep.mubr.f32.mxu0 0.0
    %873 = vmatmul.mubr.f32.gmra.mrb[0].mxu0 %v37
    %v874 = vpop.f32.mrb[0].mxu0
    %v875 = vadd.f32 0.0, %v874
    %v876 = vpop.f32.mrb[0].mxu0
    %877 = vdwg.mxu0
    %878 = vmatprep.subr.mxu0 0.0
    %879 = vmatpush1.msra.mxu0 %v798
    %880 = vmatprep.subr.mxu0 0.0
    %881 = vmatpush1.msra.mxu0 0.0
    %882 = vmatprep.subr.mxu0 0.0
    %883 = vmatpush1.msra.mxu0 0.0
    %884 = vmatprep.subr.mxu0 0.0
    %885 = vmatpush1.msra.mxu0 0.0
    %886 = vmatprep.subr.mxu0 0.0
    %887 = vmatpush1.msra.mxu0 0.0
    %888 = vmatprep.subr.mxu0 0.0
    %889 = vmatpush1.msra.mxu0 0.0
    %890 = vmatprep.subr.mxu0 0.0
    %891 = vmatpush1.msra.mxu0 0.0
    %892 = vmatprep.subr.mxu0 0.0
    %893 = vmatpush1.msra.mxu0 0.0
    %894 = vmatprep.subr.mxu0 0.0
    %895 = vmatpush1.msra.mxu0 0.0
    %896 = vmatprep.subr.mxu0 0.0
    %897 = vmatpush1.msra.mxu0 0.0
    %898 = vmatprep.subr.mxu0 0.0
    %899 = vmatpush1.msra.mxu0 0.0
    %900 = vmatprep.subr.mxu0 0.0
    %901 = vmatpush1.msra.mxu0 0.0
    %902 = vmatprep.subr.mxu0 0.0
    %903 = vmatpush1.msra.mxu0 0.0
    %904 = vmatprep.subr.mxu0 0.0
    %905 = vmatpush1.msra.mxu0 0.0
    %906 = vmatprep.subr.mxu0 0.0
    %907 = vmatpush1.msra.mxu0 0.0
    %908 = vmatprep.subr.mxu0 0.0
    %909 = vmatpush1.msra.mxu0 0.0
    %910 = vmatprep.subr.mxu0 0.0
    %911 = vmatpush1.msra.mxu0 0.0
    %912 = vmatprep.subr.mxu0 0.0
    %913 = vmatpush1.msra.mxu0 0.0
    %914 = vmatprep.subr.mxu0 0.0
    %915 = vmatpush1.msra.mxu0 0.0
    %916 = vmatprep.subr.mxu0 0.0
    %917 = vmatpush1.msra.mxu0 0.0
    %918 = vmatprep.subr.mxu0 0.0
    %919 = vmatpush1.msra.mxu0 0.0
    %920 = vmatprep.subr.mxu0 0.0
    %921 = vmatpush1.msra.mxu0 0.0
    %922 = vmatprep.subr.mxu0 0.0
    %923 = vmatpush1.msra.mxu0 0.0
    %924 = vmatprep.subr.mxu0 0.0
    %925 = vmatpush1.msra.mxu0 0.0
    %926 = vmatprep.subr.mxu0 0.0
    %927 = vmatpush1.msra.mxu0 0.0
    %928 = vmatprep.subr.mxu0 0.0
    %929 = vmatpush1.msra.mxu0 0.0
    %930 = vmatprep.subr.mxu0 0.0
    %931 = vmatpush1.msra.mxu0 0.0
    %932 = vmatprep.subr.mxu0 0.0
    %933 = vmatpush1.msra.mxu0 0.0
    %934 = vmatprep.subr.mxu0 0.0
    %935 = vmatpush1.msra.mxu0 0.0
    %936 = vmatprep.subr.mxu0 0.0
    %937 = vmatpush1.msra.mxu0 0.0
    %938 = vmatprep.subr.mxu0 0.0
    %939 = vmatpush1.msra.mxu0 0.0
    %940 = vmatprep.subr.mxu0 0.0
    %941 = vmatpush1.msra.mxu0 0.0
    %942 = vmatprep.mubr.f32.mxu0 0.0
    %943 = vmatmul.mubr.f32.gmra.mrb[0].mxu0 %v115
    %v944 = vpop.f32.mrb[0].mxu0
    %v945 = vadd.f32 %v870, %v944
    %v946 = vpop.f32.mrb[0].mxu0
    %947 = vmatprep.mubr.f32.mxu0 0.0
    %948 = vmatmul.mubr.f32.gmra.mrb[0].mxu0 %v118
    %v949 = vpop.f32.mrb[0].mxu0
    %v950 = vadd.f32 %v875, %v949
    %v951 = vpop.f32.mrb[0].mxu0
    %952 = vdwg.mxu0
    %v953 = vtanh.pop %v945
    %v954 = vxor.u32 %v950, 2147483648
    %v955 = vmul.f32 %v954, 1.442695
    %v956 = vpow.pop %v955
    %v957 = vadd.f32 %v956, 1.0
    %v958 = vrcp.pop %v957
    %v959 = vmul.f32 1.0, %v958
    %v960 = vmul.f32 %v953, %v959
    %961 = vmatprep.subr.mxu0 0.0
    %962 = vmatpush1.msra.mxu0 %v960
    %963 = vmatprep.subr.mxu0 0.0
    %964 = vmatpush1.msra.mxu0 0.0
    %965 = vmatprep.subr.mxu0 0.0
    %966 = vmatpush1.msra.mxu0 0.0
    %967 = vmatprep.subr.mxu0 0.0
    %968 = vmatpush1.msra.mxu0 0.0
    %969 = vmatprep.subr.mxu0 0.0
    %970 = vmatpush1.msra.mxu0 0.0
    %971 = vmatprep.subr.mxu0 0.0
    %972 = vmatpush1.msra.mxu0 0.0
    %973 = vmatprep.subr.mxu0 0.0
    %974 = vmatpush1.msra.mxu0 0.0
    %975 = vmatprep.subr.mxu0 0.0
    %976 = vmatpush1.msra.mxu0 0.0
    %977 = vmatprep.subr.mxu0 0.0
    %978 = vmatpush1.msra.mxu0 0.0
    %979 = vmatprep.subr.mxu0 0.0
    %980 = vmatpush1.msra.mxu0 0.0
    %981 = vmatprep.subr.mxu0 0.0
    %982 = vmatpush1.msra.mxu0 0.0
    %983 = vmatprep.subr.mxu0 0.0
    %984 = vmatpush1.msra.mxu0 0.0
    %985 = vmatprep.subr.mxu0 0.0
    %986 = vmatpush1.msra.mxu0 0.0
    %987 = vmatprep.subr.mxu0 0.0
    %988 = vmatpush1.msra.mxu0 0.0
    %989 = vmatprep.subr.mxu0 0.0
    %990 = vmatpush1.msra.mxu0 0.0
    %991 = vmatprep.subr.mxu0 0.0
    %992 = vmatpush1.msra.mxu0 0.0
    %993 = vmatprep.subr.mxu0 0.0
    %994 = vmatpush1.msra.mxu0 0.0
    %995 = vmatprep.subr.mxu0 0.0
    %996 = vmatpush1.msra.mxu0 0.0
    %997 = vmatprep.subr.mxu0 0.0
    %998 = vmatpush1.msra.mxu0 0.0
    %999 = vmatprep.subr.mxu0 0.0
    %1000 = vmatpush1.msra.mxu0 0.0
    %1001 = vmatprep.subr.mxu0 0.0
    %1002 = vmatpush1.msra.mxu0 0.0
    %1003 = vmatprep.subr.mxu0 0.0
    %1004 = vmatpush1.msra.mxu0 0.0
    %1005 = vmatprep.subr.mxu0 0.0
    %1006 = vmatpush1.msra.mxu0 0.0
    %1007 = vmatprep.subr.mxu0 0.0
    %1008 = vmatpush1.msra.mxu0 0.0
    %1009 = vmatprep.subr.mxu0 0.0
    %1010 = vmatpush1.msra.mxu0 0.0
    %1011 = vmatprep.subr.mxu0 0.0
    %1012 = vmatpush1.msra.mxu0 0.0
    %1013 = vmatprep.subr.mxu0 0.0
    %1014 = vmatpush1.msra.mxu0 0.0
    %1015 = vmatprep.subr.mxu0 0.0
    %1016 = vmatpush1.msra.mxu0 0.0
    %1017 = vmatprep.subr.mxu0 0.0
    %1018 = vmatpush1.msra.mxu0 0.0
    %1019 = vmatprep.subr.mxu0 0.0
    %1020 = vmatpush1.msra.mxu0 0.0
    %1021 = vmatprep.subr.mxu0 0.0
    %1022 = vmatpush1.msra.mxu0 0.0
    %1023 = vmatprep.subr.mxu0 0.0
    %1024 = vmatpush1.msra.mxu0 0.0
    %1025 = vmatprep.mubr.f32.mxu0 0.0
    %1026 = vmatmul.mubr.f32.gmra.mrb[0].mxu0 %v204
    %v1027 = vpop.f32.mrb[0].mxu0
    %v1028 = vadd.f32 0.0, %v1027
    %v1029 = vpop.f32.mrb[0].mxu0
    %1030 = vmatprep.mubr.f32.mxu0 0.0
    %1031 = vmatmul.mubr.f32.gmra.mrb[0].mxu0 %v207
    %v1032 = vpop.f32.mrb[0].mxu0
    %v1033 = vadd.f32 0.0, %v1032
    %v1034 = vpop.f32.mrb[0].mxu0
    %1035 = vmatprep.mubr.f32.mxu0 0.0
    %1036 = vmatmul.mubr.f32.gmra.mrb[0].mxu0 %v210
    %v1037 = vpop.f32.mrb[0].mxu0
    %v1038 = vadd.f32 0.0, %v1037
    %v1039 = vpop.f32.mrb[0].mxu0
    %1040 = vdwg.mxu0
    %v1041 = vadd.f32 %v1028, %v801
    %s1042 = scalar_lea.vmem [#allocation2], 24
    %1043 = vst.msk [vmem:[%s1042] sm:$0xff] %vm293, %v1041
    %s1044 = scalar_lea.vmem %s5, 48
    %1045 = vst.msk [vmem:[%s1044] sm:$0xff] %vm293, %v1033
    %1046 = vst.msk [vmem:[%s1044 + $0x8] sm:$0xff] %vm293, %v1038
    // Predicated region
    $region18: #{_lambda_.8} parent=1 // pred_check
      _
    $region19: #{_lambda_.8} parent=1 // pred_check_branch
      %1048 = sbr.rel (0) target = $region21
    $region20: #{_lambda_.8} parent=1 // pred_region
      %s1050 = ssub.s32 512, 512
      %1051 = vsyncadd [#allocation3], %s1050
      %s1052 = sshll.u32 [#allocation2], 4
      %s1053 = int_to_ptr.vmem [resolvable:$true] %s1052
      %1058 = dma.vmem_to_hbm [thread:$0]  %s1053, 512, %s4, [#allocation3], 128, 128, 8
    $region21: #{_lambda_.8} parent=1 // pred_fallthru
      _
    // Predicated region
    $region22: #{_lambda_.8} parent=1 // pred_check
      _
    $region23: #{_lambda_.8} parent=1 // pred_check_branch
      %1060 = sbr.rel (0) target = $region25
    $region24: #{_lambda_.8} parent=1 // pred_region
      _
    $region25: #{_lambda_.8} parent=1 // pred_fallthru
      _
    // Predicated region
    $region26: #{_lambda_.8} parent=1 // pred_check
      _
    $region27: #{_lambda_.8} parent=1 // pred_check_branch
      %1062 = sbr.rel (0) target = $region29
    $region28: #{_lambda_.8} parent=1 // pred_region
      %1063 = dma.done [#allocation3], 512
    $region29: #{_lambda_.8} parent=1 // pred_fallthru
      _
    // Predicated region
    $region30: #{_lambda_.8} parent=1 // pred_check
      _
    $region31: #{_lambda_.8} parent=1 // pred_check_branch
      %1065 = sbr.rel (0) target = $region33
    $region32: #{_lambda_.8} parent=1 // pred_region
      _
    $region33: #{_lambda_.8} parent=1 // pred_fallthru
      _
    %1066 = vsyncpa [#allocation3], 1

// kernel: _lambda_.9
$region0: #{_lambda_.9}
  #allocation0 [shape = 'u32[]', space=smem, size = 0x4, offset = 0x4, fixed_abs, tag = 'smem constant byte address 0x4 - core index']
  #allocation1 [shape = 'u32[144,128]{1,0:T(1,128)}', space=vmem, size = 0x12000, scoped, tag = 'internal scratch']
  %s0 = inlined_call_operand.vmem [shape: f32[2,16,4], index: 0, kind: input, shape index: {}]
  %s1 = inlined_call_operand.vmem [shape: f32[16,16], index: 1, kind: input, shape index: {}]
  %s2 = inlined_call_operand.vmem [shape: f32[16,1], index: 2, kind: input, shape index: {}]
  %s3 = inlined_call_operand.vmem [shape: f32[8,16], index: 3, kind: input, shape index: {}]
  %s4 = inlined_call_operand.vmem [shape: f32[8,1], index: 4, kind: input, shape index: {}]
  %s5 = inlined_call_operand.hbm [shape: f32[2,8,4], index: 5, kind: output, shape index: {}]
  %s6 = sld [smem:[#allocation0]]
  $region30: #{_lambda_.9} parent=0
    _
  %s8 = ssub.s32 1, %s6
  %s9 = scalar_select 0, %s8, %s6
  $region1: #{_lambda_.9} parent=0
    #allocation2 [shape = 'u8[8192]{0}', space=vmem, size = 0x2000, scoped, tag = 'output window, operand 0, single buffered']
    #allocation3 [shape = 's32[1]{0}', space=sflag, size = 0x4, scoped, tag = 'scoped memory for _lambda_.9']
    %10 = vsyncpa [#allocation3], 0
    // Predicated region
    $region2: #{_lambda_.9} parent=1 // pred_check
      _
    $region3: #{_lambda_.9} parent=1 // pred_check_branch
      %12 = sbr.rel (0) target = $region5
    $region4: #{_lambda_.9} parent=1 // pred_region
      _
    $region5: #{_lambda_.9} parent=1 // pred_fallthru
      _
    // Predicated region
    $region6: #{_lambda_.9} parent=1 // pred_check
      _
    $region7: #{_lambda_.9} parent=1 // pred_check_branch
      %14 = sbr.rel (0) target = $region9
    $region8: #{_lambda_.9} parent=1 // pred_region
      _
    $region9: #{_lambda_.9} parent=1 // pred_fallthru
      _
    // Predicated region
    $region10: #{_lambda_.9} parent=1 // pred_check
      _
    $region11: #{_lambda_.9} parent=1 // pred_check_branch
      %16 = sbr.rel (0) target = $region13
    $region12: #{_lambda_.9} parent=1 // pred_region
      _
    $region13: #{_lambda_.9} parent=1 // pred_fallthru
      _
    // Predicated region
    $region14: #{_lambda_.9} parent=1 // pred_check
      _
    $region15: #{_lambda_.9} parent=1 // pred_check_branch
      %18 = sbr.rel (0) target = $region17
    $region16: #{_lambda_.9} parent=1 // pred_region
      _
    $region17: #{_lambda_.9} parent=1 // pred_fallthru
      _
    // Predicated region
    $region18: #{_lambda_.9} parent=1 // pred_check
      _
    $region19: #{_lambda_.9} parent=1 // pred_check_branch
      %20 = sbr.rel (0) target = $region21
    $region20: #{_lambda_.9} parent=1 // pred_region
      _
    $region21: #{_lambda_.9} parent=1 // pred_fallthru
      _
    %v21 = vld [vmem:[%s1] sm:$0xff]
    %v22 = vld [vmem:[%s1 + $0x8] sm:$0xff]
    %v23 = vld [vmem:[%s2] sm:$0xff]
    %v24 = vld [vmem:[%s2 + $0x8] sm:$0xff]
    %v25 = vld [vmem:[%s3] sm:$0xff]
    %v26 = vld [vmem:[%s4] sm:$0xff]
    %v27 = vld [vmem:[%s0] sm:$0xff]
    %v28 = vld [vmem:[%s0 + $0x8] sm:$0xff]
    %v29 = vmax.f32 %v27, 0.0
    %v30 = vmax.f32 %v28, 0.0
    %32 = vset.pattern.permute.xlu0 0
    %33 = vperm.xlu0 %32, %v23
    %v34 = vpop.permute.xlu0 %33
    %37 = vset.pattern.permute.xlu0 0
    %38 = vperm.xlu0 %37, %v24
    %v39 = vpop.permute.xlu0 %38
    %vm41 = vcmask 130048
    %v43 = vsel %vm41, %v21, 0
    %v46 = vsel %vm41, %v22, 0
    %48 = vmatprep.subr.mxu0 0.0
    %49 = vmatpush1.msra.mxu0 %v29
    %50 = vmatprep.subr.mxu0 0.0
    %51 = vmatpush1.msra.mxu0 %v30
    %52 = vmatprep.subr.mxu0 0.0
    %53 = vmatpush1.msra.mxu0 0.0
    %54 = vmatprep.subr.mxu0 0.0
    %55 = vmatpush1.msra.mxu0 0.0
    %56 = vmatprep.subr.mxu0 0.0
    %57 = vmatpush1.msra.mxu0 0.0
    %58 = vmatprep.subr.mxu0 0.0
    %59 = vmatpush1.msra.mxu0 0.0
    %60 = vmatprep.subr.mxu0 0.0
    %61 = vmatpush1.msra.mxu0 0.0
    %62 = vmatprep.subr.mxu0 0.0
    %63 = vmatpush1.msra.mxu0 0.0
    %64 = vmatprep.subr.mxu0 0.0
    %65 = vmatpush1.msra.mxu0 0.0
    %66 = vmatprep.subr.mxu0 0.0
    %67 = vmatpush1.msra.mxu0 0.0
    %68 = vmatprep.subr.mxu0 0.0
    %69 = vmatpush1.msra.mxu0 0.0
    %70 = vmatprep.subr.mxu0 0.0
    %71 = vmatpush1.msra.mxu0 0.0
    %72 = vmatprep.subr.mxu0 0.0
    %73 = vmatpush1.msra.mxu0 0.0
    %74 = vmatprep.subr.mxu0 0.0
    %75 = vmatpush1.msra.mxu0 0.0
    %76 = vmatprep.subr.mxu0 0.0
    %77 = vmatpush1.msra.mxu0 0.0
    %78 = vmatprep.subr.mxu0 0.0
    %79 = vmatpush1.msra.mxu0 0.0
    %80 = vmatprep.subr.mxu0 0.0
    %81 = vmatpush1.msra.mxu0 0.0
    %82 = vmatprep.subr.mxu0 0.0
    %83 = vmatpush1.msra.mxu0 0.0
    %84 = vmatprep.subr.mxu0 0.0
    %85 = vmatpush1.msra.mxu0 0.0
    %86 = vmatprep.subr.mxu0 0.0
    %87 = vmatpush1.msra.mxu0 0.0
    %88 = vmatprep.subr.mxu0 0.0
    %89 = vmatpush1.msra.mxu0 0.0
    %90 = vmatprep.subr.mxu0 0.0
    %91 = vmatpush1.msra.mxu0 0.0
    %92 = vmatprep.subr.mxu0 0.0
    %93 = vmatpush1.msra.mxu0 0.0
    %94 = vmatprep.subr.mxu0 0.0
    %95 = vmatpush1.msra.mxu0 0.0
    %96 = vmatprep.subr.mxu0 0.0
    %97 = vmatpush1.msra.mxu0 0.0
    %98 = vmatprep.subr.mxu0 0.0
    %99 = vmatpush1.msra.mxu0 0.0
    %100 = vmatprep.subr.mxu0 0.0
    %101 = vmatpush1.msra.mxu0 0.0
    %102 = vmatprep.subr.mxu0 0.0
    %103 = vmatpush1.msra.mxu0 0.0
    %104 = vmatprep.subr.mxu0 0.0
    %105 = vmatpush1.msra.mxu0 0.0
    %106 = vmatprep.subr.mxu0 0.0
    %107 = vmatpush1.msra.mxu0 0.0
    %108 = vmatprep.subr.mxu0 0.0
    %109 = vmatpush1.msra.mxu0 0.0
    %110 = vmatprep.subr.mxu0 0.0
    %111 = vmatpush1.msra.mxu0 0.0
    %112 = vmatprep.mubr.f32.mxu0 0.0
    %113 = vmatmul.mubr.f32.gmra.mrb[0].mxu0 %v43
    %v114 = vpop.f32.mrb[0].mxu0
    %v115 = vadd.f32 %v34, %v114
    %v116 = vpop.f32.mrb[0].mxu0
    %117 = vmatprep.mubr.f32.mxu0 0.0
    %118 = vmatmul.mubr.f32.gmra.mrb[0].mxu0 %v46
    %v119 = vpop.f32.mrb[0].mxu0
    %v120 = vadd.f32 %v39, %v119
    %v121 = vpop.f32.mrb[0].mxu0
    %122 = vdwg.mxu0
    %v123 = vmax.f32 %v115, 0.0
    %v124 = vmax.f32 %v120, 0.0
    %126 = vset.pattern.permute.xlu0 0
    %127 = vperm.xlu0 %126, %v26
    %v128 = vpop.permute.xlu0 %127
    %v131 = vsel %vm41, %v25, 0
    %133 = vmatprep.subr.mxu0 0.0
    %134 = vmatpush1.msra.mxu0 %v123
    %135 = vmatprep.subr.mxu0 0.0
    %136 = vmatpush1.msra.mxu0 %v124
    %137 = vmatprep.subr.mxu0 0.0
    %138 = vmatpush1.msra.mxu0 0.0
    %139 = vmatprep.subr.mxu0 0.0
    %140 = vmatpush1.msra.mxu0 0.0
    %141 = vmatprep.subr.mxu0 0.0
    %142 = vmatpush1.msra.mxu0 0.0
    %143 = vmatprep.subr.mxu0 0.0
    %144 = vmatpush1.msra.mxu0 0.0
    %145 = vmatprep.subr.mxu0 0.0
    %146 = vmatpush1.msra.mxu0 0.0
    %147 = vmatprep.subr.mxu0 0.0
    %148 = vmatpush1.msra.mxu0 0.0
    %149 = vmatprep.subr.mxu0 0.0
    %150 = vmatpush1.msra.mxu0 0.0
    %151 = vmatprep.subr.mxu0 0.0
    %152 = vmatpush1.msra.mxu0 0.0
    %153 = vmatprep.subr.mxu0 0.0
    %154 = vmatpush1.msra.mxu0 0.0
    %155 = vmatprep.subr.mxu0 0.0
    %156 = vmatpush1.msra.mxu0 0.0
    %157 = vmatprep.subr.mxu0 0.0
    %158 = vmatpush1.msra.mxu0 0.0
    %159 = vmatprep.subr.mxu0 0.0
    %160 = vmatpush1.msra.mxu0 0.0
    %161 = vmatprep.subr.mxu0 0.0
    %162 = vmatpush1.msra.mxu0 0.0
    %163 = vmatprep.subr.mxu0 0.0
    %164 = vmatpush1.msra.mxu0 0.0
    %165 = vmatprep.subr.mxu0 0.0
    %166 = vmatpush1.msra.mxu0 0.0
    %167 = vmatprep.subr.mxu0 0.0
    %168 = vmatpush1.msra.mxu0 0.0
    %169 = vmatprep.subr.mxu0 0.0
    %170 = vmatpush1.msra.mxu0 0.0
    %171 = vmatprep.subr.mxu0 0.0
    %172 = vmatpush1.msra.mxu0 0.0
    %173 = vmatprep.subr.mxu0 0.0
    %174 = vmatpush1.msra.mxu0 0.0
    %175 = vmatprep.subr.mxu0 0.0
    %176 = vmatpush1.msra.mxu0 0.0
    %177 = vmatprep.subr.mxu0 0.0
    %178 = vmatpush1.msra.mxu0 0.0
    %179 = vmatprep.subr.mxu0 0.0
    %180 = vmatpush1.msra.mxu0 0.0
    %181 = vmatprep.subr.mxu0 0.0
    %182 = vmatpush1.msra.mxu0 0.0
    %183 = vmatprep.subr.mxu0 0.0
    %184 = vmatpush1.msra.mxu0 0.0
    %185 = vmatprep.subr.mxu0 0.0
    %186 = vmatpush1.msra.mxu0 0.0
    %187 = vmatprep.subr.mxu0 0.0
    %188 = vmatpush1.msra.mxu0 0.0
    %189 = vmatprep.subr.mxu0 0.0
    %190 = vmatpush1.msra.mxu0 0.0
    %191 = vmatprep.subr.mxu0 0.0
    %192 = vmatpush1.msra.mxu0 0.0
    %193 = vmatprep.subr.mxu0 0.0
    %194 = vmatpush1.msra.mxu0 0.0
    %195 = vmatprep.subr.mxu0 0.0
    %196 = vmatpush1.msra.mxu0 0.0
    %197 = vmatprep.mubr.f32.mxu0 0.0
    %198 = vmatmul.mubr.f32.gmra.mrb[0].mxu0 %v131
    %v199 = vpop.f32.mrb[0].mxu0
    %v200 = vadd.f32 %v128, %v199
    %v201 = vpop.f32.mrb[0].mxu0
    %202 = vdwg.mxu0
    %vm203 = vcmask 31744
    %204 = vst.msk [vmem:[#allocation2] sm:$0xff] %vm203, %v200
    %s205 = scalar_lea.vmem %s0, 16
    %v206 = vld [vmem:[%s205] sm:$0xff]
    %v207 = vld [vmem:[%s205 + $0x8] sm:$0xff]
    %v208 = vmax.f32 %v206, 0.0
    %v209 = vmax.f32 %v207, 0.0
    %210 = vmatprep.subr.mxu0 0.0
    %211 = vmatpush1.msra.mxu0 %v208
    %212 = vmatprep.subr.mxu0 0.0
    %213 = vmatpush1.msra.mxu0 %v209
    %214 = vmatprep.subr.mxu0 0.0
    %215 = vmatpush1.msra.mxu0 0.0
    %216 = vmatprep.subr.mxu0 0.0
    %217 = vmatpush1.msra.mxu0 0.0
    %218 = vmatprep.subr.mxu0 0.0
    %219 = vmatpush1.msra.mxu0 0.0
    %220 = vmatprep.subr.mxu0 0.0
    %221 = vmatpush1.msra.mxu0 0.0
    %222 = vmatprep.subr.mxu0 0.0
    %223 = vmatpush1.msra.mxu0 0.0
    %224 = vmatprep.subr.mxu0 0.0
    %225 = vmatpush1.msra.mxu0 0.0
    %226 = vmatprep.subr.mxu0 0.0
    %227 = vmatpush1.msra.mxu0 0.0
    %228 = vmatprep.subr.mxu0 0.0
    %229 = vmatpush1.msra.mxu0 0.0
    %230 = vmatprep.subr.mxu0 0.0
    %231 = vmatpush1.msra.mxu0 0.0
    %232 = vmatprep.subr.mxu0 0.0
    %233 = vmatpush1.msra.mxu0 0.0
    %234 = vmatprep.subr.mxu0 0.0
    %235 = vmatpush1.msra.mxu0 0.0
    %236 = vmatprep.subr.mxu0 0.0
    %237 = vmatpush1.msra.mxu0 0.0
    %238 = vmatprep.subr.mxu0 0.0
    %239 = vmatpush1.msra.mxu0 0.0
    %240 = vmatprep.subr.mxu0 0.0
    %241 = vmatpush1.msra.mxu0 0.0
    %242 = vmatprep.subr.mxu0 0.0
    %243 = vmatpush1.msra.mxu0 0.0
    %244 = vmatprep.subr.mxu0 0.0
    %245 = vmatpush1.msra.mxu0 0.0
    %246 = vmatprep.subr.mxu0 0.0
    %247 = vmatpush1.msra.mxu0 0.0
    %248 = vmatprep.subr.mxu0 0.0
    %249 = vmatpush1.msra.mxu0 0.0
    %250 = vmatprep.subr.mxu0 0.0
    %251 = vmatpush1.msra.mxu0 0.0
    %252 = vmatprep.subr.mxu0 0.0
    %253 = vmatpush1.msra.mxu0 0.0
    %254 = vmatprep.subr.mxu0 0.0
    %255 = vmatpush1.msra.mxu0 0.0
    %256 = vmatprep.subr.mxu0 0.0
    %257 = vmatpush1.msra.mxu0 0.0
    %258 = vmatprep.subr.mxu0 0.0
    %259 = vmatpush1.msra.mxu0 0.0
    %260 = vmatprep.subr.mxu0 0.0
    %261 = vmatpush1.msra.mxu0 0.0
    %262 = vmatprep.subr.mxu0 0.0
    %263 = vmatpush1.msra.mxu0 0.0
    %264 = vmatprep.subr.mxu0 0.0
    %265 = vmatpush1.msra.mxu0 0.0
    %266 = vmatprep.subr.mxu0 0.0
    %267 = vmatpush1.msra.mxu0 0.0
    %268 = vmatprep.subr.mxu0 0.0
    %269 = vmatpush1.msra.mxu0 0.0
    %270 = vmatprep.subr.mxu0 0.0
    %271 = vmatpush1.msra.mxu0 0.0
    %272 = vmatprep.subr.mxu0 0.0
    %273 = vmatpush1.msra.mxu0 0.0
    %274 = vmatprep.mubr.f32.mxu0 0.0
    %275 = vmatmul.mubr.f32.gmra.mrb[0].mxu0 %v43
    %v276 = vpop.f32.mrb[0].mxu0
    %v277 = vadd.f32 %v34, %v276
    %v278 = vpop.f32.mrb[0].mxu0
    %279 = vmatprep.mubr.f32.mxu0 0.0
    %280 = vmatmul.mubr.f32.gmra.mrb[0].mxu0 %v46
    %v281 = vpop.f32.mrb[0].mxu0
    %v282 = vadd.f32 %v39, %v281
    %v283 = vpop.f32.mrb[0].mxu0
    %284 = vdwg.mxu0
    %v285 = vmax.f32 %v277, 0.0
    %v286 = vmax.f32 %v282, 0.0
    %287 = vmatprep.subr.mxu0 0.0
    %288 = vmatpush1.msra.mxu0 %v285
    %289 = vmatprep.subr.mxu0 0.0
    %290 = vmatpush1.msra.mxu0 %v286
    %291 = vmatprep.subr.mxu0 0.0
    %292 = vmatpush1.msra.mxu0 0.0
    %293 = vmatprep.subr.mxu0 0.0
    %294 = vmatpush1.msra.mxu0 0.0
    %295 = vmatprep.subr.mxu0 0.0
    %296 = vmatpush1.msra.mxu0 0.0
    %297 = vmatprep.subr.mxu0 0.0
    %298 = vmatpush1.msra.mxu0 0.0
    %299 = vmatprep.subr.mxu0 0.0
    %300 = vmatpush1.msra.mxu0 0.0
    %301 = vmatprep.subr.mxu0 0.0
    %302 = vmatpush1.msra.mxu0 0.0
    %303 = vmatprep.subr.mxu0 0.0
    %304 = vmatpush1.msra.mxu0 0.0
    %305 = vmatprep.subr.mxu0 0.0
    %306 = vmatpush1.msra.mxu0 0.0
    %307 = vmatprep.subr.mxu0 0.0
    %308 = vmatpush1.msra.mxu0 0.0
    %309 = vmatprep.subr.mxu0 0.0
    %310 = vmatpush1.msra.mxu0 0.0
    %311 = vmatprep.subr.mxu0 0.0
    %312 = vmatpush1.msra.mxu0 0.0
    %313 = vmatprep.subr.mxu0 0.0
    %314 = vmatpush1.msra.mxu0 0.0
    %315 = vmatprep.subr.mxu0 0.0
    %316 = vmatpush1.msra.mxu0 0.0
    %317 = vmatprep.subr.mxu0 0.0
    %318 = vmatpush1.msra.mxu0 0.0
    %319 = vmatprep.subr.mxu0 0.0
    %320 = vmatpush1.msra.mxu0 0.0
    %321 = vmatprep.subr.mxu0 0.0
    %322 = vmatpush1.msra.mxu0 0.0
    %323 = vmatprep.subr.mxu0 0.0
    %324 = vmatpush1.msra.mxu0 0.0
    %325 = vmatprep.subr.mxu0 0.0
    %326 = vmatpush1.msra.mxu0 0.0
    %327 = vmatprep.subr.mxu0 0.0
    %328 = vmatpush1.msra.mxu0 0.0
    %329 = vmatprep.subr.mxu0 0.0
    %330 = vmatpush1.msra.mxu0 0.0
    %331 = vmatprep.subr.mxu0 0.0
    %332 = vmatpush1.msra.mxu0 0.0
    %333 = vmatprep.subr.mxu0 0.0
    %334 = vmatpush1.msra.mxu0 0.0
    %335 = vmatprep.subr.mxu0 0.0
    %336 = vmatpush1.msra.mxu0 0.0
    %337 = vmatprep.subr.mxu0 0.0
    %338 = vmatpush1.msra.mxu0 0.0
    %339 = vmatprep.subr.mxu0 0.0
    %340 = vmatpush1.msra.mxu0 0.0
    %341 = vmatprep.subr.mxu0 0.0
    %342 = vmatpush1.msra.mxu0 0.0
    %343 = vmatprep.subr.mxu0 0.0
    %344 = vmatpush1.msra.mxu0 0.0
    %345 = vmatprep.subr.mxu0 0.0
    %346 = vmatpush1.msra.mxu0 0.0
    %347 = vmatprep.subr.mxu0 0.0
    %348 = vmatpush1.msra.mxu0 0.0
    %349 = vmatprep.subr.mxu0 0.0
    %350 = vmatpush1.msra.mxu0 0.0
    %351 = vmatprep.mubr.f32.mxu0 0.0
    %352 = vmatmul.mubr.f32.gmra.mrb[0].mxu0 %v131
    %v353 = vpop.f32.mrb[0].mxu0
    %v354 = vadd.f32 %v128, %v353
    %v355 = vpop.f32.mrb[0].mxu0
    %356 = vdwg.mxu0
    %s357 = scalar_lea.vmem [#allocation2], 8
    %358 = vst.msk [vmem:[%s357] sm:$0xff] %vm203, %v354
    // Predicated region
    $region22: #{_lambda_.9} parent=1 // pred_check
      _
    $region23: #{_lambda_.9} parent=1 // pred_check_branch
      %360 = sbr.rel (0) target = $region25
    $region24: #{_lambda_.9} parent=1 // pred_region
      %s362 = ssub.s32 256, 256
      %363 = vsyncadd [#allocation3], %s362
      %s364 = sshll.u32 [#allocation2], 4
      %s365 = int_to_ptr.vmem [resolvable:$true] %s364
      %370 = dma.vmem_to_hbm [thread:$0]  %s365, 256, %s5, [#allocation3], 128, 128, 8
    $region25: #{_lambda_.9} parent=1 // pred_fallthru
      _
    // Predicated region
    $region26: #{_lambda_.9} parent=1 // pred_check
      _
    $region27: #{_lambda_.9} parent=1 // pred_check_branch
      %372 = sbr.rel (0) target = $region29
    $region28: #{_lambda_.9} parent=1 // pred_region
      %373 = dma.done [#allocation3], 256
    $region29: #{_lambda_.9} parent=1 // pred_fallthru
      _
    %374 = vsyncpa [#allocation3], 1

</llo_original>
